<compile_context>
chip_gen: v5e
topology: v5e:2x2
jax: 0.10.0
libtpu: 0.0.40
codegen_flags: <defaults>
</compile_context>

<pallas_src>
import functools
import math

import jax
import jax.numpy as jnp
from jax.experimental import pallas as pl
from jax.experimental.pallas import tpu as pltpu

F32 = jnp.float32
VMEM_SPEC = pl.BlockSpec(memory_space=pltpu.MemorySpace.VMEM)


def _layernorm(x, gamma, beta, eps=1e-5):
    mean = jnp.mean(x, axis=-1, keepdims=True)
    var = jnp.mean((x - mean) ** 2, axis=-1, keepdims=True)
    return (x - mean) * jax.lax.rsqrt(var + eps) * gamma + beta


# ---------------------------------------------------------------------------
# Kernel 1: full 2-layer bidirectional LSTM (final states only).
#   x:   (T*N, E)  time-major rows (row block t*N:(t+1)*N is timestep t)
#   len: (N, 1)    int32 sequence lengths
#   w_ih_l0: (E, 8H) = [fwd | bwd] input projections, b_l0: (1, 8H)
#   w_hh_l0f / w_hh_l0b: (H, 4H)
#   w_ih_l1bf / w_ih_l1bb: (H, 4H)  (layer-1-backward input weight, split by
#   which layer-0 direction feeds it), w_hh_l1b: (H, 4H), b_l1b: (1, 4H)
# Outputs: h_l1_bwd, h_l0_fwd, c_l1_bwd, c_l0_fwd   (each (N, H))
# ---------------------------------------------------------------------------
def _blstm_kernel(x_ref, len_ref,
                  wih0_ref, b0_ref, whh0f_ref, whh0b_ref,
                  wih1bf_ref, wih1bb_ref, whh1b_ref, b1b_ref,
                  h1b_ref, h0f_ref, c1b_ref, c0f_ref,
                  *, T, N, H):
    len_v = len_ref[...]                                   # (N, 1) int32
    whh0f = whh0f_ref[...]
    whh0b = whh0b_ref[...]

    # Hoisted input projection for BOTH layer-0 directions: one (T*N,E)x(E,8H)
    # matmul (lane-dense 8H=256 output) instead of 2*T tiny in-loop matmuls.
    xp0 = (jnp.dot(x_ref[...], wih0_ref[...], preferred_element_type=F32)
           + b0_ref[...])                                  # (T*N, 8H)

    def cell(x_gates, h, c, whh):
        gates = x_gates + jnp.dot(h, whh, preferred_element_type=F32)  # (N, 4H)
        i_g = jax.nn.sigmoid(gates[:, 0 * H:1 * H])
        f_g = jax.nn.sigmoid(gates[:, 1 * H:2 * H])
        g_g = jnp.tanh(gates[:, 2 * H:3 * H])
        o_g = jax.nn.sigmoid(gates[:, 3 * H:4 * H])
        c_new = f_g * c + i_g * g_g
        h_new = o_g * jnp.tanh(c_new)
        return h_new, c_new

    zeros = jnp.zeros((N, H), F32)
    h_f, c_f, h_b, c_b = zeros, zeros, zeros, zeros
    hs_f = [None] * T        # forward hidden at time t
    hs_b_rev = [None] * T    # backward hidden at iteration i (time T-1-i)

    # Fully unrolled time loop (T is small & static) -> LLO sees across steps.
    for i in range(T):
        tf, tb = i, T - 1 - i
        # forward direction (masked update == pack_padded_sequence semantics)
        m_f = tf < len_v
        hn, cn = cell(xp0[tf * N:(tf + 1) * N, 0:4 * H], h_f, c_f, whh0f)
        h_f = jnp.where(m_f, hn, h_f)
        c_f = jnp.where(m_f, cn, c_f)
        hs_f[tf] = h_f
        # backward direction
        m_b = tb < len_v
        hn, cn = cell(xp0[tb * N:(tb + 1) * N, 4 * H:8 * H], h_b, c_b, whh0b)
        h_b = jnp.where(m_b, hn, h_b)
        c_b = jnp.where(m_b, cn, c_b)
        hs_b_rev[i] = h_b

    # Layer-1 backward (only direction whose final state is consumed).
    # Hoisted input projection, stacked in layer-1-backward iteration order
    # (iteration i processes time t = T-1-i).
    hf_rev = jnp.concatenate([hs_f[T - 1 - i] for i in range(T)], axis=0)  # (T*N,H)
    hb_rev = jnp.concatenate(hs_b_rev, axis=0)                             # (T*N,H)
    xp1 = (jnp.dot(hf_rev, wih1bf_ref[...], preferred_element_type=F32)
           + jnp.dot(hb_rev, wih1bb_ref[...], preferred_element_type=F32)
           + b1b_ref[...])                                                 # (T*N,4H)

    whh1b = whh1b_ref[...]
    h1, c1 = zeros, zeros
    for i in range(T):
        t = T - 1 - i
        m = t < len_v
        hn, cn = cell(xp1[i * N:(i + 1) * N, :], h1, c1, whh1b)
        h1 = jnp.where(m, hn, h1)
        c1 = jnp.where(m, cn, c1)

    h1b_ref[...] = h1      # h[-1]
    h0f_ref[...] = h_f     # h[0]
    c1b_ref[...] = c1      # c[-1]
    c0f_ref[...] = c_f     # c[0]


def blstm_context_extractor(emb, lengths, p):
    # emb: (N, T, E) batch-major embedding; lengths: (N,)
    N, T, E = emb.shape
    H = E
    x2 = jnp.transpose(emb, (1, 0, 2)).reshape(T * N, E)   # time-major rows
    len2 = lengths.reshape(N, 1).astype(jnp.int32)
    kernel = functools.partial(_blstm_kernel, T=T, N=N, H=H)
    return pl.pallas_call(
        kernel,
        out_shape=tuple(jax.ShapeDtypeStruct((N, H), F32) for _ in range(4)),
        in_specs=[VMEM_SPEC] * 10,
        out_specs=(VMEM_SPEC,) * 4,
    )(x2, len2,
      p["w_ih_l0"], p["b_l0"], p["w_hh_l0f"], p["w_hh_l0b"],
      p["w_ih_l1bf"], p["w_ih_l1bb"], p["w_hh_l1b"], p["b_l1b"])


# ---------------------------------------------------------------------------
# Kernel 2: fused context-encoder + cross-attention + LN/FFN/residual.
# Grid over batch B.  bias_hidden and its K/V projections are computed once at
# grid step 0 into persistent VMEM scratch (this is the torch
# bias_hidden.expand(B, -1, -1)); every step then does Q-projection,
# per-head attention (accumulating into w_o), LayerNorms, split-weight FFN
# and the residual add.
# ---------------------------------------------------------------------------
def _bias_encoder_kernel(h1b_ref, h0f_ref, c1b_ref, c0f_ref,
                         wce1_ref, wce2_ref, wce3_ref, wce4_ref, bce_ref,
                         gce_ref, betace_ref,
                         wq_ref, bq_ref, wk_ref, bk_ref, wv_ref, bv_ref,
                         wo_ref, bo_ref,
                         gn1_ref, bn1_ref, gn2_ref, bn2_ref,
                         wf1_ref, wf2_ref, bf_ref,
                         henc_ref,
                         o_ref,
                         bh_sc, k_sc, v_sc,
                         *, num_heads):
    @pl.when(pl.program_id(0) == 0)
    def _():
        # context encoder: Linear(4E->E) with pre-split weight (no concat) + LN
        pre = (jnp.dot(h1b_ref[...], wce1_ref[...], preferred_element_type=F32)
               + jnp.dot(h0f_ref[...], wce2_ref[...], preferred_element_type=F32)
               + jnp.dot(c1b_ref[...], wce3_ref[...], preferred_element_type=F32)
               + jnp.dot(c0f_ref[...], wce4_ref[...], preferred_element_type=F32)
               + bce_ref[...])
        bh = _layernorm(pre, gce_ref[...], betace_ref[...])
        bh_sc[...] = bh
        # hoist K / V projections out of the per-batch grid
        k_sc[...] = jnp.dot(bh, wk_ref[...], preferred_element_type=F32) + bk_ref[...]
        v_sc[...] = jnp.dot(bh, wv_ref[...], preferred_element_type=F32) + bv_ref[...]

    h = henc_ref[0]                                        # (T, E)
    E = h.shape[-1]
    dk = E // num_heads
    scale = 1.0 / math.sqrt(dk)

    q = jnp.dot(h, wq_ref[...], preferred_element_type=F32) + bq_ref[...]
    k = k_sc[...]
    v = v_sc[...]
    wo = wo_ref[...]

    att = jnp.zeros_like(q)
    for hd in range(num_heads):                            # static unroll over heads
        lo, hi = hd * dk, (hd + 1) * dk
        qh = q[:, lo:hi]
        kh = k[:, lo:hi]
        vh = v[:, lo:hi]
        scores = jax.lax.dot_general(qh, kh, (((1,), (1,)), ((), ())),
                                     preferred_element_type=F32) * scale   # (T, Nc)
        m = jnp.max(scores, axis=-1, keepdims=True)
        e = jnp.exp(scores - m)
        inv = pl.reciprocal(jnp.sum(e, axis=-1, keepdims=True), approx=True)
        attn = e * inv
        ctx = jnp.dot(attn, vh, preferred_element_type=F32)                # (T, dk)
        # accumulate per head into the output projection (no lane concat)
        att = att + jnp.dot(ctx, wo[lo:hi, :], preferred_element_type=F32)
    att = att + bo_ref[...]

    ln1 = _layernorm(h, gn1_ref[...], bn1_ref[...])
    ln2 = _layernorm(att, gn2_ref[...], bn2_ref[...])
    ffn = (jnp.dot(ln1, wf1_ref[...], preferred_element_type=F32)
           + jnp.dot(ln2, wf2_ref[...], preferred_element_type=F32)
           + bf_ref[...])
    o_ref[0] = h + ffn


# ---------------------------------------------------------------------------
# Full forward
# ---------------------------------------------------------------------------
def context_bias_forward(params, context_list, context_lengths, h_enc, *, num_heads):
    # clamp + embedding lookup (gather stays in XLA)
    tokens = jnp.maximum(context_list, 0)
    emb = jnp.take(params["embedding"], tokens, axis=0)    # (N, T, E)

    # whole BLSTM in one kernel -> 4 final-state tensors (bias_vector split)
    h1b, h0f, c1b, c0f = blstm_context_extractor(emb, context_lengths, params)

    B, T, E = h_enc.shape
    Nc = emb.shape[0]

    def fixed(shape):
        zeros = (0,) * len(shape)
        return pl.BlockSpec(shape, lambda b, _z=zeros: _z)

    out = pl.pallas_call(
        functools.partial(_bias_encoder_kernel, num_heads=num_heads),
        out_shape=jax.ShapeDtypeStruct((B, T, E), F32),
        grid=(B,),
        in_specs=[
            fixed((Nc, E)), fixed((Nc, E)), fixed((Nc, E)), fixed((Nc, E)),
            fixed((E, E)), fixed((E, E)), fixed((E, E)), fixed((E, E)), fixed((1, E)),
            fixed((1, E)), fixed((1, E)),
            fixed((E, E)), fixed((1, E)),
            fixed((E, E)), fixed((1, E)),
            fixed((E, E)), fixed((1, E)),
            fixed((E, E)), fixed((1, E)),
            fixed((1, E)), fixed((1, E)), fixed((1, E)), fixed((1, E)),
            fixed((E, E)), fixed((E, E)), fixed((1, E)),
            pl.BlockSpec((1, T, E), lambda b: (b, 0, 0)),
        ],
        out_specs=pl.BlockSpec((1, T, E), lambda b: (b, 0, 0)),
        scratch_shapes=[pltpu.VMEM((Nc, E), F32),
                        pltpu.VMEM((Nc, E), F32),
                        pltpu.VMEM((Nc, E), F32)],
        # scratch written at b==0 is reused at later steps -> keep sequential
        compiler_params=pltpu.CompilerParams(dimension_semantics=("arbitrary",)),
    )(h1b, h0f, c1b, c0f,
      params["w_ce1"], params["w_ce2"], params["w_ce3"], params["w_ce4"], params["b_ce"],
      params["g_ce"], params["beta_ce"],
      params["w_q"], params["b_q"], params["w_k"], params["b_k"],
      params["w_v"], params["b_v"], params["w_o"], params["b_o"],
      params["g_n1"], params["b_n1"], params["g_n2"], params["b_n2"],
      params["wf1"], params["wf2"], params["bf"],
      h_enc)
    return out


# ---------------------------------------------------------------------------
# Deterministic synthetic parameters (shapes follow the module __init__;
# weights pre-transposed / pre-split in the layouts the kernels expect).
# ---------------------------------------------------------------------------
def init_params(key, vocab_size, E):
    H = E
    keys = iter(jax.random.split(key, 48))

    def nrm(shape, scale):
        return (scale * jax.random.normal(next(keys), shape)).astype(F32)

    s = 1.0 / math.sqrt(H)
    p = {"embedding": nrm((vocab_size, E), 0.1)}
    # layer-0 LSTM (fwd | bwd): input projections concatenated along out dim
    p["w_ih_l0"] = jnp.concatenate([nrm((E, 4 * H), s), nrm((E, 4 * H), s)], axis=1)
    p["b_l0"] = jnp.concatenate([nrm((1, 4 * H), s), nrm((1, 4 * H), s)], axis=1)
    p["w_hh_l0f"] = nrm((H, 4 * H), s)
    p["w_hh_l0b"] = nrm((H, 4 * H), s)
    # layer-1 backward LSTM, w_ih split by which layer-0 direction feeds it
    p["w_ih_l1bf"] = nrm((H, 4 * H), s)
    p["w_ih_l1bb"] = nrm((H, 4 * H), s)
    p["w_hh_l1b"] = nrm((H, 4 * H), s)
    p["b_l1b"] = nrm((1, 4 * H), s)
    # context encoder Linear(4E->E) (weight split in four) + LayerNorm
    sce = 1.0 / math.sqrt(4 * E)
    for i in range(1, 5):
        p[f"w_ce{i}"] = nrm((E, E), sce)
    p["b_ce"] = jnp.zeros((1, E), F32)
    p["g_ce"] = jnp.ones((1, E), F32)
    p["beta_ce"] = jnp.zeros((1, E), F32)
    # multi-head attention
    for nm in ("q", "k", "v", "o"):
        p[f"w_{nm}"] = nrm((E, E), 1.0 / math.sqrt(E))
        p[f"b_{nm}"] = jnp.zeros((1, E), F32)
    # encoder_norm / encoder_bias_norm / encoder_ffn (assumed, see TODO above)
    p["g_n1"] = jnp.ones((1, E), F32)
    p["b_n1"] = jnp.zeros((1, E), F32)
    p["g_n2"] = jnp.ones((1, E), F32)
    p["b_n2"] = jnp.zeros((1, E), F32)
    sf = 1.0 / math.sqrt(2 * E)
    p["wf1"] = nrm((E, E), sf)
    p["wf2"] = nrm((E, E), sf)
    p["bf"] = jnp.zeros((1, E), F32)
    return p


if __name__ == "__main__":
    VOCAB = 50
    E = 32                 # input_size == output_size == embedding_size
    NUM_HEADS = 4
    B, T_ENC = 2, 16       # encoder output: (B, T_enc, E)
    N_CTX, T_CTX = 8, 8    # context list: (num_contexts, max_context_len)

    key = jax.random.PRNGKey(0)
    k_param, k_tok, k_enc = jax.random.split(key, 3)

    params = init_params(k_param, VOCAB, E)
    context_list = jax.random.randint(k_tok, (N_CTX, T_CTX), -2, VOCAB, dtype=jnp.int32)
    context_lengths = jnp.array([8, 5, 3, 7, 2, 8, 4, 6], dtype=jnp.int32)
    h_enc = jax.random.normal(k_enc, (B, T_ENC, E), dtype=F32)

    out = context_bias_forward(params, context_list, context_lengths, h_enc,
                               num_heads=NUM_HEADS)
    out = jax.block_until_ready(out)
    assert out.shape == (B, T_ENC, E) and out.dtype == F32
    print("KERNEL_OK")
</pallas_src>

<mosaic_0001>
module attributes {stable_mosaic.version = 11 : i64} {
  func.func @_blstm_kernel(%arg0: memref<64x32xf32, #tpu.memory_space<vmem>>, %arg1: memref<8x1xi32, #tpu.memory_space<vmem>>, %arg2: memref<32x256xf32, #tpu.memory_space<vmem>>, %arg3: memref<1x256xf32, #tpu.memory_space<vmem>>, %arg4: memref<32x128xf32, #tpu.memory_space<vmem>>, %arg5: memref<32x128xf32, #tpu.memory_space<vmem>>, %arg6: memref<32x128xf32, #tpu.memory_space<vmem>>, %arg7: memref<32x128xf32, #tpu.memory_space<vmem>>, %arg8: memref<32x128xf32, #tpu.memory_space<vmem>>, %arg9: memref<1x128xf32, #tpu.memory_space<vmem>>, %arg10: memref<8x32xf32, #tpu.memory_space<vmem>>, %arg11: memref<8x32xf32, #tpu.memory_space<vmem>>, %arg12: memref<8x32xf32, #tpu.memory_space<vmem>>, %arg13: memref<8x32xf32, #tpu.memory_space<vmem>>) attributes {dimension_semantics = [], scalar_prefetch = 0 : i64, scratch_operands = 0 : i64, tpu.core_type = #tpu.core_type<tc>} {
    %c0 = arith.constant 0 : index
    %c0_0 = arith.constant 0 : index
    %0 = vector.load %arg1[%c0, %c0_0] : memref<8x1xi32, #tpu.memory_space<vmem>>, vector<8x1xi32>
    %c0_1 = arith.constant 0 : index
    %c0_2 = arith.constant 0 : index
    %1 = vector.load %arg4[%c0_1, %c0_2] : memref<32x128xf32, #tpu.memory_space<vmem>>, vector<32x128xf32>
    %c0_3 = arith.constant 0 : index
    %c0_4 = arith.constant 0 : index
    %2 = vector.load %arg5[%c0_3, %c0_4] : memref<32x128xf32, #tpu.memory_space<vmem>>, vector<32x128xf32>
    %c0_5 = arith.constant 0 : index
    %c0_6 = arith.constant 0 : index
    %3 = vector.load %arg0[%c0_5, %c0_6] : memref<64x32xf32, #tpu.memory_space<vmem>>, vector<64x32xf32>
    %c0_7 = arith.constant 0 : index
    %c0_8 = arith.constant 0 : index
    %4 = vector.load %arg2[%c0_7, %c0_8] : memref<32x256xf32, #tpu.memory_space<vmem>>, vector<32x256xf32>
    %cst = arith.constant dense<0.000000e+00> : vector<64x256xf32>
    %5 = tpu.matmul %3, %4, %cst {dimension_numbers = #tpu.dot_dimension_numbers<[1], [0], [0], [1], [0, 0, 1, 1], [], []>} : vector<64x32xf32>, vector<32x256xf32>, vector<64x256xf32> -> vector<64x256xf32>
    %c0_9 = arith.constant 0 : index
    %c0_10 = arith.constant 0 : index
    %6 = vector.load %arg3[%c0_9, %c0_10] : memref<1x256xf32, #tpu.memory_space<vmem>>, vector<1x256xf32>
    %7 = vector.broadcast %6 : vector<1x256xf32> to vector<64x256xf32>
    %8 = arith.addf %5, %7 : vector<64x256xf32>
    %cst_11 = arith.constant 0.000000e+00 : f32
    %9 = vector.broadcast %cst_11 : f32 to vector<8x32xf32>
    %c0_i32 = arith.constant 0 : i32
    %10 = vector.broadcast %c0_i32 : i32 to vector<8x1xi32>
    %11 = arith.cmpi sgt, %0, %10 : vector<8x1xi32>
    %12 = vector.extract_strided_slice %8 {offsets = [0, 0], sizes = [8, 128], strides = [1, 1]} : vector<64x256xf32> to vector<8x128xf32>
    %cst_12 = arith.constant dense<0.000000e+00> : vector<8x128xf32>
    %13 = tpu.matmul %9, %1, %cst_12 {dimension_numbers = #tpu.dot_dimension_numbers<[1], [0], [0], [1], [0, 0, 1, 1], [], []>} : vector<8x32xf32>, vector<32x128xf32>, vector<8x128xf32> -> vector<8x128xf32>
    %14 = arith.addf %12, %13 : vector<8x128xf32>
    %15 = vector.extract_strided_slice %14 {offsets = [0, 0], sizes = [8, 32], strides = [1, 1]} : vector<8x128xf32> to vector<8x32xf32>
    %16 = arith.negf %15 : vector<8x32xf32>
    %17 = math.exp %16 : vector<8x32xf32>
    %cst_13 = arith.constant 1.000000e+00 : f32
    %18 = vector.broadcast %cst_13 : f32 to vector<8x32xf32>
    %19 = arith.addf %18, %17 : vector<8x32xf32>
    %20 = arith.divf %18, %19 : vector<8x32xf32>
    %21 = vector.extract_strided_slice %14 {offsets = [0, 32], sizes = [8, 32], strides = [1, 1]} : vector<8x128xf32> to vector<8x32xf32>
    %22 = arith.negf %21 : vector<8x32xf32>
    %23 = math.exp %22 : vector<8x32xf32>
    %cst_14 = arith.constant 1.000000e+00 : f32
    %24 = vector.broadcast %cst_14 : f32 to vector<8x32xf32>
    %25 = arith.addf %24, %23 : vector<8x32xf32>
    %26 = arith.divf %24, %25 : vector<8x32xf32>
    %27 = vector.extract_strided_slice %14 {offsets = [0, 64], sizes = [8, 32], strides = [1, 1]} : vector<8x128xf32> to vector<8x32xf32>
    %28 = math.tanh %27 : vector<8x32xf32>
    %29 = vector.extract_strided_slice %14 {offsets = [0, 96], sizes = [8, 32], strides = [1, 1]} : vector<8x128xf32> to vector<8x32xf32>
    %30 = arith.negf %29 : vector<8x32xf32>
    %31 = math.exp %30 : vector<8x32xf32>
    %cst_15 = arith.constant 1.000000e+00 : f32
    %32 = vector.broadcast %cst_15 : f32 to vector<8x32xf32>
    %33 = arith.addf %32, %31 : vector<8x32xf32>
    %34 = arith.divf %32, %33 : vector<8x32xf32>
    %35 = arith.mulf %26, %9 : vector<8x32xf32>
    %36 = arith.mulf %20, %28 : vector<8x32xf32>
    %37 = arith.addf %35, %36 : vector<8x32xf32>
    %38 = math.tanh %37 : vector<8x32xf32>
    %39 = arith.mulf %34, %38 : vector<8x32xf32>
    %40 = vector.shape_cast %11 : vector<8x1xi1> to vector<8x1xi1>
    %41 = vector.broadcast %40 : vector<8x1xi1> to vector<8x32xi1>
    %42 = arith.select %41, %39, %9 : vector<8x32xi1>, vector<8x32xf32>
    %43 = vector.shape_cast %11 : vector<8x1xi1> to vector<8x1xi1>
    %44 = vector.broadcast %43 : vector<8x1xi1> to vector<8x32xi1>
    %45 = arith.select %44, %37, %9 : vector<8x32xi1>, vector<8x32xf32>
    %c7_i32 = arith.constant 7 : i32
    %46 = vector.broadcast %c7_i32 : i32 to vector<8x1xi32>
    %47 = arith.cmpi sgt, %0, %46 : vector<8x1xi32>
    %48 = vector.extract_strided_slice %8 {offsets = [56, 128], sizes = [8, 128], strides = [1, 1]} : vector<64x256xf32> to vector<8x128xf32>
    %cst_16 = arith.constant dense<0.000000e+00> : vector<8x128xf32>
    %49 = tpu.matmul %9, %2, %cst_16 {dimension_numbers = #tpu.dot_dimension_numbers<[1], [0], [0], [1], [0, 0, 1, 1], [], []>} : vector<8x32xf32>, vector<32x128xf32>, vector<8x128xf32> -> vector<8x128xf32>
    %50 = arith.addf %48, %49 : vector<8x128xf32>
    %51 = vector.extract_strided_slice %50 {offsets = [0, 0], sizes = [8, 32], strides = [1, 1]} : vector<8x128xf32> to vector<8x32xf32>
    %52 = arith.negf %51 : vector<8x32xf32>
    %53 = math.exp %52 : vector<8x32xf32>
    %cst_17 = arith.constant 1.000000e+00 : f32
    %54 = vector.broadcast %cst_17 : f32 to vector<8x32xf32>
    %55 = arith.addf %54, %53 : vector<8x32xf32>
    %56 = arith.divf %54, %55 : vector<8x32xf32>
    %57 = vector.extract_strided_slice %50 {offsets = [0, 32], sizes = [8, 32], strides = [1, 1]} : vector<8x128xf32> to vector<8x32xf32>
    %58 = arith.negf %57 : vector<8x32xf32>
    %59 = math.exp %58 : vector<8x32xf32>
    %cst_18 = arith.constant 1.000000e+00 : f32
    %60 = vector.broadcast %cst_18 : f32 to vector<8x32xf32>
    %61 = arith.addf %60, %59 : vector<8x32xf32>
    %62 = arith.divf %60, %61 : vector<8x32xf32>
    %63 = vector.extract_strided_slice %50 {offsets = [0, 64], sizes = [8, 32], strides = [1, 1]} : vector<8x128xf32> to vector<8x32xf32>
    %64 = math.tanh %63 : vector<8x32xf32>
    %65 = vector.extract_strided_slice %50 {offsets = [0, 96], sizes = [8, 32], strides = [1, 1]} : vector<8x128xf32> to vector<8x32xf32>
    %66 = arith.negf %65 : vector<8x32xf32>
    %67 = math.exp %66 : vector<8x32xf32>
    %cst_19 = arith.constant 1.000000e+00 : f32
    %68 = vector.broadcast %cst_19 : f32 to vector<8x32xf32>
    %69 = arith.addf %68, %67 : vector<8x32xf32>
    %70 = arith.divf %68, %69 : vector<8x32xf32>
    %71 = arith.mulf %62, %9 : vector<8x32xf32>
    %72 = arith.mulf %56, %64 : vector<8x32xf32>
    %73 = arith.addf %71, %72 : vector<8x32xf32>
    %74 = math.tanh %73 : vector<8x32xf32>
    %75 = arith.mulf %70, %74 : vector<8x32xf32>
    %76 = vector.shape_cast %47 : vector<8x1xi1> to vector<8x1xi1>
    %77 = vector.broadcast %76 : vector<8x1xi1> to vector<8x32xi1>
    %78 = arith.select %77, %75, %9 : vector<8x32xi1>, vector<8x32xf32>
    %79 = vector.shape_cast %47 : vector<8x1xi1> to vector<8x1xi1>
    %80 = vector.broadcast %79 : vector<8x1xi1> to vector<8x32xi1>
    %81 = arith.select %80, %73, %9 : vector<8x32xi1>, vector<8x32xf32>
    %c1_i32 = arith.constant 1 : i32
    %82 = vector.broadcast %c1_i32 : i32 to vector<8x1xi32>
    %83 = arith.cmpi sgt, %0, %82 : vector<8x1xi32>
    %84 = vector.extract_strided_slice %8 {offsets = [8, 0], sizes = [8, 128], strides = [1, 1]} : vector<64x256xf32> to vector<8x128xf32>
    %cst_20 = arith.constant dense<0.000000e+00> : vector<8x128xf32>
    %85 = tpu.matmul %42, %1, %cst_20 {dimension_numbers = #tpu.dot_dimension_numbers<[1], [0], [0], [1], [0, 0, 1, 1], [], []>} : vector<8x32xf32>, vector<32x128xf32>, vector<8x128xf32> -> vector<8x128xf32>
    %86 = arith.addf %84, %85 : vector<8x128xf32>
    %87 = vector.extract_strided_slice %86 {offsets = [0, 0], sizes = [8, 32], strides = [1, 1]} : vector<8x128xf32> to vector<8x32xf32>
    %88 = arith.negf %87 : vector<8x32xf32>
    %89 = math.exp %88 : vector<8x32xf32>
    %cst_21 = arith.constant 1.000000e+00 : f32
    %90 = vector.broadcast %cst_21 : f32 to vector<8x32xf32>
    %91 = arith.addf %90, %89 : vector<8x32xf32>
    %92 = arith.divf %90, %91 : vector<8x32xf32>
    %93 = vector.extract_strided_slice %86 {offsets = [0, 32], sizes = [8, 32], strides = [1, 1]} : vector<8x128xf32> to vector<8x32xf32>
    %94 = arith.negf %93 : vector<8x32xf32>
    %95 = math.exp %94 : vector<8x32xf32>
    %cst_22 = arith.constant 1.000000e+00 : f32
    %96 = vector.broadcast %cst_22 : f32 to vector<8x32xf32>
    %97 = arith.addf %96, %95 : vector<8x32xf32>
    %98 = arith.divf %96, %97 : vector<8x32xf32>
    %99 = vector.extract_strided_slice %86 {offsets = [0, 64], sizes = [8, 32], strides = [1, 1]} : vector<8x128xf32> to vector<8x32xf32>
    %100 = math.tanh %99 : vector<8x32xf32>
    %101 = vector.extract_strided_slice %86 {offsets = [0, 96], sizes = [8, 32], strides = [1, 1]} : vector<8x128xf32> to vector<8x32xf32>
    %102 = arith.negf %101 : vector<8x32xf32>
    %103 = math.exp %102 : vector<8x32xf32>
    %cst_23 = arith.constant 1.000000e+00 : f32
    %104 = vector.broadcast %cst_23 : f32 to vector<8x32xf32>
    %105 = arith.addf %104, %103 : vector<8x32xf32>
    %106 = arith.divf %104, %105 : vector<8x32xf32>
    %107 = arith.mulf %98, %45 : vector<8x32xf32>
    %108 = arith.mulf %92, %100 : vector<8x32xf32>
    %109 = arith.addf %107, %108 : vector<8x32xf32>
    %110 = math.tanh %109 : vector<8x32xf32>
    %111 = arith.mulf %106, %110 : vector<8x32xf32>
    %112 = vector.shape_cast %83 : vector<8x1xi1> to vector<8x1xi1>
    %113 = vector.broadcast %112 : vector<8x1xi1> to vector<8x32xi1>
    %114 = arith.select %113, %111, %42 : vector<8x32xi1>, vector<8x32xf32>
    %115 = vector.shape_cast %83 : vector<8x1xi1> to vector<8x1xi1>
    %116 = vector.broadcast %115 : vector<8x1xi1> to vector<8x32xi1>
    %117 = arith.select %116, %109, %45 : vector<8x32xi1>, vector<8x32xf32>
    %c6_i32 = arith.constant 6 : i32
    %118 = vector.broadcast %c6_i32 : i32 to vector<8x1xi32>
    %119 = arith.cmpi sgt, %0, %118 : vector<8x1xi32>
    %120 = vector.extract_strided_slice %8 {offsets = [48, 128], sizes = [8, 128], strides = [1, 1]} : vector<64x256xf32> to vector<8x128xf32>
    %cst_24 = arith.constant dense<0.000000e+00> : vector<8x128xf32>
    %121 = tpu.matmul %78, %2, %cst_24 {dimension_numbers = #tpu.dot_dimension_numbers<[1], [0], [0], [1], [0, 0, 1, 1], [], []>} : vector<8x32xf32>, vector<32x128xf32>, vector<8x128xf32> -> vector<8x128xf32>
    %122 = arith.addf %120, %121 : vector<8x128xf32>
    %123 = vector.extract_strided_slice %122 {offsets = [0, 0], sizes = [8, 32], strides = [1, 1]} : vector<8x128xf32> to vector<8x32xf32>
    %124 = arith.negf %123 : vector<8x32xf32>
    %125 = math.exp %124 : vector<8x32xf32>
    %cst_25 = arith.constant 1.000000e+00 : f32
    %126 = vector.broadcast %cst_25 : f32 to vector<8x32xf32>
    %127 = arith.addf %126, %125 : vector<8x32xf32>
    %128 = arith.divf %126, %127 : vector<8x32xf32>
    %129 = vector.extract_strided_slice %122 {offsets = [0, 32], sizes = [8, 32], strides = [1, 1]} : vector<8x128xf32> to vector<8x32xf32>
    %130 = arith.negf %129 : vector<8x32xf32>
    %131 = math.exp %130 : vector<8x32xf32>
    %cst_26 = arith.constant 1.000000e+00 : f32
    %132 = vector.broadcast %cst_26 : f32 to vector<8x32xf32>
    %133 = arith.addf %132, %131 : vector<8x32xf32>
    %134 = arith.divf %132, %133 : vector<8x32xf32>
    %135 = vector.extract_strided_slice %122 {offsets = [0, 64], sizes = [8, 32], strides = [1, 1]} : vector<8x128xf32> to vector<8x32xf32>
    %136 = math.tanh %135 : vector<8x32xf32>
    %137 = vector.extract_strided_slice %122 {offsets = [0, 96], sizes = [8, 32], strides = [1, 1]} : vector<8x128xf32> to vector<8x32xf32>
    %138 = arith.negf %137 : vector<8x32xf32>
    %139 = math.exp %138 : vector<8x32xf32>
    %cst_27 = arith.constant 1.000000e+00 : f32
    %140 = vector.broadcast %cst_27 : f32 to vector<8x32xf32>
    %141 = arith.addf %140, %139 : vector<8x32xf32>
    %142 = arith.divf %140, %141 : vector<8x32xf32>
    %143 = arith.mulf %134, %81 : vector<8x32xf32>
    %144 = arith.mulf %128, %136 : vector<8x32xf32>
    %145 = arith.addf %143, %144 : vector<8x32xf32>
    %146 = math.tanh %145 : vector<8x32xf32>
    %147 = arith.mulf %142, %146 : vector<8x32xf32>
    %148 = vector.shape_cast %119 : vector<8x1xi1> to vector<8x1xi1>
    %149 = vector.broadcast %148 : vector<8x1xi1> to vector<8x32xi1>
    %150 = arith.select %149, %147, %78 : vector<8x32xi1>, vector<8x32xf32>
    %151 = vector.shape_cast %119 : vector<8x1xi1> to vector<8x1xi1>
    %152 = vector.broadcast %151 : vector<8x1xi1> to vector<8x32xi1>
    %153 = arith.select %152, %145, %81 : vector<8x32xi1>, vector<8x32xf32>
    %c2_i32 = arith.constant 2 : i32
    %154 = vector.broadcast %c2_i32 : i32 to vector<8x1xi32>
    %155 = arith.cmpi sgt, %0, %154 : vector<8x1xi32>
    %156 = vector.extract_strided_slice %8 {offsets = [16, 0], sizes = [8, 128], strides = [1, 1]} : vector<64x256xf32> to vector<8x128xf32>
    %cst_28 = arith.constant dense<0.000000e+00> : vector<8x128xf32>
    %157 = tpu.matmul %114, %1, %cst_28 {dimension_numbers = #tpu.dot_dimension_numbers<[1], [0], [0], [1], [0, 0, 1, 1], [], []>} : vector<8x32xf32>, vector<32x128xf32>, vector<8x128xf32> -> vector<8x128xf32>
    %158 = arith.addf %156, %157 : vector<8x128xf32>
    %159 = vector.extract_strided_slice %158 {offsets = [0, 0], sizes = [8, 32], strides = [1, 1]} : vector<8x128xf32> to vector<8x32xf32>
    %160 = arith.negf %159 : vector<8x32xf32>
    %161 = math.exp %160 : vector<8x32xf32>
    %cst_29 = arith.constant 1.000000e+00 : f32
    %162 = vector.broadcast %cst_29 : f32 to vector<8x32xf32>
    %163 = arith.addf %162, %161 : vector<8x32xf32>
    %164 = arith.divf %162, %163 : vector<8x32xf32>
    %165 = vector.extract_strided_slice %158 {offsets = [0, 32], sizes = [8, 32], strides = [1, 1]} : vector<8x128xf32> to vector<8x32xf32>
    %166 = arith.negf %165 : vector<8x32xf32>
    %167 = math.exp %166 : vector<8x32xf32>
    %cst_30 = arith.constant 1.000000e+00 : f32
    %168 = vector.broadcast %cst_30 : f32 to vector<8x32xf32>
    %169 = arith.addf %168, %167 : vector<8x32xf32>
    %170 = arith.divf %168, %169 : vector<8x32xf32>
    %171 = vector.extract_strided_slice %158 {offsets = [0, 64], sizes = [8, 32], strides = [1, 1]} : vector<8x128xf32> to vector<8x32xf32>
    %172 = math.tanh %171 : vector<8x32xf32>
    %173 = vector.extract_strided_slice %158 {offsets = [0, 96], sizes = [8, 32], strides = [1, 1]} : vector<8x128xf32> to vector<8x32xf32>
    %174 = arith.negf %173 : vector<8x32xf32>
    %175 = math.exp %174 : vector<8x32xf32>
    %cst_31 = arith.constant 1.000000e+00 : f32
    %176 = vector.broadcast %cst_31 : f32 to vector<8x32xf32>
    %177 = arith.addf %176, %175 : vector<8x32xf32>
    %178 = arith.divf %176, %177 : vector<8x32xf32>
    %179 = arith.mulf %170, %117 : vector<8x32xf32>
    %180 = arith.mulf %164, %172 : vector<8x32xf32>
    %181 = arith.addf %179, %180 : vector<8x32xf32>
    %182 = math.tanh %181 : vector<8x32xf32>
    %183 = arith.mulf %178, %182 : vector<8x32xf32>
    %184 = vector.shape_cast %155 : vector<8x1xi1> to vector<8x1xi1>
    %185 = vector.broadcast %184 : vector<8x1xi1> to vector<8x32xi1>
    %186 = arith.select %185, %183, %114 : vector<8x32xi1>, vector<8x32xf32>
    %187 = vector.shape_cast %155 : vector<8x1xi1> to vector<8x1xi1>
    %188 = vector.broadcast %187 : vector<8x1xi1> to vector<8x32xi1>
    %189 = arith.select %188, %181, %117 : vector<8x32xi1>, vector<8x32xf32>
    %c5_i32 = arith.constant 5 : i32
    %190 = vector.broadcast %c5_i32 : i32 to vector<8x1xi32>
    %191 = arith.cmpi sgt, %0, %190 : vector<8x1xi32>
    %192 = vector.extract_strided_slice %8 {offsets = [40, 128], sizes = [8, 128], strides = [1, 1]} : vector<64x256xf32> to vector<8x128xf32>
    %cst_32 = arith.constant dense<0.000000e+00> : vector<8x128xf32>
    %193 = tpu.matmul %150, %2, %cst_32 {dimension_numbers = #tpu.dot_dimension_numbers<[1], [0], [0], [1], [0, 0, 1, 1], [], []>} : vector<8x32xf32>, vector<32x128xf32>, vector<8x128xf32> -> vector<8x128xf32>
    %194 = arith.addf %192, %193 : vector<8x128xf32>
    %195 = vector.extract_strided_slice %194 {offsets = [0, 0], sizes = [8, 32], strides = [1, 1]} : vector<8x128xf32> to vector<8x32xf32>
    %196 = arith.negf %195 : vector<8x32xf32>
    %197 = math.exp %196 : vector<8x32xf32>
    %cst_33 = arith.constant 1.000000e+00 : f32
    %198 = vector.broadcast %cst_33 : f32 to vector<8x32xf32>
    %199 = arith.addf %198, %197 : vector<8x32xf32>
    %200 = arith.divf %198, %199 : vector<8x32xf32>
    %201 = vector.extract_strided_slice %194 {offsets = [0, 32], sizes = [8, 32], strides = [1, 1]} : vector<8x128xf32> to vector<8x32xf32>
    %202 = arith.negf %201 : vector<8x32xf32>
    %203 = math.exp %202 : vector<8x32xf32>
    %cst_34 = arith.constant 1.000000e+00 : f32
    %204 = vector.broadcast %cst_34 : f32 to vector<8x32xf32>
    %205 = arith.addf %204, %203 : vector<8x32xf32>
    %206 = arith.divf %204, %205 : vector<8x32xf32>
    %207 = vector.extract_strided_slice %194 {offsets = [0, 64], sizes = [8, 32], strides = [1, 1]} : vector<8x128xf32> to vector<8x32xf32>
    %208 = math.tanh %207 : vector<8x32xf32>
    %209 = vector.extract_strided_slice %194 {offsets = [0, 96], sizes = [8, 32], strides = [1, 1]} : vector<8x128xf32> to vector<8x32xf32>
    %210 = arith.negf %209 : vector<8x32xf32>
    %211 = math.exp %210 : vector<8x32xf32>
    %cst_35 = arith.constant 1.000000e+00 : f32
    %212 = vector.broadcast %cst_35 : f32 to vector<8x32xf32>
    %213 = arith.addf %212, %211 : vector<8x32xf32>
    %214 = arith.divf %212, %213 : vector<8x32xf32>
    %215 = arith.mulf %206, %153 : vector<8x32xf32>
    %216 = arith.mulf %200, %208 : vector<8x32xf32>
    %217 = arith.addf %215, %216 : vector<8x32xf32>
    %218 = math.tanh %217 : vector<8x32xf32>
    %219 = arith.mulf %214, %218 : vector<8x32xf32>
    %220 = vector.shape_cast %191 : vector<8x1xi1> to vector<8x1xi1>
    %221 = vector.broadcast %220 : vector<8x1xi1> to vector<8x32xi1>
    %222 = arith.select %221, %219, %150 : vector<8x32xi1>, vector<8x32xf32>
    %223 = vector.shape_cast %191 : vector<8x1xi1> to vector<8x1xi1>
    %224 = vector.broadcast %223 : vector<8x1xi1> to vector<8x32xi1>
    %225 = arith.select %224, %217, %153 : vector<8x32xi1>, vector<8x32xf32>
    %c3_i32 = arith.constant 3 : i32
    %226 = vector.broadcast %c3_i32 : i32 to vector<8x1xi32>
    %227 = arith.cmpi sgt, %0, %226 : vector<8x1xi32>
    %228 = vector.extract_strided_slice %8 {offsets = [24, 0], sizes = [8, 128], strides = [1, 1]} : vector<64x256xf32> to vector<8x128xf32>
    %cst_36 = arith.constant dense<0.000000e+00> : vector<8x128xf32>
    %229 = tpu.matmul %186, %1, %cst_36 {dimension_numbers = #tpu.dot_dimension_numbers<[1], [0], [0], [1], [0, 0, 1, 1], [], []>} : vector<8x32xf32>, vector<32x128xf32>, vector<8x128xf32> -> vector<8x128xf32>
    %230 = arith.addf %228, %229 : vector<8x128xf32>
    %231 = vector.extract_strided_slice %230 {offsets = [0, 0], sizes = [8, 32], strides = [1, 1]} : vector<8x128xf32> to vector<8x32xf32>
    %232 = arith.negf %231 : vector<8x32xf32>
    %233 = math.exp %232 : vector<8x32xf32>
    %cst_37 = arith.constant 1.000000e+00 : f32
    %234 = vector.broadcast %cst_37 : f32 to vector<8x32xf32>
    %235 = arith.addf %234, %233 : vector<8x32xf32>
    %236 = arith.divf %234, %235 : vector<8x32xf32>
    %237 = vector.extract_strided_slice %230 {offsets = [0, 32], sizes = [8, 32], strides = [1, 1]} : vector<8x128xf32> to vector<8x32xf32>
    %238 = arith.negf %237 : vector<8x32xf32>
    %239 = math.exp %238 : vector<8x32xf32>
    %cst_38 = arith.constant 1.000000e+00 : f32
    %240 = vector.broadcast %cst_38 : f32 to vector<8x32xf32>
    %241 = arith.addf %240, %239 : vector<8x32xf32>
    %242 = arith.divf %240, %241 : vector<8x32xf32>
    %243 = vector.extract_strided_slice %230 {offsets = [0, 64], sizes = [8, 32], strides = [1, 1]} : vector<8x128xf32> to vector<8x32xf32>
    %244 = math.tanh %243 : vector<8x32xf32>
    %245 = vector.extract_strided_slice %230 {offsets = [0, 96], sizes = [8, 32], strides = [1, 1]} : vector<8x128xf32> to vector<8x32xf32>
    %246 = arith.negf %245 : vector<8x32xf32>
    %247 = math.exp %246 : vector<8x32xf32>
    %cst_39 = arith.constant 1.000000e+00 : f32
    %248 = vector.broadcast %cst_39 : f32 to vector<8x32xf32>
    %249 = arith.addf %248, %247 : vector<8x32xf32>
    %250 = arith.divf %248, %249 : vector<8x32xf32>
    %251 = arith.mulf %242, %189 : vector<8x32xf32>
    %252 = arith.mulf %236, %244 : vector<8x32xf32>
    %253 = arith.addf %251, %252 : vector<8x32xf32>
    %254 = math.tanh %253 : vector<8x32xf32>
    %255 = arith.mulf %250, %254 : vector<8x32xf32>
    %256 = vector.shape_cast %227 : vector<8x1xi1> to vector<8x1xi1>
    %257 = vector.broadcast %256 : vector<8x1xi1> to vector<8x32xi1>
    %258 = arith.select %257, %255, %186 : vector<8x32xi1>, vector<8x32xf32>
    %259 = vector.shape_cast %227 : vector<8x1xi1> to vector<8x1xi1>
    %260 = vector.broadcast %259 : vector<8x1xi1> to vector<8x32xi1>
    %261 = arith.select %260, %253, %189 : vector<8x32xi1>, vector<8x32xf32>
    %c4_i32 = arith.constant 4 : i32
    %262 = vector.broadcast %c4_i32 : i32 to vector<8x1xi32>
    %263 = arith.cmpi sgt, %0, %262 : vector<8x1xi32>
    %264 = vector.extract_strided_slice %8 {offsets = [32, 128], sizes = [8, 128], strides = [1, 1]} : vector<64x256xf32> to vector<8x128xf32>
    %cst_40 = arith.constant dense<0.000000e+00> : vector<8x128xf32>
    %265 = tpu.matmul %222, %2, %cst_40 {dimension_numbers = #tpu.dot_dimension_numbers<[1], [0], [0], [1], [0, 0, 1, 1], [], []>} : vector<8x32xf32>, vector<32x128xf32>, vector<8x128xf32> -> vector<8x128xf32>
    %266 = arith.addf %264, %265 : vector<8x128xf32>
    %267 = vector.extract_strided_slice %266 {offsets = [0, 0], sizes = [8, 32], strides = [1, 1]} : vector<8x128xf32> to vector<8x32xf32>
    %268 = arith.negf %267 : vector<8x32xf32>
    %269 = math.exp %268 : vector<8x32xf32>
    %cst_41 = arith.constant 1.000000e+00 : f32
    %270 = vector.broadcast %cst_41 : f32 to vector<8x32xf32>
    %271 = arith.addf %270, %269 : vector<8x32xf32>
    %272 = arith.divf %270, %271 : vector<8x32xf32>
    %273 = vector.extract_strided_slice %266 {offsets = [0, 32], sizes = [8, 32], strides = [1, 1]} : vector<8x128xf32> to vector<8x32xf32>
    %274 = arith.negf %273 : vector<8x32xf32>
    %275 = math.exp %274 : vector<8x32xf32>
    %cst_42 = arith.constant 1.000000e+00 : f32
    %276 = vector.broadcast %cst_42 : f32 to vector<8x32xf32>
    %277 = arith.addf %276, %275 : vector<8x32xf32>
    %278 = arith.divf %276, %277 : vector<8x32xf32>
    %279 = vector.extract_strided_slice %266 {offsets = [0, 64], sizes = [8, 32], strides = [1, 1]} : vector<8x128xf32> to vector<8x32xf32>
    %280 = math.tanh %279 : vector<8x32xf32>
    %281 = vector.extract_strided_slice %266 {offsets = [0, 96], sizes = [8, 32], strides = [1, 1]} : vector<8x128xf32> to vector<8x32xf32>
    %282 = arith.negf %281 : vector<8x32xf32>
    %283 = math.exp %282 : vector<8x32xf32>
    %cst_43 = arith.constant 1.000000e+00 : f32
    %284 = vector.broadcast %cst_43 : f32 to vector<8x32xf32>
    %285 = arith.addf %284, %283 : vector<8x32xf32>
    %286 = arith.divf %284, %285 : vector<8x32xf32>
    %287 = arith.mulf %278, %225 : vector<8x32xf32>
    %288 = arith.mulf %272, %280 : vector<8x32xf32>
    %289 = arith.addf %287, %288 : vector<8x32xf32>
    %290 = math.tanh %289 : vector<8x32xf32>
    %291 = arith.mulf %286, %290 : vector<8x32xf32>
    %292 = vector.shape_cast %263 : vector<8x1xi1> to vector<8x1xi1>
    %293 = vector.broadcast %292 : vector<8x1xi1> to vector<8x32xi1>
    %294 = arith.select %293, %291, %222 : vector<8x32xi1>, vector<8x32xf32>
    %295 = vector.shape_cast %263 : vector<8x1xi1> to vector<8x1xi1>
    %296 = vector.broadcast %295 : vector<8x1xi1> to vector<8x32xi1>
    %297 = arith.select %296, %289, %225 : vector<8x32xi1>, vector<8x32xf32>
    %c4_i32_44 = arith.constant 4 : i32
    %298 = vector.broadcast %c4_i32_44 : i32 to vector<8x1xi32>
    %299 = arith.cmpi sgt, %0, %298 : vector<8x1xi32>
    %300 = vector.extract_strided_slice %8 {offsets = [32, 0], sizes = [8, 128], strides = [1, 1]} : vector<64x256xf32> to vector<8x128xf32>
    %cst_45 = arith.constant dense<0.000000e+00> : vector<8x128xf32>
    %301 = tpu.matmul %258, %1, %cst_45 {dimension_numbers = #tpu.dot_dimension_numbers<[1], [0], [0], [1], [0, 0, 1, 1], [], []>} : vector<8x32xf32>, vector<32x128xf32>, vector<8x128xf32> -> vector<8x128xf32>
    %302 = arith.addf %300, %301 : vector<8x128xf32>
    %303 = vector.extract_strided_slice %302 {offsets = [0, 0], sizes = [8, 32], strides = [1, 1]} : vector<8x128xf32> to vector<8x32xf32>
    %304 = arith.negf %303 : vector<8x32xf32>
    %305 = math.exp %304 : vector<8x32xf32>
    %cst_46 = arith.constant 1.000000e+00 : f32
    %306 = vector.broadcast %cst_46 : f32 to vector<8x32xf32>
    %307 = arith.addf %306, %305 : vector<8x32xf32>
    %308 = arith.divf %306, %307 : vector<8x32xf32>
    %309 = vector.extract_strided_slice %302 {offsets = [0, 32], sizes = [8, 32], strides = [1, 1]} : vector<8x128xf32> to vector<8x32xf32>
    %310 = arith.negf %309 : vector<8x32xf32>
    %311 = math.exp %310 : vector<8x32xf32>
    %cst_47 = arith.constant 1.000000e+00 : f32
    %312 = vector.broadcast %cst_47 : f32 to vector<8x32xf32>
    %313 = arith.addf %312, %311 : vector<8x32xf32>
    %314 = arith.divf %312, %313 : vector<8x32xf32>
    %315 = vector.extract_strided_slice %302 {offsets = [0, 64], sizes = [8, 32], strides = [1, 1]} : vector<8x128xf32> to vector<8x32xf32>
    %316 = math.tanh %315 : vector<8x32xf32>
    %317 = vector.extract_strided_slice %302 {offsets = [0, 96], sizes = [8, 32], strides = [1, 1]} : vector<8x128xf32> to vector<8x32xf32>
    %318 = arith.negf %317 : vector<8x32xf32>
    %319 = math.exp %318 : vector<8x32xf32>
    %cst_48 = arith.constant 1.000000e+00 : f32
    %320 = vector.broadcast %cst_48 : f32 to vector<8x32xf32>
    %321 = arith.addf %320, %319 : vector<8x32xf32>
    %322 = arith.divf %320, %321 : vector<8x32xf32>
    %323 = arith.mulf %314, %261 : vector<8x32xf32>
    %324 = arith.mulf %308, %316 : vector<8x32xf32>
    %325 = arith.addf %323, %324 : vector<8x32xf32>
    %326 = math.tanh %325 : vector<8x32xf32>
    %327 = arith.mulf %322, %326 : vector<8x32xf32>
    %328 = vector.shape_cast %299 : vector<8x1xi1> to vector<8x1xi1>
    %329 = vector.broadcast %328 : vector<8x1xi1> to vector<8x32xi1>
    %330 = arith.select %329, %327, %258 : vector<8x32xi1>, vector<8x32xf32>
    %331 = vector.shape_cast %299 : vector<8x1xi1> to vector<8x1xi1>
    %332 = vector.broadcast %331 : vector<8x1xi1> to vector<8x32xi1>
    %333 = arith.select %332, %325, %261 : vector<8x32xi1>, vector<8x32xf32>
    %c3_i32_49 = arith.constant 3 : i32
    %334 = vector.broadcast %c3_i32_49 : i32 to vector<8x1xi32>
    %335 = arith.cmpi sgt, %0, %334 : vector<8x1xi32>
    %336 = vector.extract_strided_slice %8 {offsets = [24, 128], sizes = [8, 128], strides = [1, 1]} : vector<64x256xf32> to vector<8x128xf32>
    %cst_50 = arith.constant dense<0.000000e+00> : vector<8x128xf32>
    %337 = tpu.matmul %294, %2, %cst_50 {dimension_numbers = #tpu.dot_dimension_numbers<[1], [0], [0], [1], [0, 0, 1, 1], [], []>} : vector<8x32xf32>, vector<32x128xf32>, vector<8x128xf32> -> vector<8x128xf32>
    %338 = arith.addf %336, %337 : vector<8x128xf32>
    %339 = vector.extract_strided_slice %338 {offsets = [0, 0], sizes = [8, 32], strides = [1, 1]} : vector<8x128xf32> to vector<8x32xf32>
    %340 = arith.negf %339 : vector<8x32xf32>
    %341 = math.exp %340 : vector<8x32xf32>
    %cst_51 = arith.constant 1.000000e+00 : f32
    %342 = vector.broadcast %cst_51 : f32 to vector<8x32xf32>
    %343 = arith.addf %342, %341 : vector<8x32xf32>
    %344 = arith.divf %342, %343 : vector<8x32xf32>
    %345 = vector.extract_strided_slice %338 {offsets = [0, 32], sizes = [8, 32], strides = [1, 1]} : vector<8x128xf32> to vector<8x32xf32>
    %346 = arith.negf %345 : vector<8x32xf32>
    %347 = math.exp %346 : vector<8x32xf32>
    %cst_52 = arith.constant 1.000000e+00 : f32
    %348 = vector.broadcast %cst_52 : f32 to vector<8x32xf32>
    %349 = arith.addf %348, %347 : vector<8x32xf32>
    %350 = arith.divf %348, %349 : vector<8x32xf32>
    %351 = vector.extract_strided_slice %338 {offsets = [0, 64], sizes = [8, 32], strides = [1, 1]} : vector<8x128xf32> to vector<8x32xf32>
    %352 = math.tanh %351 : vector<8x32xf32>
    %353 = vector.extract_strided_slice %338 {offsets = [0, 96], sizes = [8, 32], strides = [1, 1]} : vector<8x128xf32> to vector<8x32xf32>
    %354 = arith.negf %353 : vector<8x32xf32>
    %355 = math.exp %354 : vector<8x32xf32>
    %cst_53 = arith.constant 1.000000e+00 : f32
    %356 = vector.broadcast %cst_53 : f32 to vector<8x32xf32>
    %357 = arith.addf %356, %355 : vector<8x32xf32>
    %358 = arith.divf %356, %357 : vector<8x32xf32>
    %359 = arith.mulf %350, %297 : vector<8x32xf32>
    %360 = arith.mulf %344, %352 : vector<8x32xf32>
    %361 = arith.addf %359, %360 : vector<8x32xf32>
    %362 = math.tanh %361 : vector<8x32xf32>
    %363 = arith.mulf %358, %362 : vector<8x32xf32>
    %364 = vector.shape_cast %335 : vector<8x1xi1> to vector<8x1xi1>
    %365 = vector.broadcast %364 : vector<8x1xi1> to vector<8x32xi1>
    %366 = arith.select %365, %363, %294 : vector<8x32xi1>, vector<8x32xf32>
    %367 = vector.shape_cast %335 : vector<8x1xi1> to vector<8x1xi1>
    %368 = vector.broadcast %367 : vector<8x1xi1> to vector<8x32xi1>
    %369 = arith.select %368, %361, %297 : vector<8x32xi1>, vector<8x32xf32>
    %c5_i32_54 = arith.constant 5 : i32
    %370 = vector.broadcast %c5_i32_54 : i32 to vector<8x1xi32>
    %371 = arith.cmpi sgt, %0, %370 : vector<8x1xi32>
    %372 = vector.extract_strided_slice %8 {offsets = [40, 0], sizes = [8, 128], strides = [1, 1]} : vector<64x256xf32> to vector<8x128xf32>
    %cst_55 = arith.constant dense<0.000000e+00> : vector<8x128xf32>
    %373 = tpu.matmul %330, %1, %cst_55 {dimension_numbers = #tpu.dot_dimension_numbers<[1], [0], [0], [1], [0, 0, 1, 1], [], []>} : vector<8x32xf32>, vector<32x128xf32>, vector<8x128xf32> -> vector<8x128xf32>
    %374 = arith.addf %372, %373 : vector<8x128xf32>
    %375 = vector.extract_strided_slice %374 {offsets = [0, 0], sizes = [8, 32], strides = [1, 1]} : vector<8x128xf32> to vector<8x32xf32>
    %376 = arith.negf %375 : vector<8x32xf32>
    %377 = math.exp %376 : vector<8x32xf32>
    %cst_56 = arith.constant 1.000000e+00 : f32
    %378 = vector.broadcast %cst_56 : f32 to vector<8x32xf32>
    %379 = arith.addf %378, %377 : vector<8x32xf32>
    %380 = arith.divf %378, %379 : vector<8x32xf32>
    %381 = vector.extract_strided_slice %374 {offsets = [0, 32], sizes = [8, 32], strides = [1, 1]} : vector<8x128xf32> to vector<8x32xf32>
    %382 = arith.negf %381 : vector<8x32xf32>
    %383 = math.exp %382 : vector<8x32xf32>
    %cst_57 = arith.constant 1.000000e+00 : f32
    %384 = vector.broadcast %cst_57 : f32 to vector<8x32xf32>
    %385 = arith.addf %384, %383 : vector<8x32xf32>
    %386 = arith.divf %384, %385 : vector<8x32xf32>
    %387 = vector.extract_strided_slice %374 {offsets = [0, 64], sizes = [8, 32], strides = [1, 1]} : vector<8x128xf32> to vector<8x32xf32>
    %388 = math.tanh %387 : vector<8x32xf32>
    %389 = vector.extract_strided_slice %374 {offsets = [0, 96], sizes = [8, 32], strides = [1, 1]} : vector<8x128xf32> to vector<8x32xf32>
    %390 = arith.negf %389 : vector<8x32xf32>
    %391 = math.exp %390 : vector<8x32xf32>
    %cst_58 = arith.constant 1.000000e+00 : f32
    %392 = vector.broadcast %cst_58 : f32 to vector<8x32xf32>
    %393 = arith.addf %392, %391 : vector<8x32xf32>
    %394 = arith.divf %392, %393 : vector<8x32xf32>
    %395 = arith.mulf %386, %333 : vector<8x32xf32>
    %396 = arith.mulf %380, %388 : vector<8x32xf32>
    %397 = arith.addf %395, %396 : vector<8x32xf32>
    %398 = math.tanh %397 : vector<8x32xf32>
    %399 = arith.mulf %394, %398 : vector<8x32xf32>
    %400 = vector.shape_cast %371 : vector<8x1xi1> to vector<8x1xi1>
    %401 = vector.broadcast %400 : vector<8x1xi1> to vector<8x32xi1>
    %402 = arith.select %401, %399, %330 : vector<8x32xi1>, vector<8x32xf32>
    %403 = vector.shape_cast %371 : vector<8x1xi1> to vector<8x1xi1>
    %404 = vector.broadcast %403 : vector<8x1xi1> to vector<8x32xi1>
    %405 = arith.select %404, %397, %333 : vector<8x32xi1>, vector<8x32xf32>
    %c2_i32_59 = arith.constant 2 : i32
    %406 = vector.broadcast %c2_i32_59 : i32 to vector<8x1xi32>
    %407 = arith.cmpi sgt, %0, %406 : vector<8x1xi32>
    %408 = vector.extract_strided_slice %8 {offsets = [16, 128], sizes = [8, 128], strides = [1, 1]} : vector<64x256xf32> to vector<8x128xf32>
    %cst_60 = arith.constant dense<0.000000e+00> : vector<8x128xf32>
    %409 = tpu.matmul %366, %2, %cst_60 {dimension_numbers = #tpu.dot_dimension_numbers<[1], [0], [0], [1], [0, 0, 1, 1], [], []>} : vector<8x32xf32>, vector<32x128xf32>, vector<8x128xf32> -> vector<8x128xf32>
    %410 = arith.addf %408, %409 : vector<8x128xf32>
    %411 = vector.extract_strided_slice %410 {offsets = [0, 0], sizes = [8, 32], strides = [1, 1]} : vector<8x128xf32> to vector<8x32xf32>
    %412 = arith.negf %411 : vector<8x32xf32>
    %413 = math.exp %412 : vector<8x32xf32>
    %cst_61 = arith.constant 1.000000e+00 : f32
    %414 = vector.broadcast %cst_61 : f32 to vector<8x32xf32>
    %415 = arith.addf %414, %413 : vector<8x32xf32>
    %416 = arith.divf %414, %415 : vector<8x32xf32>
    %417 = vector.extract_strided_slice %410 {offsets = [0, 32], sizes = [8, 32], strides = [1, 1]} : vector<8x128xf32> to vector<8x32xf32>
    %418 = arith.negf %417 : vector<8x32xf32>
    %419 = math.exp %418 : vector<8x32xf32>
    %cst_62 = arith.constant 1.000000e+00 : f32
    %420 = vector.broadcast %cst_62 : f32 to vector<8x32xf32>
    %421 = arith.addf %420, %419 : vector<8x32xf32>
    %422 = arith.divf %420, %421 : vector<8x32xf32>
    %423 = vector.extract_strided_slice %410 {offsets = [0, 64], sizes = [8, 32], strides = [1, 1]} : vector<8x128xf32> to vector<8x32xf32>
    %424 = math.tanh %423 : vector<8x32xf32>
    %425 = vector.extract_strided_slice %410 {offsets = [0, 96], sizes = [8, 32], strides = [1, 1]} : vector<8x128xf32> to vector<8x32xf32>
    %426 = arith.negf %425 : vector<8x32xf32>
    %427 = math.exp %426 : vector<8x32xf32>
    %cst_63 = arith.constant 1.000000e+00 : f32
    %428 = vector.broadcast %cst_63 : f32 to vector<8x32xf32>
    %429 = arith.addf %428, %427 : vector<8x32xf32>
    %430 = arith.divf %428, %429 : vector<8x32xf32>
    %431 = arith.mulf %422, %369 : vector<8x32xf32>
    %432 = arith.mulf %416, %424 : vector<8x32xf32>
    %433 = arith.addf %431, %432 : vector<8x32xf32>
    %434 = math.tanh %433 : vector<8x32xf32>
    %435 = arith.mulf %430, %434 : vector<8x32xf32>
    %436 = vector.shape_cast %407 : vector<8x1xi1> to vector<8x1xi1>
    %437 = vector.broadcast %436 : vector<8x1xi1> to vector<8x32xi1>
    %438 = arith.select %437, %435, %366 : vector<8x32xi1>, vector<8x32xf32>
    %439 = vector.shape_cast %407 : vector<8x1xi1> to vector<8x1xi1>
    %440 = vector.broadcast %439 : vector<8x1xi1> to vector<8x32xi1>
    %441 = arith.select %440, %433, %369 : vector<8x32xi1>, vector<8x32xf32>
    %c6_i32_64 = arith.constant 6 : i32
    %442 = vector.broadcast %c6_i32_64 : i32 to vector<8x1xi32>
    %443 = arith.cmpi sgt, %0, %442 : vector<8x1xi32>
    %444 = vector.extract_strided_slice %8 {offsets = [48, 0], sizes = [8, 128], strides = [1, 1]} : vector<64x256xf32> to vector<8x128xf32>
    %cst_65 = arith.constant dense<0.000000e+00> : vector<8x128xf32>
    %445 = tpu.matmul %402, %1, %cst_65 {dimension_numbers = #tpu.dot_dimension_numbers<[1], [0], [0], [1], [0, 0, 1, 1], [], []>} : vector<8x32xf32>, vector<32x128xf32>, vector<8x128xf32> -> vector<8x128xf32>
    %446 = arith.addf %444, %445 : vector<8x128xf32>
    %447 = vector.extract_strided_slice %446 {offsets = [0, 0], sizes = [8, 32], strides = [1, 1]} : vector<8x128xf32> to vector<8x32xf32>
    %448 = arith.negf %447 : vector<8x32xf32>
    %449 = math.exp %448 : vector<8x32xf32>
    %cst_66 = arith.constant 1.000000e+00 : f32
    %450 = vector.broadcast %cst_66 : f32 to vector<8x32xf32>
    %451 = arith.addf %450, %449 : vector<8x32xf32>
    %452 = arith.divf %450, %451 : vector<8x32xf32>
    %453 = vector.extract_strided_slice %446 {offsets = [0, 32], sizes = [8, 32], strides = [1, 1]} : vector<8x128xf32> to vector<8x32xf32>
    %454 = arith.negf %453 : vector<8x32xf32>
    %455 = math.exp %454 : vector<8x32xf32>
    %cst_67 = arith.constant 1.000000e+00 : f32
    %456 = vector.broadcast %cst_67 : f32 to vector<8x32xf32>
    %457 = arith.addf %456, %455 : vector<8x32xf32>
    %458 = arith.divf %456, %457 : vector<8x32xf32>
    %459 = vector.extract_strided_slice %446 {offsets = [0, 64], sizes = [8, 32], strides = [1, 1]} : vector<8x128xf32> to vector<8x32xf32>
    %460 = math.tanh %459 : vector<8x32xf32>
    %461 = vector.extract_strided_slice %446 {offsets = [0, 96], sizes = [8, 32], strides = [1, 1]} : vector<8x128xf32> to vector<8x32xf32>
    %462 = arith.negf %461 : vector<8x32xf32>
    %463 = math.exp %462 : vector<8x32xf32>
    %cst_68 = arith.constant 1.000000e+00 : f32
    %464 = vector.broadcast %cst_68 : f32 to vector<8x32xf32>
    %465 = arith.addf %464, %463 : vector<8x32xf32>
    %466 = arith.divf %464, %465 : vector<8x32xf32>
    %467 = arith.mulf %458, %405 : vector<8x32xf32>
    %468 = arith.mulf %452, %460 : vector<8x32xf32>
    %469 = arith.addf %467, %468 : vector<8x32xf32>
    %470 = math.tanh %469 : vector<8x32xf32>
    %471 = arith.mulf %466, %470 : vector<8x32xf32>
    %472 = vector.shape_cast %443 : vector<8x1xi1> to vector<8x1xi1>
    %473 = vector.broadcast %472 : vector<8x1xi1> to vector<8x32xi1>
    %474 = arith.select %473, %471, %402 : vector<8x32xi1>, vector<8x32xf32>
    %475 = vector.shape_cast %443 : vector<8x1xi1> to vector<8x1xi1>
    %476 = vector.broadcast %475 : vector<8x1xi1> to vector<8x32xi1>
    %477 = arith.select %476, %469, %405 : vector<8x32xi1>, vector<8x32xf32>
    %c1_i32_69 = arith.constant 1 : i32
    %478 = vector.broadcast %c1_i32_69 : i32 to vector<8x1xi32>
    %479 = arith.cmpi sgt, %0, %478 : vector<8x1xi32>
    %480 = vector.extract_strided_slice %8 {offsets = [8, 128], sizes = [8, 128], strides = [1, 1]} : vector<64x256xf32> to vector<8x128xf32>
    %cst_70 = arith.constant dense<0.000000e+00> : vector<8x128xf32>
    %481 = tpu.matmul %438, %2, %cst_70 {dimension_numbers = #tpu.dot_dimension_numbers<[1], [0], [0], [1], [0, 0, 1, 1], [], []>} : vector<8x32xf32>, vector<32x128xf32>, vector<8x128xf32> -> vector<8x128xf32>
    %482 = arith.addf %480, %481 : vector<8x128xf32>
    %483 = vector.extract_strided_slice %482 {offsets = [0, 0], sizes = [8, 32], strides = [1, 1]} : vector<8x128xf32> to vector<8x32xf32>
    %484 = arith.negf %483 : vector<8x32xf32>
    %485 = math.exp %484 : vector<8x32xf32>
    %cst_71 = arith.constant 1.000000e+00 : f32
    %486 = vector.broadcast %cst_71 : f32 to vector<8x32xf32>
    %487 = arith.addf %486, %485 : vector<8x32xf32>
    %488 = arith.divf %486, %487 : vector<8x32xf32>
    %489 = vector.extract_strided_slice %482 {offsets = [0, 32], sizes = [8, 32], strides = [1, 1]} : vector<8x128xf32> to vector<8x32xf32>
    %490 = arith.negf %489 : vector<8x32xf32>
    %491 = math.exp %490 : vector<8x32xf32>
    %cst_72 = arith.constant 1.000000e+00 : f32
    %492 = vector.broadcast %cst_72 : f32 to vector<8x32xf32>
    %493 = arith.addf %492, %491 : vector<8x32xf32>
    %494 = arith.divf %492, %493 : vector<8x32xf32>
    %495 = vector.extract_strided_slice %482 {offsets = [0, 64], sizes = [8, 32], strides = [1, 1]} : vector<8x128xf32> to vector<8x32xf32>
    %496 = math.tanh %495 : vector<8x32xf32>
    %497 = vector.extract_strided_slice %482 {offsets = [0, 96], sizes = [8, 32], strides = [1, 1]} : vector<8x128xf32> to vector<8x32xf32>
    %498 = arith.negf %497 : vector<8x32xf32>
    %499 = math.exp %498 : vector<8x32xf32>
    %cst_73 = arith.constant 1.000000e+00 : f32
    %500 = vector.broadcast %cst_73 : f32 to vector<8x32xf32>
    %501 = arith.addf %500, %499 : vector<8x32xf32>
    %502 = arith.divf %500, %501 : vector<8x32xf32>
    %503 = arith.mulf %494, %441 : vector<8x32xf32>
    %504 = arith.mulf %488, %496 : vector<8x32xf32>
    %505 = arith.addf %503, %504 : vector<8x32xf32>
    %506 = math.tanh %505 : vector<8x32xf32>
    %507 = arith.mulf %502, %506 : vector<8x32xf32>
    %508 = vector.shape_cast %479 : vector<8x1xi1> to vector<8x1xi1>
    %509 = vector.broadcast %508 : vector<8x1xi1> to vector<8x32xi1>
    %510 = arith.select %509, %507, %438 : vector<8x32xi1>, vector<8x32xf32>
    %511 = vector.shape_cast %479 : vector<8x1xi1> to vector<8x1xi1>
    %512 = vector.broadcast %511 : vector<8x1xi1> to vector<8x32xi1>
    %513 = arith.select %512, %505, %441 : vector<8x32xi1>, vector<8x32xf32>
    %c7_i32_74 = arith.constant 7 : i32
    %514 = vector.broadcast %c7_i32_74 : i32 to vector<8x1xi32>
    %515 = arith.cmpi sgt, %0, %514 : vector<8x1xi32>
    %516 = vector.extract_strided_slice %8 {offsets = [56, 0], sizes = [8, 128], strides = [1, 1]} : vector<64x256xf32> to vector<8x128xf32>
    %cst_75 = arith.constant dense<0.000000e+00> : vector<8x128xf32>
    %517 = tpu.matmul %474, %1, %cst_75 {dimension_numbers = #tpu.dot_dimension_numbers<[1], [0], [0], [1], [0, 0, 1, 1], [], []>} : vector<8x32xf32>, vector<32x128xf32>, vector<8x128xf32> -> vector<8x128xf32>
    %518 = arith.addf %516, %517 : vector<8x128xf32>
    %519 = vector.extract_strided_slice %518 {offsets = [0, 0], sizes = [8, 32], strides = [1, 1]} : vector<8x128xf32> to vector<8x32xf32>
    %520 = arith.negf %519 : vector<8x32xf32>
    %521 = math.exp %520 : vector<8x32xf32>
    %cst_76 = arith.constant 1.000000e+00 : f32
    %522 = vector.broadcast %cst_76 : f32 to vector<8x32xf32>
    %523 = arith.addf %522, %521 : vector<8x32xf32>
    %524 = arith.divf %522, %523 : vector<8x32xf32>
    %525 = vector.extract_strided_slice %518 {offsets = [0, 32], sizes = [8, 32], strides = [1, 1]} : vector<8x128xf32> to vector<8x32xf32>
    %526 = arith.negf %525 : vector<8x32xf32>
    %527 = math.exp %526 : vector<8x32xf32>
    %cst_77 = arith.constant 1.000000e+00 : f32
    %528 = vector.broadcast %cst_77 : f32 to vector<8x32xf32>
    %529 = arith.addf %528, %527 : vector<8x32xf32>
    %530 = arith.divf %528, %529 : vector<8x32xf32>
    %531 = vector.extract_strided_slice %518 {offsets = [0, 64], sizes = [8, 32], strides = [1, 1]} : vector<8x128xf32> to vector<8x32xf32>
    %532 = math.tanh %531 : vector<8x32xf32>
    %533 = vector.extract_strided_slice %518 {offsets = [0, 96], sizes = [8, 32], strides = [1, 1]} : vector<8x128xf32> to vector<8x32xf32>
    %534 = arith.negf %533 : vector<8x32xf32>
    %535 = math.exp %534 : vector<8x32xf32>
    %cst_78 = arith.constant 1.000000e+00 : f32
    %536 = vector.broadcast %cst_78 : f32 to vector<8x32xf32>
    %537 = arith.addf %536, %535 : vector<8x32xf32>
    %538 = arith.divf %536, %537 : vector<8x32xf32>
    %539 = arith.mulf %530, %477 : vector<8x32xf32>
    %540 = arith.mulf %524, %532 : vector<8x32xf32>
    %541 = arith.addf %539, %540 : vector<8x32xf32>
    %542 = math.tanh %541 : vector<8x32xf32>
    %543 = arith.mulf %538, %542 : vector<8x32xf32>
    %544 = vector.shape_cast %515 : vector<8x1xi1> to vector<8x1xi1>
    %545 = vector.broadcast %544 : vector<8x1xi1> to vector<8x32xi1>
    %546 = arith.select %545, %543, %474 : vector<8x32xi1>, vector<8x32xf32>
    %547 = vector.shape_cast %515 : vector<8x1xi1> to vector<8x1xi1>
    %548 = vector.broadcast %547 : vector<8x1xi1> to vector<8x32xi1>
    %549 = arith.select %548, %541, %477 : vector<8x32xi1>, vector<8x32xf32>
    %c0_i32_79 = arith.constant 0 : i32
    %550 = vector.broadcast %c0_i32_79 : i32 to vector<8x1xi32>
    %551 = arith.cmpi sgt, %0, %550 : vector<8x1xi32>
    %552 = vector.extract_strided_slice %8 {offsets = [0, 128], sizes = [8, 128], strides = [1, 1]} : vector<64x256xf32> to vector<8x128xf32>
    %cst_80 = arith.constant dense<0.000000e+00> : vector<8x128xf32>
    %553 = tpu.matmul %510, %2, %cst_80 {dimension_numbers = #tpu.dot_dimension_numbers<[1], [0], [0], [1], [0, 0, 1, 1], [], []>} : vector<8x32xf32>, vector<32x128xf32>, vector<8x128xf32> -> vector<8x128xf32>
    %554 = arith.addf %552, %553 : vector<8x128xf32>
    %555 = vector.extract_strided_slice %554 {offsets = [0, 0], sizes = [8, 32], strides = [1, 1]} : vector<8x128xf32> to vector<8x32xf32>
    %556 = arith.negf %555 : vector<8x32xf32>
    %557 = math.exp %556 : vector<8x32xf32>
    %cst_81 = arith.constant 1.000000e+00 : f32
    %558 = vector.broadcast %cst_81 : f32 to vector<8x32xf32>
    %559 = arith.addf %558, %557 : vector<8x32xf32>
    %560 = arith.divf %558, %559 : vector<8x32xf32>
    %561 = vector.extract_strided_slice %554 {offsets = [0, 32], sizes = [8, 32], strides = [1, 1]} : vector<8x128xf32> to vector<8x32xf32>
    %562 = arith.negf %561 : vector<8x32xf32>
    %563 = math.exp %562 : vector<8x32xf32>
    %cst_82 = arith.constant 1.000000e+00 : f32
    %564 = vector.broadcast %cst_82 : f32 to vector<8x32xf32>
    %565 = arith.addf %564, %563 : vector<8x32xf32>
    %566 = arith.divf %564, %565 : vector<8x32xf32>
    %567 = vector.extract_strided_slice %554 {offsets = [0, 64], sizes = [8, 32], strides = [1, 1]} : vector<8x128xf32> to vector<8x32xf32>
    %568 = math.tanh %567 : vector<8x32xf32>
    %569 = vector.extract_strided_slice %554 {offsets = [0, 96], sizes = [8, 32], strides = [1, 1]} : vector<8x128xf32> to vector<8x32xf32>
    %570 = arith.negf %569 : vector<8x32xf32>
    %571 = math.exp %570 : vector<8x32xf32>
    %cst_83 = arith.constant 1.000000e+00 : f32
    %572 = vector.broadcast %cst_83 : f32 to vector<8x32xf32>
    %573 = arith.addf %572, %571 : vector<8x32xf32>
    %574 = arith.divf %572, %573 : vector<8x32xf32>
    %575 = arith.mulf %566, %513 : vector<8x32xf32>
    %576 = arith.mulf %560, %568 : vector<8x32xf32>
    %577 = arith.addf %575, %576 : vector<8x32xf32>
    %578 = math.tanh %577 : vector<8x32xf32>
    %579 = arith.mulf %574, %578 : vector<8x32xf32>
    %580 = vector.shape_cast %551 : vector<8x1xi1> to vector<8x1xi1>
    %581 = vector.broadcast %580 : vector<8x1xi1> to vector<8x32xi1>
    %582 = arith.select %581, %579, %510 : vector<8x32xi1>, vector<8x32xf32>
    %583 = tpu.concatenate %546, %474, %402, %330, %258, %186, %114, %42 in 0 : vector<8x32xf32>, vector<8x32xf32>, vector<8x32xf32>, vector<8x32xf32>, vector<8x32xf32>, vector<8x32xf32>, vector<8x32xf32>, vector<8x32xf32> -> vector<64x32xf32>
    %584 = tpu.concatenate %78, %150, %222, %294, %366, %438, %510, %582 in 0 : vector<8x32xf32>, vector<8x32xf32>, vector<8x32xf32>, vector<8x32xf32>, vector<8x32xf32>, vector<8x32xf32>, vector<8x32xf32>, vector<8x32xf32> -> vector<64x32xf32>
    %c0_84 = arith.constant 0 : index
    %c0_85 = arith.constant 0 : index
    %585 = vector.load %arg6[%c0_84, %c0_85] : memref<32x128xf32, #tpu.memory_space<vmem>>, vector<32x128xf32>
    %cst_86 = arith.constant dense<0.000000e+00> : vector<64x128xf32>
    %586 = tpu.matmul %583, %585, %cst_86 {dimension_numbers = #tpu.dot_dimension_numbers<[1], [0], [0], [1], [0, 0, 1, 1], [], []>} : vector<64x32xf32>, vector<32x128xf32>, vector<64x128xf32> -> vector<64x128xf32>
    %c0_87 = arith.constant 0 : index
    %c0_88 = arith.constant 0 : index
    %587 = vector.load %arg7[%c0_87, %c0_88] : memref<32x128xf32, #tpu.memory_space<vmem>>, vector<32x128xf32>
    %cst_89 = arith.constant dense<0.000000e+00> : vector<64x128xf32>
    %588 = tpu.matmul %584, %587, %cst_89 {dimension_numbers = #tpu.dot_dimension_numbers<[1], [0], [0], [1], [0, 0, 1, 1], [], []>} : vector<64x32xf32>, vector<32x128xf32>, vector<64x128xf32> -> vector<64x128xf32>
    %589 = arith.addf %586, %588 : vector<64x128xf32>
    %c0_90 = arith.constant 0 : index
    %c0_91 = arith.constant 0 : index
    %590 = vector.load %arg9[%c0_90, %c0_91] : memref<1x128xf32, #tpu.memory_space<vmem>>, vector<1x128xf32>
    %591 = vector.broadcast %590 : vector<1x128xf32> to vector<64x128xf32>
    %592 = arith.addf %589, %591 : vector<64x128xf32>
    %c0_92 = arith.constant 0 : index
    %c0_93 = arith.constant 0 : index
    %593 = vector.load %arg8[%c0_92, %c0_93] : memref<32x128xf32, #tpu.memory_space<vmem>>, vector<32x128xf32>
    %c7_i32_94 = arith.constant 7 : i32
    %594 = vector.broadcast %c7_i32_94 : i32 to vector<8x1xi32>
    %595 = arith.cmpi sgt, %0, %594 : vector<8x1xi32>
    %596 = vector.extract_strided_slice %592 {offsets = [0, 0], sizes = [8, 128], strides = [1, 1]} : vector<64x128xf32> to vector<8x128xf32>
    %cst_95 = arith.constant dense<0.000000e+00> : vector<8x128xf32>
    %597 = tpu.matmul %9, %593, %cst_95 {dimension_numbers = #tpu.dot_dimension_numbers<[1], [0], [0], [1], [0, 0, 1, 1], [], []>} : vector<8x32xf32>, vector<32x128xf32>, vector<8x128xf32> -> vector<8x128xf32>
    %598 = arith.addf %596, %597 : vector<8x128xf32>
    %599 = vector.extract_strided_slice %598 {offsets = [0, 0], sizes = [8, 32], strides = [1, 1]} : vector<8x128xf32> to vector<8x32xf32>
    %600 = arith.negf %599 : vector<8x32xf32>
    %601 = math.exp %600 : vector<8x32xf32>
    %cst_96 = arith.constant 1.000000e+00 : f32
    %602 = vector.broadcast %cst_96 : f32 to vector<8x32xf32>
    %603 = arith.addf %602, %601 : vector<8x32xf32>
    %604 = arith.divf %602, %603 : vector<8x32xf32>
    %605 = vector.extract_strided_slice %598 {offsets = [0, 32], sizes = [8, 32], strides = [1, 1]} : vector<8x128xf32> to vector<8x32xf32>
    %606 = arith.negf %605 : vector<8x32xf32>
    %607 = math.exp %606 : vector<8x32xf32>
    %cst_97 = arith.constant 1.000000e+00 : f32
    %608 = vector.broadcast %cst_97 : f32 to vector<8x32xf32>
    %609 = arith.addf %608, %607 : vector<8x32xf32>
    %610 = arith.divf %608, %609 : vector<8x32xf32>
    %611 = vector.extract_strided_slice %598 {offsets = [0, 64], sizes = [8, 32], strides = [1, 1]} : vector<8x128xf32> to vector<8x32xf32>
    %612 = math.tanh %611 : vector<8x32xf32>
    %613 = vector.extract_strided_slice %598 {offsets = [0, 96], sizes = [8, 32], strides = [1, 1]} : vector<8x128xf32> to vector<8x32xf32>
    %614 = arith.negf %613 : vector<8x32xf32>
    %615 = math.exp %614 : vector<8x32xf32>
    %cst_98 = arith.constant 1.000000e+00 : f32
    %616 = vector.broadcast %cst_98 : f32 to vector<8x32xf32>
    %617 = arith.addf %616, %615 : vector<8x32xf32>
    %618 = arith.divf %616, %617 : vector<8x32xf32>
    %619 = arith.mulf %610, %9 : vector<8x32xf32>
    %620 = arith.mulf %604, %612 : vector<8x32xf32>
    %621 = arith.addf %619, %620 : vector<8x32xf32>
    %622 = math.tanh %621 : vector<8x32xf32>
    %623 = arith.mulf %618, %622 : vector<8x32xf32>
    %624 = vector.shape_cast %595 : vector<8x1xi1> to vector<8x1xi1>
    %625 = vector.broadcast %624 : vector<8x1xi1> to vector<8x32xi1>
    %626 = arith.select %625, %623, %9 : vector<8x32xi1>, vector<8x32xf32>
    %627 = vector.shape_cast %595 : vector<8x1xi1> to vector<8x1xi1>
    %628 = vector.broadcast %627 : vector<8x1xi1> to vector<8x32xi1>
    %629 = arith.select %628, %621, %9 : vector<8x32xi1>, vector<8x32xf32>
    %c6_i32_99 = arith.constant 6 : i32
    %630 = vector.broadcast %c6_i32_99 : i32 to vector<8x1xi32>
    %631 = arith.cmpi sgt, %0, %630 : vector<8x1xi32>
    %632 = vector.extract_strided_slice %592 {offsets = [8, 0], sizes = [8, 128], strides = [1, 1]} : vector<64x128xf32> to vector<8x128xf32>
    %cst_100 = arith.constant dense<0.000000e+00> : vector<8x128xf32>
    %633 = tpu.matmul %626, %593, %cst_100 {dimension_numbers = #tpu.dot_dimension_numbers<[1], [0], [0], [1], [0, 0, 1, 1], [], []>} : vector<8x32xf32>, vector<32x128xf32>, vector<8x128xf32> -> vector<8x128xf32>
    %634 = arith.addf %632, %633 : vector<8x128xf32>
    %635 = vector.extract_strided_slice %634 {offsets = [0, 0], sizes = [8, 32], strides = [1, 1]} : vector<8x128xf32> to vector<8x32xf32>
    %636 = arith.negf %635 : vector<8x32xf32>
    %637 = math.exp %636 : vector<8x32xf32>
    %cst_101 = arith.constant 1.000000e+00 : f32
    %638 = vector.broadcast %cst_101 : f32 to vector<8x32xf32>
    %639 = arith.addf %638, %637 : vector<8x32xf32>
    %640 = arith.divf %638, %639 : vector<8x32xf32>
    %641 = vector.extract_strided_slice %634 {offsets = [0, 32], sizes = [8, 32], strides = [1, 1]} : vector<8x128xf32> to vector<8x32xf32>
    %642 = arith.negf %641 : vector<8x32xf32>
    %643 = math.exp %642 : vector<8x32xf32>
    %cst_102 = arith.constant 1.000000e+00 : f32
    %644 = vector.broadcast %cst_102 : f32 to vector<8x32xf32>
    %645 = arith.addf %644, %643 : vector<8x32xf32>
    %646 = arith.divf %644, %645 : vector<8x32xf32>
    %647 = vector.extract_strided_slice %634 {offsets = [0, 64], sizes = [8, 32], strides = [1, 1]} : vector<8x128xf32> to vector<8x32xf32>
    %648 = math.tanh %647 : vector<8x32xf32>
    %649 = vector.extract_strided_slice %634 {offsets = [0, 96], sizes = [8, 32], strides = [1, 1]} : vector<8x128xf32> to vector<8x32xf32>
    %650 = arith.negf %649 : vector<8x32xf32>
    %651 = math.exp %650 : vector<8x32xf32>
    %cst_103 = arith.constant 1.000000e+00 : f32
    %652 = vector.broadcast %cst_103 : f32 to vector<8x32xf32>
    %653 = arith.addf %652, %651 : vector<8x32xf32>
    %654 = arith.divf %652, %653 : vector<8x32xf32>
    %655 = arith.mulf %646, %629 : vector<8x32xf32>
    %656 = arith.mulf %640, %648 : vector<8x32xf32>
    %657 = arith.addf %655, %656 : vector<8x32xf32>
    %658 = math.tanh %657 : vector<8x32xf32>
    %659 = arith.mulf %654, %658 : vector<8x32xf32>
    %660 = vector.shape_cast %631 : vector<8x1xi1> to vector<8x1xi1>
    %661 = vector.broadcast %660 : vector<8x1xi1> to vector<8x32xi1>
    %662 = arith.select %661, %659, %626 : vector<8x32xi1>, vector<8x32xf32>
    %663 = vector.shape_cast %631 : vector<8x1xi1> to vector<8x1xi1>
    %664 = vector.broadcast %663 : vector<8x1xi1> to vector<8x32xi1>
    %665 = arith.select %664, %657, %629 : vector<8x32xi1>, vector<8x32xf32>
    %c5_i32_104 = arith.constant 5 : i32
    %666 = vector.broadcast %c5_i32_104 : i32 to vector<8x1xi32>
    %667 = arith.cmpi sgt, %0, %666 : vector<8x1xi32>
    %668 = vector.extract_strided_slice %592 {offsets = [16, 0], sizes = [8, 128], strides = [1, 1]} : vector<64x128xf32> to vector<8x128xf32>
    %cst_105 = arith.constant dense<0.000000e+00> : vector<8x128xf32>
    %669 = tpu.matmul %662, %593, %cst_105 {dimension_numbers = #tpu.dot_dimension_numbers<[1], [0], [0], [1], [0, 0, 1, 1], [], []>} : vector<8x32xf32>, vector<32x128xf32>, vector<8x128xf32> -> vector<8x128xf32>
    %670 = arith.addf %668, %669 : vector<8x128xf32>
    %671 = vector.extract_strided_slice %670 {offsets = [0, 0], sizes = [8, 32], strides = [1, 1]} : vector<8x128xf32> to vector<8x32xf32>
    %672 = arith.negf %671 : vector<8x32xf32>
    %673 = math.exp %672 : vector<8x32xf32>
    %cst_106 = arith.constant 1.000000e+00 : f32
    %674 = vector.broadcast %cst_106 : f32 to vector<8x32xf32>
    %675 = arith.addf %674, %673 : vector<8x32xf32>
    %676 = arith.divf %674, %675 : vector<8x32xf32>
    %677 = vector.extract_strided_slice %670 {offsets = [0, 32], sizes = [8, 32], strides = [1, 1]} : vector<8x128xf32> to vector<8x32xf32>
    %678 = arith.negf %677 : vector<8x32xf32>
    %679 = math.exp %678 : vector<8x32xf32>
    %cst_107 = arith.constant 1.000000e+00 : f32
    %680 = vector.broadcast %cst_107 : f32 to vector<8x32xf32>
    %681 = arith.addf %680, %679 : vector<8x32xf32>
    %682 = arith.divf %680, %681 : vector<8x32xf32>
    %683 = vector.extract_strided_slice %670 {offsets = [0, 64], sizes = [8, 32], strides = [1, 1]} : vector<8x128xf32> to vector<8x32xf32>
    %684 = math.tanh %683 : vector<8x32xf32>
    %685 = vector.extract_strided_slice %670 {offsets = [0, 96], sizes = [8, 32], strides = [1, 1]} : vector<8x128xf32> to vector<8x32xf32>
    %686 = arith.negf %685 : vector<8x32xf32>
    %687 = math.exp %686 : vector<8x32xf32>
    %cst_108 = arith.constant 1.000000e+00 : f32
    %688 = vector.broadcast %cst_108 : f32 to vector<8x32xf32>
    %689 = arith.addf %688, %687 : vector<8x32xf32>
    %690 = arith.divf %688, %689 : vector<8x32xf32>
    %691 = arith.mulf %682, %665 : vector<8x32xf32>
    %692 = arith.mulf %676, %684 : vector<8x32xf32>
    %693 = arith.addf %691, %692 : vector<8x32xf32>
    %694 = math.tanh %693 : vector<8x32xf32>
    %695 = arith.mulf %690, %694 : vector<8x32xf32>
    %696 = vector.shape_cast %667 : vector<8x1xi1> to vector<8x1xi1>
    %697 = vector.broadcast %696 : vector<8x1xi1> to vector<8x32xi1>
    %698 = arith.select %697, %695, %662 : vector<8x32xi1>, vector<8x32xf32>
    %699 = vector.shape_cast %667 : vector<8x1xi1> to vector<8x1xi1>
    %700 = vector.broadcast %699 : vector<8x1xi1> to vector<8x32xi1>
    %701 = arith.select %700, %693, %665 : vector<8x32xi1>, vector<8x32xf32>
    %c4_i32_109 = arith.constant 4 : i32
    %702 = vector.broadcast %c4_i32_109 : i32 to vector<8x1xi32>
    %703 = arith.cmpi sgt, %0, %702 : vector<8x1xi32>
    %704 = vector.extract_strided_slice %592 {offsets = [24, 0], sizes = [8, 128], strides = [1, 1]} : vector<64x128xf32> to vector<8x128xf32>
    %cst_110 = arith.constant dense<0.000000e+00> : vector<8x128xf32>
    %705 = tpu.matmul %698, %593, %cst_110 {dimension_numbers = #tpu.dot_dimension_numbers<[1], [0], [0], [1], [0, 0, 1, 1], [], []>} : vector<8x32xf32>, vector<32x128xf32>, vector<8x128xf32> -> vector<8x128xf32>
    %706 = arith.addf %704, %705 : vector<8x128xf32>
    %707 = vector.extract_strided_slice %706 {offsets = [0, 0], sizes = [8, 32], strides = [1, 1]} : vector<8x128xf32> to vector<8x32xf32>
    %708 = arith.negf %707 : vector<8x32xf32>
    %709 = math.exp %708 : vector<8x32xf32>
    %cst_111 = arith.constant 1.000000e+00 : f32
    %710 = vector.broadcast %cst_111 : f32 to vector<8x32xf32>
    %711 = arith.addf %710, %709 : vector<8x32xf32>
    %712 = arith.divf %710, %711 : vector<8x32xf32>
    %713 = vector.extract_strided_slice %706 {offsets = [0, 32], sizes = [8, 32], strides = [1, 1]} : vector<8x128xf32> to vector<8x32xf32>
    %714 = arith.negf %713 : vector<8x32xf32>
    %715 = math.exp %714 : vector<8x32xf32>
    %cst_112 = arith.constant 1.000000e+00 : f32
    %716 = vector.broadcast %cst_112 : f32 to vector<8x32xf32>
    %717 = arith.addf %716, %715 : vector<8x32xf32>
    %718 = arith.divf %716, %717 : vector<8x32xf32>
    %719 = vector.extract_strided_slice %706 {offsets = [0, 64], sizes = [8, 32], strides = [1, 1]} : vector<8x128xf32> to vector<8x32xf32>
    %720 = math.tanh %719 : vector<8x32xf32>
    %721 = vector.extract_strided_slice %706 {offsets = [0, 96], sizes = [8, 32], strides = [1, 1]} : vector<8x128xf32> to vector<8x32xf32>
    %722 = arith.negf %721 : vector<8x32xf32>
    %723 = math.exp %722 : vector<8x32xf32>
    %cst_113 = arith.constant 1.000000e+00 : f32
    %724 = vector.broadcast %cst_113 : f32 to vector<8x32xf32>
    %725 = arith.addf %724, %723 : vector<8x32xf32>
    %726 = arith.divf %724, %725 : vector<8x32xf32>
    %727 = arith.mulf %718, %701 : vector<8x32xf32>
    %728 = arith.mulf %712, %720 : vector<8x32xf32>
    %729 = arith.addf %727, %728 : vector<8x32xf32>
    %730 = math.tanh %729 : vector<8x32xf32>
    %731 = arith.mulf %726, %730 : vector<8x32xf32>
    %732 = vector.shape_cast %703 : vector<8x1xi1> to vector<8x1xi1>
    %733 = vector.broadcast %732 : vector<8x1xi1> to vector<8x32xi1>
    %734 = arith.select %733, %731, %698 : vector<8x32xi1>, vector<8x32xf32>
    %735 = vector.shape_cast %703 : vector<8x1xi1> to vector<8x1xi1>
    %736 = vector.broadcast %735 : vector<8x1xi1> to vector<8x32xi1>
    %737 = arith.select %736, %729, %701 : vector<8x32xi1>, vector<8x32xf32>
    %c3_i32_114 = arith.constant 3 : i32
    %738 = vector.broadcast %c3_i32_114 : i32 to vector<8x1xi32>
    %739 = arith.cmpi sgt, %0, %738 : vector<8x1xi32>
    %740 = vector.extract_strided_slice %592 {offsets = [32, 0], sizes = [8, 128], strides = [1, 1]} : vector<64x128xf32> to vector<8x128xf32>
    %cst_115 = arith.constant dense<0.000000e+00> : vector<8x128xf32>
    %741 = tpu.matmul %734, %593, %cst_115 {dimension_numbers = #tpu.dot_dimension_numbers<[1], [0], [0], [1], [0, 0, 1, 1], [], []>} : vector<8x32xf32>, vector<32x128xf32>, vector<8x128xf32> -> vector<8x128xf32>
    %742 = arith.addf %740, %741 : vector<8x128xf32>
    %743 = vector.extract_strided_slice %742 {offsets = [0, 0], sizes = [8, 32], strides = [1, 1]} : vector<8x128xf32> to vector<8x32xf32>
    %744 = arith.negf %743 : vector<8x32xf32>
    %745 = math.exp %744 : vector<8x32xf32>
    %cst_116 = arith.constant 1.000000e+00 : f32
    %746 = vector.broadcast %cst_116 : f32 to vector<8x32xf32>
    %747 = arith.addf %746, %745 : vector<8x32xf32>
    %748 = arith.divf %746, %747 : vector<8x32xf32>
    %749 = vector.extract_strided_slice %742 {offsets = [0, 32], sizes = [8, 32], strides = [1, 1]} : vector<8x128xf32> to vector<8x32xf32>
    %750 = arith.negf %749 : vector<8x32xf32>
    %751 = math.exp %750 : vector<8x32xf32>
    %cst_117 = arith.constant 1.000000e+00 : f32
    %752 = vector.broadcast %cst_117 : f32 to vector<8x32xf32>
    %753 = arith.addf %752, %751 : vector<8x32xf32>
    %754 = arith.divf %752, %753 : vector<8x32xf32>
    %755 = vector.extract_strided_slice %742 {offsets = [0, 64], sizes = [8, 32], strides = [1, 1]} : vector<8x128xf32> to vector<8x32xf32>
    %756 = math.tanh %755 : vector<8x32xf32>
    %757 = vector.extract_strided_slice %742 {offsets = [0, 96], sizes = [8, 32], strides = [1, 1]} : vector<8x128xf32> to vector<8x32xf32>
    %758 = arith.negf %757 : vector<8x32xf32>
    %759 = math.exp %758 : vector<8x32xf32>
    %cst_118 = arith.constant 1.000000e+00 : f32
    %760 = vector.broadcast %cst_118 : f32 to vector<8x32xf32>
    %761 = arith.addf %760, %759 : vector<8x32xf32>
    %762 = arith.divf %760, %761 : vector<8x32xf32>
    %763 = arith.mulf %754, %737 : vector<8x32xf32>
    %764 = arith.mulf %748, %756 : vector<8x32xf32>
    %765 = arith.addf %763, %764 : vector<8x32xf32>
    %766 = math.tanh %765 : vector<8x32xf32>
    %767 = arith.mulf %762, %766 : vector<8x32xf32>
    %768 = vector.shape_cast %739 : vector<8x1xi1> to vector<8x1xi1>
    %769 = vector.broadcast %768 : vector<8x1xi1> to vector<8x32xi1>
    %770 = arith.select %769, %767, %734 : vector<8x32xi1>, vector<8x32xf32>
    %771 = vector.shape_cast %739 : vector<8x1xi1> to vector<8x1xi1>
    %772 = vector.broadcast %771 : vector<8x1xi1> to vector<8x32xi1>
    %773 = arith.select %772, %765, %737 : vector<8x32xi1>, vector<8x32xf32>
    %c2_i32_119 = arith.constant 2 : i32
    %774 = vector.broadcast %c2_i32_119 : i32 to vector<8x1xi32>
    %775 = arith.cmpi sgt, %0, %774 : vector<8x1xi32>
    %776 = vector.extract_strided_slice %592 {offsets = [40, 0], sizes = [8, 128], strides = [1, 1]} : vector<64x128xf32> to vector<8x128xf32>
    %cst_120 = arith.constant dense<0.000000e+00> : vector<8x128xf32>
    %777 = tpu.matmul %770, %593, %cst_120 {dimension_numbers = #tpu.dot_dimension_numbers<[1], [0], [0], [1], [0, 0, 1, 1], [], []>} : vector<8x32xf32>, vector<32x128xf32>, vector<8x128xf32> -> vector<8x128xf32>
    %778 = arith.addf %776, %777 : vector<8x128xf32>
    %779 = vector.extract_strided_slice %778 {offsets = [0, 0], sizes = [8, 32], strides = [1, 1]} : vector<8x128xf32> to vector<8x32xf32>
    %780 = arith.negf %779 : vector<8x32xf32>
    %781 = math.exp %780 : vector<8x32xf32>
    %cst_121 = arith.constant 1.000000e+00 : f32
    %782 = vector.broadcast %cst_121 : f32 to vector<8x32xf32>
    %783 = arith.addf %782, %781 : vector<8x32xf32>
    %784 = arith.divf %782, %783 : vector<8x32xf32>
    %785 = vector.extract_strided_slice %778 {offsets = [0, 32], sizes = [8, 32], strides = [1, 1]} : vector<8x128xf32> to vector<8x32xf32>
    %786 = arith.negf %785 : vector<8x32xf32>
    %787 = math.exp %786 : vector<8x32xf32>
    %cst_122 = arith.constant 1.000000e+00 : f32
    %788 = vector.broadcast %cst_122 : f32 to vector<8x32xf32>
    %789 = arith.addf %788, %787 : vector<8x32xf32>
    %790 = arith.divf %788, %789 : vector<8x32xf32>
    %791 = vector.extract_strided_slice %778 {offsets = [0, 64], sizes = [8, 32], strides = [1, 1]} : vector<8x128xf32> to vector<8x32xf32>
    %792 = math.tanh %791 : vector<8x32xf32>
    %793 = vector.extract_strided_slice %778 {offsets = [0, 96], sizes = [8, 32], strides = [1, 1]} : vector<8x128xf32> to vector<8x32xf32>
    %794 = arith.negf %793 : vector<8x32xf32>
    %795 = math.exp %794 : vector<8x32xf32>
    %cst_123 = arith.constant 1.000000e+00 : f32
    %796 = vector.broadcast %cst_123 : f32 to vector<8x32xf32>
    %797 = arith.addf %796, %795 : vector<8x32xf32>
    %798 = arith.divf %796, %797 : vector<8x32xf32>
    %799 = arith.mulf %790, %773 : vector<8x32xf32>
    %800 = arith.mulf %784, %792 : vector<8x32xf32>
    %801 = arith.addf %799, %800 : vector<8x32xf32>
    %802 = math.tanh %801 : vector<8x32xf32>
    %803 = arith.mulf %798, %802 : vector<8x32xf32>
    %804 = vector.shape_cast %775 : vector<8x1xi1> to vector<8x1xi1>
    %805 = vector.broadcast %804 : vector<8x1xi1> to vector<8x32xi1>
    %806 = arith.select %805, %803, %770 : vector<8x32xi1>, vector<8x32xf32>
    %807 = vector.shape_cast %775 : vector<8x1xi1> to vector<8x1xi1>
    %808 = vector.broadcast %807 : vector<8x1xi1> to vector<8x32xi1>
    %809 = arith.select %808, %801, %773 : vector<8x32xi1>, vector<8x32xf32>
    %c1_i32_124 = arith.constant 1 : i32
    %810 = vector.broadcast %c1_i32_124 : i32 to vector<8x1xi32>
    %811 = arith.cmpi sgt, %0, %810 : vector<8x1xi32>
    %812 = vector.extract_strided_slice %592 {offsets = [48, 0], sizes = [8, 128], strides = [1, 1]} : vector<64x128xf32> to vector<8x128xf32>
    %cst_125 = arith.constant dense<0.000000e+00> : vector<8x128xf32>
    %813 = tpu.matmul %806, %593, %cst_125 {dimension_numbers = #tpu.dot_dimension_numbers<[1], [0], [0], [1], [0, 0, 1, 1], [], []>} : vector<8x32xf32>, vector<32x128xf32>, vector<8x128xf32> -> vector<8x128xf32>
    %814 = arith.addf %812, %813 : vector<8x128xf32>
    %815 = vector.extract_strided_slice %814 {offsets = [0, 0], sizes = [8, 32], strides = [1, 1]} : vector<8x128xf32> to vector<8x32xf32>
    %816 = arith.negf %815 : vector<8x32xf32>
    %817 = math.exp %816 : vector<8x32xf32>
    %cst_126 = arith.constant 1.000000e+00 : f32
    %818 = vector.broadcast %cst_126 : f32 to vector<8x32xf32>
    %819 = arith.addf %818, %817 : vector<8x32xf32>
    %820 = arith.divf %818, %819 : vector<8x32xf32>
    %821 = vector.extract_strided_slice %814 {offsets = [0, 32], sizes = [8, 32], strides = [1, 1]} : vector<8x128xf32> to vector<8x32xf32>
    %822 = arith.negf %821 : vector<8x32xf32>
    %823 = math.exp %822 : vector<8x32xf32>
    %cst_127 = arith.constant 1.000000e+00 : f32
    %824 = vector.broadcast %cst_127 : f32 to vector<8x32xf32>
    %825 = arith.addf %824, %823 : vector<8x32xf32>
    %826 = arith.divf %824, %825 : vector<8x32xf32>
    %827 = vector.extract_strided_slice %814 {offsets = [0, 64], sizes = [8, 32], strides = [1, 1]} : vector<8x128xf32> to vector<8x32xf32>
    %828 = math.tanh %827 : vector<8x32xf32>
    %829 = vector.extract_strided_slice %814 {offsets = [0, 96], sizes = [8, 32], strides = [1, 1]} : vector<8x128xf32> to vector<8x32xf32>
    %830 = arith.negf %829 : vector<8x32xf32>
    %831 = math.exp %830 : vector<8x32xf32>
    %cst_128 = arith.constant 1.000000e+00 : f32
    %832 = vector.broadcast %cst_128 : f32 to vector<8x32xf32>
    %833 = arith.addf %832, %831 : vector<8x32xf32>
    %834 = arith.divf %832, %833 : vector<8x32xf32>
    %835 = arith.mulf %826, %809 : vector<8x32xf32>
    %836 = arith.mulf %820, %828 : vector<8x32xf32>
    %837 = arith.addf %835, %836 : vector<8x32xf32>
    %838 = math.tanh %837 : vector<8x32xf32>
    %839 = arith.mulf %834, %838 : vector<8x32xf32>
    %840 = vector.shape_cast %811 : vector<8x1xi1> to vector<8x1xi1>
    %841 = vector.broadcast %840 : vector<8x1xi1> to vector<8x32xi1>
    %842 = arith.select %841, %839, %806 : vector<8x32xi1>, vector<8x32xf32>
    %843 = vector.shape_cast %811 : vector<8x1xi1> to vector<8x1xi1>
    %844 = vector.broadcast %843 : vector<8x1xi1> to vector<8x32xi1>
    %845 = arith.select %844, %837, %809 : vector<8x32xi1>, vector<8x32xf32>
    %c0_i32_129 = arith.constant 0 : i32
    %846 = vector.broadcast %c0_i32_129 : i32 to vector<8x1xi32>
    %847 = arith.cmpi sgt, %0, %846 : vector<8x1xi32>
    %848 = vector.extract_strided_slice %592 {offsets = [56, 0], sizes = [8, 128], strides = [1, 1]} : vector<64x128xf32> to vector<8x128xf32>
    %cst_130 = arith.constant dense<0.000000e+00> : vector<8x128xf32>
    %849 = tpu.matmul %842, %593, %cst_130 {dimension_numbers = #tpu.dot_dimension_numbers<[1], [0], [0], [1], [0, 0, 1, 1], [], []>} : vector<8x32xf32>, vector<32x128xf32>, vector<8x128xf32> -> vector<8x128xf32>
    %850 = arith.addf %848, %849 : vector<8x128xf32>
    %851 = vector.extract_strided_slice %850 {offsets = [0, 0], sizes = [8, 32], strides = [1, 1]} : vector<8x128xf32> to vector<8x32xf32>
    %852 = arith.negf %851 : vector<8x32xf32>
    %853 = math.exp %852 : vector<8x32xf32>
    %cst_131 = arith.constant 1.000000e+00 : f32
    %854 = vector.broadcast %cst_131 : f32 to vector<8x32xf32>
    %855 = arith.addf %854, %853 : vector<8x32xf32>
    %856 = arith.divf %854, %855 : vector<8x32xf32>
    %857 = vector.extract_strided_slice %850 {offsets = [0, 32], sizes = [8, 32], strides = [1, 1]} : vector<8x128xf32> to vector<8x32xf32>
    %858 = arith.negf %857 : vector<8x32xf32>
    %859 = math.exp %858 : vector<8x32xf32>
    %cst_132 = arith.constant 1.000000e+00 : f32
    %860 = vector.broadcast %cst_132 : f32 to vector<8x32xf32>
    %861 = arith.addf %860, %859 : vector<8x32xf32>
    %862 = arith.divf %860, %861 : vector<8x32xf32>
    %863 = vector.extract_strided_slice %850 {offsets = [0, 64], sizes = [8, 32], strides = [1, 1]} : vector<8x128xf32> to vector<8x32xf32>
    %864 = math.tanh %863 : vector<8x32xf32>
    %865 = vector.extract_strided_slice %850 {offsets = [0, 96], sizes = [8, 32], strides = [1, 1]} : vector<8x128xf32> to vector<8x32xf32>
    %866 = arith.negf %865 : vector<8x32xf32>
    %867 = math.exp %866 : vector<8x32xf32>
    %cst_133 = arith.constant 1.000000e+00 : f32
    %868 = vector.broadcast %cst_133 : f32 to vector<8x32xf32>
    %869 = arith.addf %868, %867 : vector<8x32xf32>
    %870 = arith.divf %868, %869 : vector<8x32xf32>
    %871 = arith.mulf %862, %845 : vector<8x32xf32>
    %872 = arith.mulf %856, %864 : vector<8x32xf32>
    %873 = arith.addf %871, %872 : vector<8x32xf32>
    %874 = math.tanh %873 : vector<8x32xf32>
    %875 = arith.mulf %870, %874 : vector<8x32xf32>
    %876 = vector.shape_cast %847 : vector<8x1xi1> to vector<8x1xi1>
    %877 = vector.broadcast %876 : vector<8x1xi1> to vector<8x32xi1>
    %878 = arith.select %877, %875, %842 : vector<8x32xi1>, vector<8x32xf32>
    %879 = vector.shape_cast %847 : vector<8x1xi1> to vector<8x1xi1>
    %880 = vector.broadcast %879 : vector<8x1xi1> to vector<8x32xi1>
    %881 = arith.select %880, %873, %845 : vector<8x32xi1>, vector<8x32xf32>
    %c0_134 = arith.constant 0 : index
    %c0_135 = arith.constant 0 : index
    %882 = vector.load %arg10[%c0_134, %c0_135] : memref<8x32xf32, #tpu.memory_space<vmem>>, vector<8x32xf32>
    tpu.vector_store %arg10[%c0_134, %c0_135], %878 {strides = array<i32>} : memref<8x32xf32, #tpu.memory_space<vmem>>, vector<8x32xf32>,
    %c0_136 = arith.constant 0 : index
    %c0_137 = arith.constant 0 : index
    %883 = vector.load %arg11[%c0_136, %c0_137] : memref<8x32xf32, #tpu.memory_space<vmem>>, vector<8x32xf32>
    tpu.vector_store %arg11[%c0_136, %c0_137], %546 {strides = array<i32>} : memref<8x32xf32, #tpu.memory_space<vmem>>, vector<8x32xf32>,
    %c0_138 = arith.constant 0 : index
    %c0_139 = arith.constant 0 : index
    %884 = vector.load %arg12[%c0_138, %c0_139] : memref<8x32xf32, #tpu.memory_space<vmem>>, vector<8x32xf32>
    tpu.vector_store %arg12[%c0_138, %c0_139], %881 {strides = array<i32>} : memref<8x32xf32, #tpu.memory_space<vmem>>, vector<8x32xf32>,
    %c0_140 = arith.constant 0 : index
    %c0_141 = arith.constant 0 : index
    %885 = vector.load %arg13[%c0_140, %c0_141] : memref<8x32xf32, #tpu.memory_space<vmem>>, vector<8x32xf32>
    tpu.vector_store %arg13[%c0_140, %c0_141], %549 {strides = array<i32>} : memref<8x32xf32, #tpu.memory_space<vmem>>, vector<8x32xf32>,
    return
  }
}

</mosaic_0001>

<llo_original>
// kernel: tpu_custom_call.1
$region0: #{tpu_custom_call.1}
  #allocation0 [shape = 'u32[]', space=smem, size = 0x4, offset = 0x4, fixed_abs, tag = 'smem constant byte address 0x4 - core index']
  #allocation1 [shape = 'u32[72,128]{1,0:T(1,128)}', space=vmem, size = 0x9000, scoped, tag = 'internal scratch']
  %s0 = inlined_call_operand.vmem [shape: f32[64,32], index: 0, kind: input, shape index: {}]
  %s1 = inlined_call_operand.vmem [shape: s32[8,1], index: 1, kind: input, shape index: {}]
  %s2 = inlined_call_operand.vmem [shape: f32[32,256], index: 2, kind: input, shape index: {}]
  %s3 = inlined_call_operand.vmem [shape: f32[1,256], index: 3, kind: input, shape index: {}]
  %s4 = inlined_call_operand.vmem [shape: f32[32,128], index: 4, kind: input, shape index: {}]
  %s5 = inlined_call_operand.hbm [shape: f32[32,128], index: 5, kind: input, shape index: {}]
  %s6 = inlined_call_operand.hbm [shape: f32[32,128], index: 6, kind: input, shape index: {}]
  %s7 = inlined_call_operand.hbm [shape: f32[32,128], index: 7, kind: input, shape index: {}]
  %s8 = inlined_call_operand.hbm [shape: f32[32,128], index: 8, kind: input, shape index: {}]
  %s9 = inlined_call_operand.vmem [shape: f32[1,128], index: 9, kind: input, shape index: {}]
  %s10 = inlined_call_operand.hbm [shape: f32[8,32], index: 10, kind: output, shape index: {0}]
  %s11 = inlined_call_operand.hbm [shape: f32[8,32], index: 11, kind: output, shape index: {1}]
  %s12 = inlined_call_operand.hbm [shape: f32[8,32], index: 12, kind: output, shape index: {2}]
  %s13 = inlined_call_operand.hbm [shape: f32[8,32], index: 13, kind: output, shape index: {3}]
  %14 = xla_tuple %s10, %s11, %s12, %s13
  %s15 = sld [smem:[#allocation0]]
  $region90: #{tpu_custom_call.1} parent=0
    _
  %s17 = ssub.s32 1, %s15
  %s18 = scalar_select 0, %s17, %s15
  $region1: #{tpu_custom_call.1} parent=0
    #allocation2 [shape = 'u8[16384]{0}', space=vmem, size = 0x4000, scoped, tag = 'input window, operand 5, single buffered']
    #allocation3 [shape = 's32[1]{0}', space=sflag, size = 0x4, scoped, tag = 'scoped memory for tpu_custom_call.1']
    #allocation4 [shape = 's32[1]{0}', space=sflag, size = 0x4, scoped, tag = 'scoped memory for tpu_custom_call.1']
    #allocation5 [shape = 'u8[16384]{0}', space=vmem, size = 0x4000, scoped, tag = 'input window, operand 6, single buffered']
    #allocation6 [shape = 's32[1]{0}', space=sflag, size = 0x4, scoped, tag = 'scoped memory for tpu_custom_call.1']
    #allocation7 [shape = 'u8[16384]{0}', space=vmem, size = 0x4000, scoped, tag = 'input window, operand 7, single buffered']
    #allocation8 [shape = 'u8[16384]{0}', space=vmem, size = 0x4000, scoped, tag = 'input window, operand 8, single buffered']
    #allocation9 [shape = 's32[1]{0}', space=sflag, size = 0x4, scoped, tag = 'scoped memory for tpu_custom_call.1']
    #allocation10 [shape = 'u8[4096]{0}', space=vmem, size = 0x1000, scoped, tag = 'output window, operand 0, single buffered']
    #allocation11 [shape = 'u8[4096]{0}', space=vmem, size = 0x1000, scoped, tag = 'output window, operand 1, single buffered']
    #allocation12 [shape = 's32[1]{0}', space=sflag, size = 0x4, scoped, tag = 'scoped memory for tpu_custom_call.1']
    #allocation13 [shape = 'u8[4096]{0}', space=vmem, size = 0x1000, scoped, tag = 'output window, operand 2, single buffered']
    #allocation14 [shape = 'u8[4096]{0}', space=vmem, size = 0x1000, scoped, tag = 'output window, operand 3, single buffered']
    #allocation15 [shape = 's32[1]{0}', space=sflag, size = 0x4, scoped, tag = 'scoped memory for tpu_custom_call.1']
    %19 = vsyncpa [#allocation3], 0
    %20 = vsyncpa [#allocation6], 0
    %21 = vsyncpa [#allocation9], 0
    %22 = vsyncpa [#allocation4], 0
    %23 = vsyncpa [#allocation12], 0
    %24 = vsyncpa [#allocation15], 0
    // Predicated region
    $region2: #{tpu_custom_call.1} parent=1 // pred_check
      _
    $region3: #{tpu_custom_call.1} parent=1 // pred_check_branch
      %26 = sbr.rel (0) target = $region5
    $region4: #{tpu_custom_call.1} parent=1 // pred_region
      _
    $region5: #{tpu_custom_call.1} parent=1 // pred_fallthru
      _
    // Predicated region
    $region6: #{tpu_custom_call.1} parent=1 // pred_check
      _
    $region7: #{tpu_custom_call.1} parent=1 // pred_check_branch
      %28 = sbr.rel (0) target = $region9
    $region8: #{tpu_custom_call.1} parent=1 // pred_region
      _
    $region9: #{tpu_custom_call.1} parent=1 // pred_fallthru
      _
    // Predicated region
    $region10: #{tpu_custom_call.1} parent=1 // pred_check
      _
    $region11: #{tpu_custom_call.1} parent=1 // pred_check_branch
      %30 = sbr.rel (0) target = $region13
    $region12: #{tpu_custom_call.1} parent=1 // pred_region
      _
    $region13: #{tpu_custom_call.1} parent=1 // pred_fallthru
      _
    // Predicated region
    $region14: #{tpu_custom_call.1} parent=1 // pred_check
      _
    $region15: #{tpu_custom_call.1} parent=1 // pred_check_branch
      %32 = sbr.rel (0) target = $region17
    $region16: #{tpu_custom_call.1} parent=1 // pred_region
      _
    $region17: #{tpu_custom_call.1} parent=1 // pred_fallthru
      _
    // Predicated region
    $region18: #{tpu_custom_call.1} parent=1 // pred_check
      _
    $region19: #{tpu_custom_call.1} parent=1 // pred_check_branch
      %34 = sbr.rel (0) target = $region21
    $region20: #{tpu_custom_call.1} parent=1 // pred_region
      _
    $region21: #{tpu_custom_call.1} parent=1 // pred_fallthru
      _
    // Predicated region
    $region22: #{tpu_custom_call.1} parent=1 // pred_check
      _
    $region23: #{tpu_custom_call.1} parent=1 // pred_check_branch
      %36 = sbr.rel (0) target = $region25
    $region24: #{tpu_custom_call.1} parent=1 // pred_region
      %38 = vsyncadd [#allocation3], 0
      %s39 = sshll.u32 %s5, 4
      %s40 = int_to_ptr.hbm [resolvable:$true] %s39
      %s41 = sshll.u32 [#allocation2], 4
      %s42 = int_to_ptr.vmem [resolvable:$true] %s41
      %47 = dma.hbm_to_vmem [thread:$0]  %s40, 512, %s42, [#allocation3], 128, 128, 8
    $region25: #{tpu_custom_call.1} parent=1 // pred_fallthru
      _
    // Predicated region
    $region26: #{tpu_custom_call.1} parent=1 // pred_check
      _
    $region27: #{tpu_custom_call.1} parent=1 // pred_check_branch
      %49 = sbr.rel (0) target = $region29
    $region28: #{tpu_custom_call.1} parent=1 // pred_region
      %51 = vsyncadd [#allocation6], 0
      %s52 = sshll.u32 %s6, 4
      %s53 = int_to_ptr.hbm [resolvable:$true] %s52
      %s54 = sshll.u32 [#allocation5], 4
      %s55 = int_to_ptr.vmem [resolvable:$true] %s54
      %60 = dma.hbm_to_vmem [thread:$0]  %s53, 512, %s55, [#allocation6], 128, 128, 8
    $region29: #{tpu_custom_call.1} parent=1 // pred_fallthru
      _
    // Predicated region
    $region30: #{tpu_custom_call.1} parent=1 // pred_check
      _
    $region31: #{tpu_custom_call.1} parent=1 // pred_check_branch
      %62 = sbr.rel (0) target = $region33
    $region32: #{tpu_custom_call.1} parent=1 // pred_region
      %64 = vsyncadd [#allocation6], 0
      %s65 = sshll.u32 %s7, 4
      %s66 = int_to_ptr.hbm [resolvable:$true] %s65
      %s67 = sshll.u32 [#allocation7], 4
      %s68 = int_to_ptr.vmem [resolvable:$true] %s67
      %73 = dma.hbm_to_vmem [thread:$0]  %s66, 512, %s68, [#allocation6], 128, 128, 8
    $region33: #{tpu_custom_call.1} parent=1 // pred_fallthru
      _
    // Predicated region
    $region34: #{tpu_custom_call.1} parent=1 // pred_check
      _
    $region35: #{tpu_custom_call.1} parent=1 // pred_check_branch
      %75 = sbr.rel (0) target = $region37
    $region36: #{tpu_custom_call.1} parent=1 // pred_region
      %77 = vsyncadd [#allocation9], 0
      %s78 = sshll.u32 %s8, 4
      %s79 = int_to_ptr.hbm [resolvable:$true] %s78
      %s80 = sshll.u32 [#allocation8], 4
      %s81 = int_to_ptr.vmem [resolvable:$true] %s80
      %86 = dma.hbm_to_vmem [thread:$0]  %s79, 512, %s81, [#allocation9], 128, 128, 8
    $region37: #{tpu_custom_call.1} parent=1 // pred_fallthru
      _
    // Predicated region
    $region38: #{tpu_custom_call.1} parent=1 // pred_check
      _
    $region39: #{tpu_custom_call.1} parent=1 // pred_check_branch
      %88 = sbr.rel (0) target = $region41
    $region40: #{tpu_custom_call.1} parent=1 // pred_region
      _
    $region41: #{tpu_custom_call.1} parent=1 // pred_fallthru
      _
    // Predicated region
    $region42: #{tpu_custom_call.1} parent=1 // pred_check
      _
    $region43: #{tpu_custom_call.1} parent=1 // pred_check_branch
      %90 = sbr.rel (0) target = $region45
    $region44: #{tpu_custom_call.1} parent=1 // pred_region
      %92 = dma.done [#allocation3], 512
    $region45: #{tpu_custom_call.1} parent=1 // pred_fallthru
      _
    // Predicated region
    $region46: #{tpu_custom_call.1} parent=1 // pred_check
      _
    $region47: #{tpu_custom_call.1} parent=1 // pred_check_branch
      %94 = sbr.rel (0) target = $region49
    $region48: #{tpu_custom_call.1} parent=1 // pred_region
      %96 = dma.done [#allocation6], 512
    $region49: #{tpu_custom_call.1} parent=1 // pred_fallthru
      _
    // Predicated region
    $region50: #{tpu_custom_call.1} parent=1 // pred_check
      _
    $region51: #{tpu_custom_call.1} parent=1 // pred_check_branch
      %98 = sbr.rel (0) target = $region53
    $region52: #{tpu_custom_call.1} parent=1 // pred_region
      %100 = dma.done [#allocation6], 512
    $region53: #{tpu_custom_call.1} parent=1 // pred_fallthru
      _
    // Predicated region
    $region54: #{tpu_custom_call.1} parent=1 // pred_check
      _
    $region55: #{tpu_custom_call.1} parent=1 // pred_check_branch
      %102 = sbr.rel (0) target = $region57
    $region56: #{tpu_custom_call.1} parent=1 // pred_region
      %104 = dma.done [#allocation9], 512
    $region57: #{tpu_custom_call.1} parent=1 // pred_fallthru
      _
    %v105 = vld [vmem:[%s1] sm:$0xff]
    %v106 = vld [vmem:[%s4] sm:$0xff]
    %v107 = vld [vmem:[%s4 + $0x8] sm:$0xff]
    %v108 = vld [vmem:[%s4 + $0x10] sm:$0xff]
    %v109 = vld [vmem:[%s4 + $0x18] sm:$0xff]
    %v110 = vld [vmem:[#allocation2] sm:$0xff]
    %v111 = vld [vmem:[#allocation2 + $0x8] sm:$0xff]
    %v112 = vld [vmem:[#allocation2 + $0x10] sm:$0xff]
    %v113 = vld [vmem:[#allocation2 + $0x18] sm:$0xff]
    %v114 = vld [vmem:[%s0] sm:$0xff]
    %v115 = vld [vmem:[%s0 + $0x8] sm:$0xff]
    %v116 = vld [vmem:[%s0 + $0x10] sm:$0xff]
    %v117 = vld [vmem:[%s0 + $0x18] sm:$0xff]
    %v118 = vld [vmem:[%s0 + $0x20] sm:$0xff]
    %v119 = vld [vmem:[%s0 + $0x28] sm:$0xff]
    %v120 = vld [vmem:[%s0 + $0x30] sm:$0xff]
    %v121 = vld [vmem:[%s0 + $0x38] sm:$0xff]
    %v122 = vld [vmem:[%s2] sm:$0xff]
    %v123 = vld [vmem:[%s2 + $0x8] sm:$0xff]
    %v124 = vld [vmem:[%s2 + $0x10] sm:$0xff]
    %v125 = vld [vmem:[%s2 + $0x18] sm:$0xff]
    %v126 = vld [vmem:[%s2 + $0x20] sm:$0xff]
    %v127 = vld [vmem:[%s2 + $0x28] sm:$0xff]
    %v128 = vld [vmem:[%s2 + $0x30] sm:$0xff]
    %v129 = vld [vmem:[%s2 + $0x38] sm:$0xff]
    %v130 = vld [vmem:[%s3] sm:$0x3]
    %v132 = vperm.slane %v130, 0
    %v133 = vperm.slane %v130, 1
    %vm136 = vcmask 261120
    %v138 = vsel %vm136, %v114, 0
    %v141 = vsel %vm136, %v115, 0
    %v144 = vsel %vm136, %v116, 0
    %v147 = vsel %vm136, %v117, 0
    %v150 = vsel %vm136, %v118, 0
    %v153 = vsel %vm136, %v119, 0
    %v156 = vsel %vm136, %v120, 0
    %v159 = vsel %vm136, %v121, 0
    %161 = vmatpush.msra.mxu0 0.0
    %162 = vmatpush.msra.mxu0 0.0
    %163 = vmatpush.msra.mxu0 0.0
    %164 = vmatpush.msra.mxu0 0.0
    %165 = vmatpush.msra.mxu0 0.0
    %166 = vmatpush.msra.mxu0 0.0
    %167 = vmatpush.msra.mxu0 0.0
    %168 = vmatpush.msra.mxu0 0.0
    %169 = vmatpush.msra.mxu0 0.0
    %170 = vmatpush.msra.mxu0 0.0
    %171 = vmatpush.msra.mxu0 0.0
    %172 = vmatpush.msra.mxu0 0.0
    %173 = vmatpush.msra.mxu0 %v128
    %174 = vmatpush.msra.mxu0 %v126
    %175 = vmatpush.msra.mxu0 %v124
    %176 = vmatpush.msra.mxu0 %v122
    %177 = vmatmul.f32.gmra.mxu0 %v138
    %v178 = vpop.f32.mrf.mxu0
    %v179 = vadd.f32 %v132, %v178
    %180 = vmatmul.f32.gmra.mxu0 %v141
    %v181 = vpop.f32.mrf.mxu0
    %v182 = vadd.f32 %v132, %v181
    %183 = vmatmul.f32.gmra.mxu0 %v144
    %v184 = vpop.f32.mrf.mxu0
    %v185 = vadd.f32 %v132, %v184
    %186 = vmatmul.f32.gmra.mxu0 %v147
    %v187 = vpop.f32.mrf.mxu0
    %v188 = vadd.f32 %v132, %v187
    %189 = vmatmul.f32.gmra.mxu0 %v150
    %v190 = vpop.f32.mrf.mxu0
    %v191 = vadd.f32 %v132, %v190
    %192 = vmatmul.f32.gmra.mxu0 %v153
    %v193 = vpop.f32.mrf.mxu0
    %v194 = vadd.f32 %v132, %v193
    %195 = vmatmul.f32.gmra.mxu0 %v156
    %v196 = vpop.f32.mrf.mxu0
    %v197 = vadd.f32 %v132, %v196
    %198 = vmatmul.f32.gmra.mxu0 %v159
    %v199 = vpop.f32.mrf.mxu0
    %v200 = vadd.f32 %v132, %v199
    %201 = vdwg.mxu0
    %202 = vmatpush.msra.mxu0 0.0
    %203 = vmatpush.msra.mxu0 0.0
    %204 = vmatpush.msra.mxu0 0.0
    %205 = vmatpush.msra.mxu0 0.0
    %206 = vmatpush.msra.mxu0 0.0
    %207 = vmatpush.msra.mxu0 0.0
    %208 = vmatpush.msra.mxu0 0.0
    %209 = vmatpush.msra.mxu0 0.0
    %210 = vmatpush.msra.mxu0 0.0
    %211 = vmatpush.msra.mxu0 0.0
    %212 = vmatpush.msra.mxu0 0.0
    %213 = vmatpush.msra.mxu0 0.0
    %214 = vmatpush.msra.mxu0 %v129
    %215 = vmatpush.msra.mxu0 %v127
    %216 = vmatpush.msra.mxu0 %v125
    %217 = vmatpush.msra.mxu0 %v123
    %218 = vmatmul.f32.gmra.mxu0 %v138
    %v219 = vpop.f32.mrf.mxu0
    %v220 = vadd.f32 %v133, %v219
    %221 = vmatmul.f32.gmra.mxu0 %v141
    %v222 = vpop.f32.mrf.mxu0
    %v223 = vadd.f32 %v133, %v222
    %224 = vmatmul.f32.gmra.mxu0 %v144
    %v225 = vpop.f32.mrf.mxu0
    %v226 = vadd.f32 %v133, %v225
    %227 = vmatmul.f32.gmra.mxu0 %v147
    %v228 = vpop.f32.mrf.mxu0
    %v229 = vadd.f32 %v133, %v228
    %230 = vmatmul.f32.gmra.mxu0 %v150
    %v231 = vpop.f32.mrf.mxu0
    %v232 = vadd.f32 %v133, %v231
    %233 = vmatmul.f32.gmra.mxu0 %v153
    %v234 = vpop.f32.mrf.mxu0
    %v235 = vadd.f32 %v133, %v234
    %236 = vmatmul.f32.gmra.mxu0 %v156
    %v237 = vpop.f32.mrf.mxu0
    %v238 = vadd.f32 %v133, %v237
    %239 = vmatmul.f32.gmra.mxu0 %v159
    %v240 = vpop.f32.mrf.mxu0
    %v241 = vadd.f32 %v133, %v240
    %242 = vdwg.mxu0
    %vm243 = vcmp.gt.s32.totalorder %v105, 0
    %v245 = vsel %vm136, 0.0, 0
    %247 = vmatpush.msra.mxu0 0.0
    %248 = vmatpush.msra.mxu0 0.0
    %249 = vmatpush.msra.mxu0 0.0
    %250 = vmatpush.msra.mxu0 0.0
    %251 = vmatpush.msra.mxu0 0.0
    %252 = vmatpush.msra.mxu0 0.0
    %253 = vmatpush.msra.mxu0 0.0
    %254 = vmatpush.msra.mxu0 0.0
    %255 = vmatpush.msra.mxu0 0.0
    %256 = vmatpush.msra.mxu0 0.0
    %257 = vmatpush.msra.mxu0 0.0
    %258 = vmatpush.msra.mxu0 0.0
    %259 = vmatpush.msra.mxu0 %v109
    %260 = vmatpush.msra.mxu0 %v108
    %261 = vmatpush.msra.mxu0 %v107
    %262 = vmatpush.msra.mxu0 %v106
    %263 = vmatmul.f32.gmra.mxu0 %v245
    %v264 = vpop.f32.mrf.mxu0
    %v265 = vadd.f32 0.0, %v264
    %266 = vdwg.mxu0
    %v267 = vadd.f32 %v179, %v265
    %v268 = vxor.u32 %v267, 2147483648
    %v269 = vmul.f32 %v268, 1.442695
    %v270 = vpow.pop %v269
    %v271 = vadd.f32 %v270, 1.0
    %v272 = vrcp.pop %v271
    %v273 = vmul.f32 %v271, %v272
    %v274 = vsub.f32 1.0, %v273
    %v275 = vmul.f32 %v272, %v274
    %v276 = vadd.f32 %v272, %v275
    %vm277 = vweird.f32 %v271
    %vm278 = vweird.f32 %v272
    %vm279 = vmor %vm277, %vm278
    %v280 = vsel %vm279, %v272, %v276
    %v281 = vand.u32 2147483647, %v271
    %vm282 = vcmp.eq.f32.partialorder %v281, 8.507059e+37
    %v283 = vand.u32 %v271, 2147483648
    %v284 = vor.u32 1.1754944e-38, %v283
    %v285 = vsel %vm282, %v284, %v280
    %v286 = vmul.f32 1.0, %v285
    %v287 = vtanh.pop %v267
    %v288 = vmul.f32 %v286, 0.0
    %290 = vrot.lane.b32.xlu0 %v287, 64
    %v291 = vpop.permute.xlu0 %290
    %v293 = vmul.f32 %v286, %v291
    %295 = vrot.lane.b32.xlu0 %v293, 32
    %v296 = vpop.permute.xlu0 %295
    %v298 = vadd.f32 %v288, %v296
    %v299 = vtanh.pop %v298
    %301 = vrot.lane.b32.xlu0 %v299, 64
    %v302 = vpop.permute.xlu0 %301
    %v304 = vmul.f32 %v286, %v302
    %v305 = vsel %vm243, 1, 0
    %306 = vset.pattern.permute.xlu0 0
    %307 = vperm.xlu0 %306, %v305
    %v308 = vpop.permute.xlu0 %307
    %vm309 = vcmp.eq.s32.totalorder %v308, 1
    %v310 = vsel %vm309, %v304, 0.0
    %v311 = vsel %vm309, %v298, 0.0
    %vm312 = vcmp.gt.s32.totalorder %v105, 7
    %313 = vmatpush.msra.mxu0 0.0
    %314 = vmatpush.msra.mxu0 0.0
    %315 = vmatpush.msra.mxu0 0.0
    %316 = vmatpush.msra.mxu0 0.0
    %317 = vmatpush.msra.mxu0 0.0
    %318 = vmatpush.msra.mxu0 0.0
    %319 = vmatpush.msra.mxu0 0.0
    %320 = vmatpush.msra.mxu0 0.0
    %321 = vmatpush.msra.mxu0 0.0
    %322 = vmatpush.msra.mxu0 0.0
    %323 = vmatpush.msra.mxu0 0.0
    %324 = vmatpush.msra.mxu0 0.0
    %325 = vmatpush.msra.mxu0 %v113
    %326 = vmatpush.msra.mxu0 %v112
    %327 = vmatpush.msra.mxu0 %v111
    %328 = vmatpush.msra.mxu0 %v110
    %329 = vmatmul.f32.gmra.mxu0 %v245
    %v330 = vpop.f32.mrf.mxu0
    %v331 = vadd.f32 0.0, %v330
    %332 = vdwg.mxu0
    %v333 = vadd.f32 %v241, %v331
    %v334 = vxor.u32 %v333, 2147483648
    %v335 = vmul.f32 %v334, 1.442695
    %v336 = vpow.pop %v335
    %v337 = vadd.f32 %v336, 1.0
    %v338 = vrcp.pop %v337
    %v339 = vmul.f32 %v337, %v338
    %v340 = vsub.f32 1.0, %v339
    %v341 = vmul.f32 %v338, %v340
    %v342 = vadd.f32 %v338, %v341
    %vm343 = vweird.f32 %v337
    %vm344 = vweird.f32 %v338
    %vm345 = vmor %vm343, %vm344
    %v346 = vsel %vm345, %v338, %v342
    %v347 = vand.u32 2147483647, %v337
    %vm348 = vcmp.eq.f32.partialorder %v347, 8.507059e+37
    %v349 = vand.u32 %v337, 2147483648
    %v350 = vor.u32 1.1754944e-38, %v349
    %v351 = vsel %vm348, %v350, %v346
    %v352 = vmul.f32 1.0, %v351
    %v353 = vtanh.pop %v333
    %v354 = vmul.f32 %v352, 0.0
    %356 = vrot.lane.b32.xlu0 %v353, 64
    %v357 = vpop.permute.xlu0 %356
    %v359 = vmul.f32 %v352, %v357
    %361 = vrot.lane.b32.xlu0 %v359, 32
    %v362 = vpop.permute.xlu0 %361
    %v364 = vadd.f32 %v354, %v362
    %v365 = vtanh.pop %v364
    %367 = vrot.lane.b32.xlu0 %v365, 64
    %v368 = vpop.permute.xlu0 %367
    %v370 = vmul.f32 %v352, %v368
    %v371 = vsel %vm312, 1, 0
    %372 = vset.pattern.permute.xlu0 0
    %373 = vperm.xlu0 %372, %v371
    %v374 = vpop.permute.xlu0 %373
    %vm375 = vcmp.eq.s32.totalorder %v374, 1
    %v376 = vsel %vm375, %v370, 0.0
    %v377 = vsel %vm375, %v364, 0.0
    %vm378 = vcmp.gt.s32.totalorder %v105, 1
    %380 = vrot.lane.b32.xlu0 %v310, 32
    %v381 = vpop.permute.xlu0 %380
    %v382 = vsel %vm136, %v381, 0
    %384 = vmatpush.msra.mxu0 0.0
    %385 = vmatpush.msra.mxu0 0.0
    %386 = vmatpush.msra.mxu0 0.0
    %387 = vmatpush.msra.mxu0 0.0
    %388 = vmatpush.msra.mxu0 0.0
    %389 = vmatpush.msra.mxu0 0.0
    %390 = vmatpush.msra.mxu0 0.0
    %391 = vmatpush.msra.mxu0 0.0
    %392 = vmatpush.msra.mxu0 0.0
    %393 = vmatpush.msra.mxu0 0.0
    %394 = vmatpush.msra.mxu0 0.0
    %395 = vmatpush.msra.mxu0 0.0
    %396 = vmatpush.msra.mxu0 %v109
    %397 = vmatpush.msra.mxu0 %v108
    %398 = vmatpush.msra.mxu0 %v107
    %399 = vmatpush.msra.mxu0 %v106
    %400 = vmatmul.f32.gmra.mxu0 %v382
    %v401 = vpop.f32.mrf.mxu0
    %v402 = vadd.f32 0.0, %v401
    %403 = vdwg.mxu0
    %v404 = vadd.f32 %v182, %v402
    %v405 = vxor.u32 %v404, 2147483648
    %v406 = vmul.f32 %v405, 1.442695
    %v407 = vpow.pop %v406
    %v408 = vadd.f32 %v407, 1.0
    %v409 = vrcp.pop %v408
    %v410 = vmul.f32 %v408, %v409
    %v411 = vsub.f32 1.0, %v410
    %v412 = vmul.f32 %v409, %v411
    %v413 = vadd.f32 %v409, %v412
    %vm414 = vweird.f32 %v408
    %vm415 = vweird.f32 %v409
    %vm416 = vmor %vm414, %vm415
    %v417 = vsel %vm416, %v409, %v413
    %v418 = vand.u32 2147483647, %v408
    %vm419 = vcmp.eq.f32.partialorder %v418, 8.507059e+37
    %v420 = vand.u32 %v408, 2147483648
    %v421 = vor.u32 1.1754944e-38, %v420
    %v422 = vsel %vm419, %v421, %v417
    %v423 = vmul.f32 1.0, %v422
    %v424 = vtanh.pop %v404
    %v425 = vmul.f32 %v423, %v311
    %427 = vrot.lane.b32.xlu0 %v424, 64
    %v428 = vpop.permute.xlu0 %427
    %v430 = vmul.f32 %v423, %v428
    %432 = vrot.lane.b32.xlu0 %v430, 32
    %v433 = vpop.permute.xlu0 %432
    %v435 = vadd.f32 %v425, %v433
    %v436 = vtanh.pop %v435
    %438 = vrot.lane.b32.xlu0 %v436, 64
    %v439 = vpop.permute.xlu0 %438
    %v441 = vmul.f32 %v423, %v439
    %v442 = vsel %vm378, 1, 0
    %443 = vset.pattern.permute.xlu0 0
    %444 = vperm.xlu0 %443, %v442
    %v445 = vpop.permute.xlu0 %444
    %vm446 = vcmp.eq.s32.totalorder %v445, 1
    %v447 = vsel %vm446, %v441, %v310
    %v448 = vsel %vm446, %v435, %v311
    %vm449 = vcmp.gt.s32.totalorder %v105, 6
    %451 = vrot.lane.b32.xlu0 %v376, 32
    %v452 = vpop.permute.xlu0 %451
    %v453 = vsel %vm136, %v452, 0
    %455 = vmatpush.msra.mxu0 0.0
    %456 = vmatpush.msra.mxu0 0.0
    %457 = vmatpush.msra.mxu0 0.0
    %458 = vmatpush.msra.mxu0 0.0
    %459 = vmatpush.msra.mxu0 0.0
    %460 = vmatpush.msra.mxu0 0.0
    %461 = vmatpush.msra.mxu0 0.0
    %462 = vmatpush.msra.mxu0 0.0
    %463 = vmatpush.msra.mxu0 0.0
    %464 = vmatpush.msra.mxu0 0.0
    %465 = vmatpush.msra.mxu0 0.0
    %466 = vmatpush.msra.mxu0 0.0
    %467 = vmatpush.msra.mxu0 %v113
    %468 = vmatpush.msra.mxu0 %v112
    %469 = vmatpush.msra.mxu0 %v111
    %470 = vmatpush.msra.mxu0 %v110
    %471 = vmatmul.f32.gmra.mxu0 %v453
    %v472 = vpop.f32.mrf.mxu0
    %v473 = vadd.f32 0.0, %v472
    %474 = vdwg.mxu0
    %v475 = vadd.f32 %v238, %v473
    %v476 = vxor.u32 %v475, 2147483648
    %v477 = vmul.f32 %v476, 1.442695
    %v478 = vpow.pop %v477
    %v479 = vadd.f32 %v478, 1.0
    %v480 = vrcp.pop %v479
    %v481 = vmul.f32 %v479, %v480
    %v482 = vsub.f32 1.0, %v481
    %v483 = vmul.f32 %v480, %v482
    %v484 = vadd.f32 %v480, %v483
    %vm485 = vweird.f32 %v479
    %vm486 = vweird.f32 %v480
    %vm487 = vmor %vm485, %vm486
    %v488 = vsel %vm487, %v480, %v484
    %v489 = vand.u32 2147483647, %v479
    %vm490 = vcmp.eq.f32.partialorder %v489, 8.507059e+37
    %v491 = vand.u32 %v479, 2147483648
    %v492 = vor.u32 1.1754944e-38, %v491
    %v493 = vsel %vm490, %v492, %v488
    %v494 = vmul.f32 1.0, %v493
    %v495 = vtanh.pop %v475
    %v496 = vmul.f32 %v494, %v377
    %498 = vrot.lane.b32.xlu0 %v495, 64
    %v499 = vpop.permute.xlu0 %498
    %v501 = vmul.f32 %v494, %v499
    %503 = vrot.lane.b32.xlu0 %v501, 32
    %v504 = vpop.permute.xlu0 %503
    %v506 = vadd.f32 %v496, %v504
    %v507 = vtanh.pop %v506
    %509 = vrot.lane.b32.xlu0 %v507, 64
    %v510 = vpop.permute.xlu0 %509
    %v512 = vmul.f32 %v494, %v510
    %v513 = vsel %vm449, 1, 0
    %514 = vset.pattern.permute.xlu0 0
    %515 = vperm.xlu0 %514, %v513
    %v516 = vpop.permute.xlu0 %515
    %vm517 = vcmp.eq.s32.totalorder %v516, 1
    %v518 = vsel %vm517, %v512, %v376
    %v519 = vsel %vm517, %v506, %v377
    %vm520 = vcmp.gt.s32.totalorder %v105, 2
    %522 = vrot.lane.b32.xlu0 %v447, 32
    %v523 = vpop.permute.xlu0 %522
    %v524 = vsel %vm136, %v523, 0
    %526 = vmatpush.msra.mxu0 0.0
    %527 = vmatpush.msra.mxu0 0.0
    %528 = vmatpush.msra.mxu0 0.0
    %529 = vmatpush.msra.mxu0 0.0
    %530 = vmatpush.msra.mxu0 0.0
    %531 = vmatpush.msra.mxu0 0.0
    %532 = vmatpush.msra.mxu0 0.0
    %533 = vmatpush.msra.mxu0 0.0
    %534 = vmatpush.msra.mxu0 0.0
    %535 = vmatpush.msra.mxu0 0.0
    %536 = vmatpush.msra.mxu0 0.0
    %537 = vmatpush.msra.mxu0 0.0
    %538 = vmatpush.msra.mxu0 %v109
    %539 = vmatpush.msra.mxu0 %v108
    %540 = vmatpush.msra.mxu0 %v107
    %541 = vmatpush.msra.mxu0 %v106
    %542 = vmatmul.f32.gmra.mxu0 %v524
    %v543 = vpop.f32.mrf.mxu0
    %v544 = vadd.f32 0.0, %v543
    %545 = vdwg.mxu0
    %v546 = vadd.f32 %v185, %v544
    %v547 = vxor.u32 %v546, 2147483648
    %v548 = vmul.f32 %v547, 1.442695
    %v549 = vpow.pop %v548
    %v550 = vadd.f32 %v549, 1.0
    %v551 = vrcp.pop %v550
    %v552 = vmul.f32 %v550, %v551
    %v553 = vsub.f32 1.0, %v552
    %v554 = vmul.f32 %v551, %v553
    %v555 = vadd.f32 %v551, %v554
    %vm556 = vweird.f32 %v550
    %vm557 = vweird.f32 %v551
    %vm558 = vmor %vm556, %vm557
    %v559 = vsel %vm558, %v551, %v555
    %v560 = vand.u32 2147483647, %v550
    %vm561 = vcmp.eq.f32.partialorder %v560, 8.507059e+37
    %v562 = vand.u32 %v550, 2147483648
    %v563 = vor.u32 1.1754944e-38, %v562
    %v564 = vsel %vm561, %v563, %v559
    %v565 = vmul.f32 1.0, %v564
    %v566 = vtanh.pop %v546
    %v567 = vmul.f32 %v565, %v448
    %569 = vrot.lane.b32.xlu0 %v566, 64
    %v570 = vpop.permute.xlu0 %569
    %v572 = vmul.f32 %v565, %v570
    %574 = vrot.lane.b32.xlu0 %v572, 32
    %v575 = vpop.permute.xlu0 %574
    %v577 = vadd.f32 %v567, %v575
    %v578 = vtanh.pop %v577
    %580 = vrot.lane.b32.xlu0 %v578, 64
    %v581 = vpop.permute.xlu0 %580
    %v583 = vmul.f32 %v565, %v581
    %v584 = vsel %vm520, 1, 0
    %585 = vset.pattern.permute.xlu0 0
    %586 = vperm.xlu0 %585, %v584
    %v587 = vpop.permute.xlu0 %586
    %vm588 = vcmp.eq.s32.totalorder %v587, 1
    %v589 = vsel %vm588, %v583, %v447
    %v590 = vsel %vm588, %v577, %v448
    %vm591 = vcmp.gt.s32.totalorder %v105, 5
    %593 = vrot.lane.b32.xlu0 %v518, 32
    %v594 = vpop.permute.xlu0 %593
    %v595 = vsel %vm136, %v594, 0
    %597 = vmatpush.msra.mxu0 0.0
    %598 = vmatpush.msra.mxu0 0.0
    %599 = vmatpush.msra.mxu0 0.0
    %600 = vmatpush.msra.mxu0 0.0
    %601 = vmatpush.msra.mxu0 0.0
    %602 = vmatpush.msra.mxu0 0.0
    %603 = vmatpush.msra.mxu0 0.0
    %604 = vmatpush.msra.mxu0 0.0
    %605 = vmatpush.msra.mxu0 0.0
    %606 = vmatpush.msra.mxu0 0.0
    %607 = vmatpush.msra.mxu0 0.0
    %608 = vmatpush.msra.mxu0 0.0
    %609 = vmatpush.msra.mxu0 %v113
    %610 = vmatpush.msra.mxu0 %v112
    %611 = vmatpush.msra.mxu0 %v111
    %612 = vmatpush.msra.mxu0 %v110
    %613 = vmatmul.f32.gmra.mxu0 %v595
    %v614 = vpop.f32.mrf.mxu0
    %v615 = vadd.f32 0.0, %v614
    %616 = vdwg.mxu0
    %v617 = vadd.f32 %v235, %v615
    %v618 = vxor.u32 %v617, 2147483648
    %v619 = vmul.f32 %v618, 1.442695
    %v620 = vpow.pop %v619
    %v621 = vadd.f32 %v620, 1.0
    %v622 = vrcp.pop %v621
    %v623 = vmul.f32 %v621, %v622
    %v624 = vsub.f32 1.0, %v623
    %v625 = vmul.f32 %v622, %v624
    %v626 = vadd.f32 %v622, %v625
    %vm627 = vweird.f32 %v621
    %vm628 = vweird.f32 %v622
    %vm629 = vmor %vm627, %vm628
    %v630 = vsel %vm629, %v622, %v626
    %v631 = vand.u32 2147483647, %v621
    %vm632 = vcmp.eq.f32.partialorder %v631, 8.507059e+37
    %v633 = vand.u32 %v621, 2147483648
    %v634 = vor.u32 1.1754944e-38, %v633
    %v635 = vsel %vm632, %v634, %v630
    %v636 = vmul.f32 1.0, %v635
    %v637 = vtanh.pop %v617
    %v638 = vmul.f32 %v636, %v519
    %640 = vrot.lane.b32.xlu0 %v637, 64
    %v641 = vpop.permute.xlu0 %640
    %v643 = vmul.f32 %v636, %v641
    %645 = vrot.lane.b32.xlu0 %v643, 32
    %v646 = vpop.permute.xlu0 %645
    %v648 = vadd.f32 %v638, %v646
    %v649 = vtanh.pop %v648
    %651 = vrot.lane.b32.xlu0 %v649, 64
    %v652 = vpop.permute.xlu0 %651
    %v654 = vmul.f32 %v636, %v652
    %v655 = vsel %vm591, 1, 0
    %656 = vset.pattern.permute.xlu0 0
    %657 = vperm.xlu0 %656, %v655
    %v658 = vpop.permute.xlu0 %657
    %vm659 = vcmp.eq.s32.totalorder %v658, 1
    %v660 = vsel %vm659, %v654, %v518
    %v661 = vsel %vm659, %v648, %v519
    %vm662 = vcmp.gt.s32.totalorder %v105, 3
    %664 = vrot.lane.b32.xlu0 %v589, 32
    %v665 = vpop.permute.xlu0 %664
    %v666 = vsel %vm136, %v665, 0
    %668 = vmatpush.msra.mxu0 0.0
    %669 = vmatpush.msra.mxu0 0.0
    %670 = vmatpush.msra.mxu0 0.0
    %671 = vmatpush.msra.mxu0 0.0
    %672 = vmatpush.msra.mxu0 0.0
    %673 = vmatpush.msra.mxu0 0.0
    %674 = vmatpush.msra.mxu0 0.0
    %675 = vmatpush.msra.mxu0 0.0
    %676 = vmatpush.msra.mxu0 0.0
    %677 = vmatpush.msra.mxu0 0.0
    %678 = vmatpush.msra.mxu0 0.0
    %679 = vmatpush.msra.mxu0 0.0
    %680 = vmatpush.msra.mxu0 %v109
    %681 = vmatpush.msra.mxu0 %v108
    %682 = vmatpush.msra.mxu0 %v107
    %683 = vmatpush.msra.mxu0 %v106
    %684 = vmatmul.f32.gmra.mxu0 %v666
    %v685 = vpop.f32.mrf.mxu0
    %v686 = vadd.f32 0.0, %v685
    %687 = vdwg.mxu0
    %v688 = vadd.f32 %v188, %v686
    %v689 = vxor.u32 %v688, 2147483648
    %v690 = vmul.f32 %v689, 1.442695
    %v691 = vpow.pop %v690
    %v692 = vadd.f32 %v691, 1.0
    %v693 = vrcp.pop %v692
    %v694 = vmul.f32 %v692, %v693
    %v695 = vsub.f32 1.0, %v694
    %v696 = vmul.f32 %v693, %v695
    %v697 = vadd.f32 %v693, %v696
    %vm698 = vweird.f32 %v692
    %vm699 = vweird.f32 %v693
    %vm700 = vmor %vm698, %vm699
    %v701 = vsel %vm700, %v693, %v697
    %v702 = vand.u32 2147483647, %v692
    %vm703 = vcmp.eq.f32.partialorder %v702, 8.507059e+37
    %v704 = vand.u32 %v692, 2147483648
    %v705 = vor.u32 1.1754944e-38, %v704
    %v706 = vsel %vm703, %v705, %v701
    %v707 = vmul.f32 1.0, %v706
    %v708 = vtanh.pop %v688
    %v709 = vmul.f32 %v707, %v590
    %711 = vrot.lane.b32.xlu0 %v708, 64
    %v712 = vpop.permute.xlu0 %711
    %v714 = vmul.f32 %v707, %v712
    %716 = vrot.lane.b32.xlu0 %v714, 32
    %v717 = vpop.permute.xlu0 %716
    %v719 = vadd.f32 %v709, %v717
    %v720 = vtanh.pop %v719
    %722 = vrot.lane.b32.xlu0 %v720, 64
    %v723 = vpop.permute.xlu0 %722
    %v725 = vmul.f32 %v707, %v723
    %v726 = vsel %vm662, 1, 0
    %727 = vset.pattern.permute.xlu0 0
    %728 = vperm.xlu0 %727, %v726
    %v729 = vpop.permute.xlu0 %728
    %vm730 = vcmp.eq.s32.totalorder %v729, 1
    %v731 = vsel %vm730, %v725, %v589
    %v732 = vsel %vm730, %v719, %v590
    %vm733 = vcmp.gt.s32.totalorder %v105, 4
    %735 = vrot.lane.b32.xlu0 %v660, 32
    %v736 = vpop.permute.xlu0 %735
    %v737 = vsel %vm136, %v736, 0
    %739 = vmatpush.msra.mxu0 0.0
    %740 = vmatpush.msra.mxu0 0.0
    %741 = vmatpush.msra.mxu0 0.0
    %742 = vmatpush.msra.mxu0 0.0
    %743 = vmatpush.msra.mxu0 0.0
    %744 = vmatpush.msra.mxu0 0.0
    %745 = vmatpush.msra.mxu0 0.0
    %746 = vmatpush.msra.mxu0 0.0
    %747 = vmatpush.msra.mxu0 0.0
    %748 = vmatpush.msra.mxu0 0.0
    %749 = vmatpush.msra.mxu0 0.0
    %750 = vmatpush.msra.mxu0 0.0
    %751 = vmatpush.msra.mxu0 %v113
    %752 = vmatpush.msra.mxu0 %v112
    %753 = vmatpush.msra.mxu0 %v111
    %754 = vmatpush.msra.mxu0 %v110
    %755 = vmatmul.f32.gmra.mxu0 %v737
    %v756 = vpop.f32.mrf.mxu0
    %v757 = vadd.f32 0.0, %v756
    %758 = vdwg.mxu0
    %v759 = vadd.f32 %v232, %v757
    %v760 = vxor.u32 %v759, 2147483648
    %v761 = vmul.f32 %v760, 1.442695
    %v762 = vpow.pop %v761
    %v763 = vadd.f32 %v762, 1.0
    %v764 = vrcp.pop %v763
    %v765 = vmul.f32 %v763, %v764
    %v766 = vsub.f32 1.0, %v765
    %v767 = vmul.f32 %v764, %v766
    %v768 = vadd.f32 %v764, %v767
    %vm769 = vweird.f32 %v763
    %vm770 = vweird.f32 %v764
    %vm771 = vmor %vm769, %vm770
    %v772 = vsel %vm771, %v764, %v768
    %v773 = vand.u32 2147483647, %v763
    %vm774 = vcmp.eq.f32.partialorder %v773, 8.507059e+37
    %v775 = vand.u32 %v763, 2147483648
    %v776 = vor.u32 1.1754944e-38, %v775
    %v777 = vsel %vm774, %v776, %v772
    %v778 = vmul.f32 1.0, %v777
    %v779 = vtanh.pop %v759
    %v780 = vmul.f32 %v778, %v661
    %782 = vrot.lane.b32.xlu0 %v779, 64
    %v783 = vpop.permute.xlu0 %782
    %v785 = vmul.f32 %v778, %v783
    %787 = vrot.lane.b32.xlu0 %v785, 32
    %v788 = vpop.permute.xlu0 %787
    %v790 = vadd.f32 %v780, %v788
    %v791 = vtanh.pop %v790
    %793 = vrot.lane.b32.xlu0 %v791, 64
    %v794 = vpop.permute.xlu0 %793
    %v796 = vmul.f32 %v778, %v794
    %v797 = vsel %vm733, 1, 0
    %798 = vset.pattern.permute.xlu0 0
    %799 = vperm.xlu0 %798, %v797
    %v800 = vpop.permute.xlu0 %799
    %vm801 = vcmp.eq.s32.totalorder %v800, 1
    %v802 = vsel %vm801, %v796, %v660
    %v803 = vsel %vm801, %v790, %v661
    %805 = vrot.lane.b32.xlu0 %v731, 32
    %v806 = vpop.permute.xlu0 %805
    %v807 = vsel %vm136, %v806, 0
    %809 = vmatpush.msra.mxu0 0.0
    %810 = vmatpush.msra.mxu0 0.0
    %811 = vmatpush.msra.mxu0 0.0
    %812 = vmatpush.msra.mxu0 0.0
    %813 = vmatpush.msra.mxu0 0.0
    %814 = vmatpush.msra.mxu0 0.0
    %815 = vmatpush.msra.mxu0 0.0
    %816 = vmatpush.msra.mxu0 0.0
    %817 = vmatpush.msra.mxu0 0.0
    %818 = vmatpush.msra.mxu0 0.0
    %819 = vmatpush.msra.mxu0 0.0
    %820 = vmatpush.msra.mxu0 0.0
    %821 = vmatpush.msra.mxu0 %v109
    %822 = vmatpush.msra.mxu0 %v108
    %823 = vmatpush.msra.mxu0 %v107
    %824 = vmatpush.msra.mxu0 %v106
    %825 = vmatmul.f32.gmra.mxu0 %v807
    %v826 = vpop.f32.mrf.mxu0
    %v827 = vadd.f32 0.0, %v826
    %828 = vdwg.mxu0
    %v829 = vadd.f32 %v191, %v827
    %v830 = vxor.u32 %v829, 2147483648
    %v831 = vmul.f32 %v830, 1.442695
    %v832 = vpow.pop %v831
    %v833 = vadd.f32 %v832, 1.0
    %v834 = vrcp.pop %v833
    %v835 = vmul.f32 %v833, %v834
    %v836 = vsub.f32 1.0, %v835
    %v837 = vmul.f32 %v834, %v836
    %v838 = vadd.f32 %v834, %v837
    %vm839 = vweird.f32 %v833
    %vm840 = vweird.f32 %v834
    %vm841 = vmor %vm839, %vm840
    %v842 = vsel %vm841, %v834, %v838
    %v843 = vand.u32 2147483647, %v833
    %vm844 = vcmp.eq.f32.partialorder %v843, 8.507059e+37
    %v845 = vand.u32 %v833, 2147483648
    %v846 = vor.u32 1.1754944e-38, %v845
    %v847 = vsel %vm844, %v846, %v842
    %v848 = vmul.f32 1.0, %v847
    %v849 = vtanh.pop %v829
    %v850 = vmul.f32 %v848, %v732
    %852 = vrot.lane.b32.xlu0 %v849, 64
    %v853 = vpop.permute.xlu0 %852
    %v855 = vmul.f32 %v848, %v853
    %857 = vrot.lane.b32.xlu0 %v855, 32
    %v858 = vpop.permute.xlu0 %857
    %v860 = vadd.f32 %v850, %v858
    %v861 = vtanh.pop %v860
    %863 = vrot.lane.b32.xlu0 %v861, 64
    %v864 = vpop.permute.xlu0 %863
    %v866 = vmul.f32 %v848, %v864
    %v867 = vsel %vm801, %v866, %v731
    %v868 = vsel %vm801, %v860, %v732
    %870 = vrot.lane.b32.xlu0 %v802, 32
    %v871 = vpop.permute.xlu0 %870
    %v872 = vsel %vm136, %v871, 0
    %874 = vmatpush.msra.mxu0 0.0
    %875 = vmatpush.msra.mxu0 0.0
    %876 = vmatpush.msra.mxu0 0.0
    %877 = vmatpush.msra.mxu0 0.0
    %878 = vmatpush.msra.mxu0 0.0
    %879 = vmatpush.msra.mxu0 0.0
    %880 = vmatpush.msra.mxu0 0.0
    %881 = vmatpush.msra.mxu0 0.0
    %882 = vmatpush.msra.mxu0 0.0
    %883 = vmatpush.msra.mxu0 0.0
    %884 = vmatpush.msra.mxu0 0.0
    %885 = vmatpush.msra.mxu0 0.0
    %886 = vmatpush.msra.mxu0 %v113
    %887 = vmatpush.msra.mxu0 %v112
    %888 = vmatpush.msra.mxu0 %v111
    %889 = vmatpush.msra.mxu0 %v110
    %890 = vmatmul.f32.gmra.mxu0 %v872
    %v891 = vpop.f32.mrf.mxu0
    %v892 = vadd.f32 0.0, %v891
    %893 = vdwg.mxu0
    %v894 = vadd.f32 %v229, %v892
    %v895 = vxor.u32 %v894, 2147483648
    %v896 = vmul.f32 %v895, 1.442695
    %v897 = vpow.pop %v896
    %v898 = vadd.f32 %v897, 1.0
    %v899 = vrcp.pop %v898
    %v900 = vmul.f32 %v898, %v899
    %v901 = vsub.f32 1.0, %v900
    %v902 = vmul.f32 %v899, %v901
    %v903 = vadd.f32 %v899, %v902
    %vm904 = vweird.f32 %v898
    %vm905 = vweird.f32 %v899
    %vm906 = vmor %vm904, %vm905
    %v907 = vsel %vm906, %v899, %v903
    %v908 = vand.u32 2147483647, %v898
    %vm909 = vcmp.eq.f32.partialorder %v908, 8.507059e+37
    %v910 = vand.u32 %v898, 2147483648
    %v911 = vor.u32 1.1754944e-38, %v910
    %v912 = vsel %vm909, %v911, %v907
    %v913 = vmul.f32 1.0, %v912
    %v914 = vtanh.pop %v894
    %v915 = vmul.f32 %v913, %v803
    %917 = vrot.lane.b32.xlu0 %v914, 64
    %v918 = vpop.permute.xlu0 %917
    %v920 = vmul.f32 %v913, %v918
    %922 = vrot.lane.b32.xlu0 %v920, 32
    %v923 = vpop.permute.xlu0 %922
    %v925 = vadd.f32 %v915, %v923
    %v926 = vtanh.pop %v925
    %928 = vrot.lane.b32.xlu0 %v926, 64
    %v929 = vpop.permute.xlu0 %928
    %v931 = vmul.f32 %v913, %v929
    %v932 = vsel %vm730, %v931, %v802
    %v933 = vsel %vm730, %v925, %v803
    %935 = vrot.lane.b32.xlu0 %v867, 32
    %v936 = vpop.permute.xlu0 %935
    %v937 = vsel %vm136, %v936, 0
    %939 = vmatpush.msra.mxu0 0.0
    %940 = vmatpush.msra.mxu0 0.0
    %941 = vmatpush.msra.mxu0 0.0
    %942 = vmatpush.msra.mxu0 0.0
    %943 = vmatpush.msra.mxu0 0.0
    %944 = vmatpush.msra.mxu0 0.0
    %945 = vmatpush.msra.mxu0 0.0
    %946 = vmatpush.msra.mxu0 0.0
    %947 = vmatpush.msra.mxu0 0.0
    %948 = vmatpush.msra.mxu0 0.0
    %949 = vmatpush.msra.mxu0 0.0
    %950 = vmatpush.msra.mxu0 0.0
    %951 = vmatpush.msra.mxu0 %v109
    %952 = vmatpush.msra.mxu0 %v108
    %953 = vmatpush.msra.mxu0 %v107
    %954 = vmatpush.msra.mxu0 %v106
    %955 = vmatmul.f32.gmra.mxu0 %v937
    %v956 = vpop.f32.mrf.mxu0
    %v957 = vadd.f32 0.0, %v956
    %958 = vdwg.mxu0
    %v959 = vadd.f32 %v194, %v957
    %v960 = vxor.u32 %v959, 2147483648
    %v961 = vmul.f32 %v960, 1.442695
    %v962 = vpow.pop %v961
    %v963 = vadd.f32 %v962, 1.0
    %v964 = vrcp.pop %v963
    %v965 = vmul.f32 %v963, %v964
    %v966 = vsub.f32 1.0, %v965
    %v967 = vmul.f32 %v964, %v966
    %v968 = vadd.f32 %v964, %v967
    %vm969 = vweird.f32 %v963
    %vm970 = vweird.f32 %v964
    %vm971 = vmor %vm969, %vm970
    %v972 = vsel %vm971, %v964, %v968
    %v973 = vand.u32 2147483647, %v963
    %vm974 = vcmp.eq.f32.partialorder %v973, 8.507059e+37
    %v975 = vand.u32 %v963, 2147483648
    %v976 = vor.u32 1.1754944e-38, %v975
    %v977 = vsel %vm974, %v976, %v972
    %v978 = vmul.f32 1.0, %v977
    %v979 = vtanh.pop %v959
    %v980 = vmul.f32 %v978, %v868
    %982 = vrot.lane.b32.xlu0 %v979, 64
    %v983 = vpop.permute.xlu0 %982
    %v985 = vmul.f32 %v978, %v983
    %987 = vrot.lane.b32.xlu0 %v985, 32
    %v988 = vpop.permute.xlu0 %987
    %v990 = vadd.f32 %v980, %v988
    %v991 = vtanh.pop %v990
    %993 = vrot.lane.b32.xlu0 %v991, 64
    %v994 = vpop.permute.xlu0 %993
    %v996 = vmul.f32 %v978, %v994
    %v997 = vsel %vm659, %v996, %v867
    %v998 = vsel %vm659, %v990, %v868
    %1000 = vrot.lane.b32.xlu0 %v932, 32
    %v1001 = vpop.permute.xlu0 %1000
    %v1002 = vsel %vm136, %v1001, 0
    %1004 = vmatpush.msra.mxu0 0.0
    %1005 = vmatpush.msra.mxu0 0.0
    %1006 = vmatpush.msra.mxu0 0.0
    %1007 = vmatpush.msra.mxu0 0.0
    %1008 = vmatpush.msra.mxu0 0.0
    %1009 = vmatpush.msra.mxu0 0.0
    %1010 = vmatpush.msra.mxu0 0.0
    %1011 = vmatpush.msra.mxu0 0.0
    %1012 = vmatpush.msra.mxu0 0.0
    %1013 = vmatpush.msra.mxu0 0.0
    %1014 = vmatpush.msra.mxu0 0.0
    %1015 = vmatpush.msra.mxu0 0.0
    %1016 = vmatpush.msra.mxu0 %v113
    %1017 = vmatpush.msra.mxu0 %v112
    %1018 = vmatpush.msra.mxu0 %v111
    %1019 = vmatpush.msra.mxu0 %v110
    %1020 = vmatmul.f32.gmra.mxu0 %v1002
    %v1021 = vpop.f32.mrf.mxu0
    %v1022 = vadd.f32 0.0, %v1021
    %1023 = vdwg.mxu0
    %v1024 = vadd.f32 %v226, %v1022
    %v1025 = vxor.u32 %v1024, 2147483648
    %v1026 = vmul.f32 %v1025, 1.442695
    %v1027 = vpow.pop %v1026
    %v1028 = vadd.f32 %v1027, 1.0
    %v1029 = vrcp.pop %v1028
    %v1030 = vmul.f32 %v1028, %v1029
    %v1031 = vsub.f32 1.0, %v1030
    %v1032 = vmul.f32 %v1029, %v1031
    %v1033 = vadd.f32 %v1029, %v1032
    %vm1034 = vweird.f32 %v1028
    %vm1035 = vweird.f32 %v1029
    %vm1036 = vmor %vm1034, %vm1035
    %v1037 = vsel %vm1036, %v1029, %v1033
    %v1038 = vand.u32 2147483647, %v1028
    %vm1039 = vcmp.eq.f32.partialorder %v1038, 8.507059e+37
    %v1040 = vand.u32 %v1028, 2147483648
    %v1041 = vor.u32 1.1754944e-38, %v1040
    %v1042 = vsel %vm1039, %v1041, %v1037
    %v1043 = vmul.f32 1.0, %v1042
    %v1044 = vtanh.pop %v1024
    %v1045 = vmul.f32 %v1043, %v933
    %1047 = vrot.lane.b32.xlu0 %v1044, 64
    %v1048 = vpop.permute.xlu0 %1047
    %v1050 = vmul.f32 %v1043, %v1048
    %1052 = vrot.lane.b32.xlu0 %v1050, 32
    %v1053 = vpop.permute.xlu0 %1052
    %v1055 = vadd.f32 %v1045, %v1053
    %v1056 = vtanh.pop %v1055
    %1058 = vrot.lane.b32.xlu0 %v1056, 64
    %v1059 = vpop.permute.xlu0 %1058
    %v1061 = vmul.f32 %v1043, %v1059
    %v1062 = vsel %vm588, %v1061, %v932
    %v1063 = vsel %vm588, %v1055, %v933
    %1065 = vrot.lane.b32.xlu0 %v997, 32
    %v1066 = vpop.permute.xlu0 %1065
    %v1067 = vsel %vm136, %v1066, 0
    %1069 = vmatpush.msra.mxu0 0.0
    %1070 = vmatpush.msra.mxu0 0.0
    %1071 = vmatpush.msra.mxu0 0.0
    %1072 = vmatpush.msra.mxu0 0.0
    %1073 = vmatpush.msra.mxu0 0.0
    %1074 = vmatpush.msra.mxu0 0.0
    %1075 = vmatpush.msra.mxu0 0.0
    %1076 = vmatpush.msra.mxu0 0.0
    %1077 = vmatpush.msra.mxu0 0.0
    %1078 = vmatpush.msra.mxu0 0.0
    %1079 = vmatpush.msra.mxu0 0.0
    %1080 = vmatpush.msra.mxu0 0.0
    %1081 = vmatpush.msra.mxu0 %v109
    %1082 = vmatpush.msra.mxu0 %v108
    %1083 = vmatpush.msra.mxu0 %v107
    %1084 = vmatpush.msra.mxu0 %v106
    %1085 = vmatmul.f32.gmra.mxu0 %v1067
    %v1086 = vpop.f32.mrf.mxu0
    %v1087 = vadd.f32 0.0, %v1086
    %1088 = vdwg.mxu0
    %v1089 = vadd.f32 %v197, %v1087
    %v1090 = vxor.u32 %v1089, 2147483648
    %v1091 = vmul.f32 %v1090, 1.442695
    %v1092 = vpow.pop %v1091
    %v1093 = vadd.f32 %v1092, 1.0
    %v1094 = vrcp.pop %v1093
    %v1095 = vmul.f32 %v1093, %v1094
    %v1096 = vsub.f32 1.0, %v1095
    %v1097 = vmul.f32 %v1094, %v1096
    %v1098 = vadd.f32 %v1094, %v1097
    %vm1099 = vweird.f32 %v1093
    %vm1100 = vweird.f32 %v1094
    %vm1101 = vmor %vm1099, %vm1100
    %v1102 = vsel %vm1101, %v1094, %v1098
    %v1103 = vand.u32 2147483647, %v1093
    %vm1104 = vcmp.eq.f32.partialorder %v1103, 8.507059e+37
    %v1105 = vand.u32 %v1093, 2147483648
    %v1106 = vor.u32 1.1754944e-38, %v1105
    %v1107 = vsel %vm1104, %v1106, %v1102
    %v1108 = vmul.f32 1.0, %v1107
    %v1109 = vtanh.pop %v1089
    %v1110 = vmul.f32 %v1108, %v998
    %1112 = vrot.lane.b32.xlu0 %v1109, 64
    %v1113 = vpop.permute.xlu0 %1112
    %v1115 = vmul.f32 %v1108, %v1113
    %1117 = vrot.lane.b32.xlu0 %v1115, 32
    %v1118 = vpop.permute.xlu0 %1117
    %v1120 = vadd.f32 %v1110, %v1118
    %v1121 = vtanh.pop %v1120
    %1123 = vrot.lane.b32.xlu0 %v1121, 64
    %v1124 = vpop.permute.xlu0 %1123
    %v1126 = vmul.f32 %v1108, %v1124
    %v1127 = vsel %vm517, %v1126, %v997
    %v1128 = vsel %vm517, %v1120, %v998
    %1130 = vrot.lane.b32.xlu0 %v1062, 32
    %v1131 = vpop.permute.xlu0 %1130
    %v1132 = vsel %vm136, %v1131, 0
    %1134 = vmatpush.msra.mxu0 0.0
    %1135 = vmatpush.msra.mxu0 0.0
    %1136 = vmatpush.msra.mxu0 0.0
    %1137 = vmatpush.msra.mxu0 0.0
    %1138 = vmatpush.msra.mxu0 0.0
    %1139 = vmatpush.msra.mxu0 0.0
    %1140 = vmatpush.msra.mxu0 0.0
    %1141 = vmatpush.msra.mxu0 0.0
    %1142 = vmatpush.msra.mxu0 0.0
    %1143 = vmatpush.msra.mxu0 0.0
    %1144 = vmatpush.msra.mxu0 0.0
    %1145 = vmatpush.msra.mxu0 0.0
    %1146 = vmatpush.msra.mxu0 %v113
    %1147 = vmatpush.msra.mxu0 %v112
    %1148 = vmatpush.msra.mxu0 %v111
    %1149 = vmatpush.msra.mxu0 %v110
    %1150 = vmatmul.f32.gmra.mxu0 %v1132
    %v1151 = vpop.f32.mrf.mxu0
    %v1152 = vadd.f32 0.0, %v1151
    %1153 = vdwg.mxu0
    %v1154 = vadd.f32 %v223, %v1152
    %v1155 = vxor.u32 %v1154, 2147483648
    %v1156 = vmul.f32 %v1155, 1.442695
    %v1157 = vpow.pop %v1156
    %v1158 = vadd.f32 %v1157, 1.0
    %v1159 = vrcp.pop %v1158
    %v1160 = vmul.f32 %v1158, %v1159
    %v1161 = vsub.f32 1.0, %v1160
    %v1162 = vmul.f32 %v1159, %v1161
    %v1163 = vadd.f32 %v1159, %v1162
    %vm1164 = vweird.f32 %v1158
    %vm1165 = vweird.f32 %v1159
    %vm1166 = vmor %vm1164, %vm1165
    %v1167 = vsel %vm1166, %v1159, %v1163
    %v1168 = vand.u32 2147483647, %v1158
    %vm1169 = vcmp.eq.f32.partialorder %v1168, 8.507059e+37
    %v1170 = vand.u32 %v1158, 2147483648
    %v1171 = vor.u32 1.1754944e-38, %v1170
    %v1172 = vsel %vm1169, %v1171, %v1167
    %v1173 = vmul.f32 1.0, %v1172
    %v1174 = vtanh.pop %v1154
    %v1175 = vmul.f32 %v1173, %v1063
    %1177 = vrot.lane.b32.xlu0 %v1174, 64
    %v1178 = vpop.permute.xlu0 %1177
    %v1180 = vmul.f32 %v1173, %v1178
    %1182 = vrot.lane.b32.xlu0 %v1180, 32
    %v1183 = vpop.permute.xlu0 %1182
    %v1185 = vadd.f32 %v1175, %v1183
    %v1186 = vtanh.pop %v1185
    %1188 = vrot.lane.b32.xlu0 %v1186, 64
    %v1189 = vpop.permute.xlu0 %1188
    %v1191 = vmul.f32 %v1173, %v1189
    %v1192 = vsel %vm446, %v1191, %v1062
    %v1193 = vsel %vm446, %v1185, %v1063
    %1195 = vrot.lane.b32.xlu0 %v1127, 32
    %v1196 = vpop.permute.xlu0 %1195
    %v1197 = vsel %vm136, %v1196, 0
    %1199 = vmatpush.msra.mxu0 0.0
    %1200 = vmatpush.msra.mxu0 0.0
    %1201 = vmatpush.msra.mxu0 0.0
    %1202 = vmatpush.msra.mxu0 0.0
    %1203 = vmatpush.msra.mxu0 0.0
    %1204 = vmatpush.msra.mxu0 0.0
    %1205 = vmatpush.msra.mxu0 0.0
    %1206 = vmatpush.msra.mxu0 0.0
    %1207 = vmatpush.msra.mxu0 0.0
    %1208 = vmatpush.msra.mxu0 0.0
    %1209 = vmatpush.msra.mxu0 0.0
    %1210 = vmatpush.msra.mxu0 0.0
    %1211 = vmatpush.msra.mxu0 %v109
    %1212 = vmatpush.msra.mxu0 %v108
    %1213 = vmatpush.msra.mxu0 %v107
    %1214 = vmatpush.msra.mxu0 %v106
    %1215 = vmatmul.f32.gmra.mxu0 %v1197
    %v1216 = vpop.f32.mrf.mxu0
    %v1217 = vadd.f32 0.0, %v1216
    %1218 = vdwg.mxu0
    %v1219 = vadd.f32 %v200, %v1217
    %v1220 = vxor.u32 %v1219, 2147483648
    %v1221 = vmul.f32 %v1220, 1.442695
    %v1222 = vpow.pop %v1221
    %v1223 = vadd.f32 %v1222, 1.0
    %v1224 = vrcp.pop %v1223
    %v1225 = vmul.f32 %v1223, %v1224
    %v1226 = vsub.f32 1.0, %v1225
    %v1227 = vmul.f32 %v1224, %v1226
    %v1228 = vadd.f32 %v1224, %v1227
    %vm1229 = vweird.f32 %v1223
    %vm1230 = vweird.f32 %v1224
    %vm1231 = vmor %vm1229, %vm1230
    %v1232 = vsel %vm1231, %v1224, %v1228
    %v1233 = vand.u32 2147483647, %v1223
    %vm1234 = vcmp.eq.f32.partialorder %v1233, 8.507059e+37
    %v1235 = vand.u32 %v1223, 2147483648
    %v1236 = vor.u32 1.1754944e-38, %v1235
    %v1237 = vsel %vm1234, %v1236, %v1232
    %v1238 = vmul.f32 1.0, %v1237
    %v1239 = vtanh.pop %v1219
    %v1240 = vmul.f32 %v1238, %v1128
    %1242 = vrot.lane.b32.xlu0 %v1239, 64
    %v1243 = vpop.permute.xlu0 %1242
    %v1245 = vmul.f32 %v1238, %v1243
    %1247 = vrot.lane.b32.xlu0 %v1245, 32
    %v1248 = vpop.permute.xlu0 %1247
    %v1250 = vadd.f32 %v1240, %v1248
    %v1251 = vtanh.pop %v1250
    %1253 = vrot.lane.b32.xlu0 %v1251, 64
    %v1254 = vpop.permute.xlu0 %1253
    %v1256 = vmul.f32 %v1238, %v1254
    %v1257 = vsel %vm375, %v1256, %v1127
    %v1258 = vsel %vm375, %v1250, %v1128
    %1260 = vrot.lane.b32.xlu0 %v1192, 32
    %v1261 = vpop.permute.xlu0 %1260
    %v1262 = vsel %vm136, %v1261, 0
    %1264 = vmatpush.msra.mxu0 0.0
    %1265 = vmatpush.msra.mxu0 0.0
    %1266 = vmatpush.msra.mxu0 0.0
    %1267 = vmatpush.msra.mxu0 0.0
    %1268 = vmatpush.msra.mxu0 0.0
    %1269 = vmatpush.msra.mxu0 0.0
    %1270 = vmatpush.msra.mxu0 0.0
    %1271 = vmatpush.msra.mxu0 0.0
    %1272 = vmatpush.msra.mxu0 0.0
    %1273 = vmatpush.msra.mxu0 0.0
    %1274 = vmatpush.msra.mxu0 0.0
    %1275 = vmatpush.msra.mxu0 0.0
    %1276 = vmatpush.msra.mxu0 %v113
    %1277 = vmatpush.msra.mxu0 %v112
    %1278 = vmatpush.msra.mxu0 %v111
    %1279 = vmatpush.msra.mxu0 %v110
    %1280 = vmatmul.f32.gmra.mxu0 %v1262
    %v1281 = vpop.f32.mrf.mxu0
    %v1282 = vadd.f32 0.0, %v1281
    %1283 = vdwg.mxu0
    %v1284 = vadd.f32 %v220, %v1282
    %v1285 = vxor.u32 %v1284, 2147483648
    %v1286 = vmul.f32 %v1285, 1.442695
    %v1287 = vpow.pop %v1286
    %v1288 = vadd.f32 %v1287, 1.0
    %v1289 = vrcp.pop %v1288
    %v1290 = vmul.f32 %v1288, %v1289
    %v1291 = vsub.f32 1.0, %v1290
    %v1292 = vmul.f32 %v1289, %v1291
    %v1293 = vadd.f32 %v1289, %v1292
    %vm1294 = vweird.f32 %v1288
    %vm1295 = vweird.f32 %v1289
    %vm1296 = vmor %vm1294, %vm1295
    %v1297 = vsel %vm1296, %v1289, %v1293
    %v1298 = vand.u32 2147483647, %v1288
    %vm1299 = vcmp.eq.f32.partialorder %v1298, 8.507059e+37
    %v1300 = vand.u32 %v1288, 2147483648
    %v1301 = vor.u32 1.1754944e-38, %v1300
    %v1302 = vsel %vm1299, %v1301, %v1297
    %v1303 = vmul.f32 1.0, %v1302
    %v1304 = vtanh.pop %v1284
    %v1305 = vmul.f32 %v1303, %v1193
    %1307 = vrot.lane.b32.xlu0 %v1304, 64
    %v1308 = vpop.permute.xlu0 %1307
    %v1310 = vmul.f32 %v1303, %v1308
    %1312 = vrot.lane.b32.xlu0 %v1310, 32
    %v1313 = vpop.permute.xlu0 %1312
    %v1315 = vadd.f32 %v1305, %v1313
    %v1316 = vtanh.pop %v1315
    %1318 = vrot.lane.b32.xlu0 %v1316, 64
    %v1319 = vpop.permute.xlu0 %1318
    %v1321 = vmul.f32 %v1303, %v1319
    %v1322 = vsel %vm309, %v1321, %v1192
    %v1323 = vld [vmem:[#allocation5] sm:$0xff]
    %v1324 = vld [vmem:[#allocation5 + $0x8] sm:$0xff]
    %v1325 = vld [vmem:[#allocation5 + $0x10] sm:$0xff]
    %v1326 = vld [vmem:[#allocation5 + $0x18] sm:$0xff]
    %v1327 = vld [vmem:[#allocation7] sm:$0xff]
    %v1328 = vld [vmem:[#allocation7 + $0x8] sm:$0xff]
    %v1329 = vld [vmem:[#allocation7 + $0x10] sm:$0xff]
    %v1330 = vld [vmem:[#allocation7 + $0x18] sm:$0xff]
    %1332 = vrot.lane.b32.xlu0 %v1322, 32
    %v1333 = vpop.permute.xlu0 %1332
    %v1334 = vsel %vm136, %v1333, 0
    %1336 = vmatpush.msra.mxu0 0.0
    %1337 = vmatpush.msra.mxu0 0.0
    %1338 = vmatpush.msra.mxu0 0.0
    %1339 = vmatpush.msra.mxu0 0.0
    %1340 = vmatpush.msra.mxu0 0.0
    %1341 = vmatpush.msra.mxu0 0.0
    %1342 = vmatpush.msra.mxu0 0.0
    %1343 = vmatpush.msra.mxu0 0.0
    %1344 = vmatpush.msra.mxu0 0.0
    %1345 = vmatpush.msra.mxu0 0.0
    %1346 = vmatpush.msra.mxu0 0.0
    %1347 = vmatpush.msra.mxu0 0.0
    %1348 = vmatpush.msra.mxu0 %v1330
    %1349 = vmatpush.msra.mxu0 %v1329
    %1350 = vmatpush.msra.mxu0 %v1328
    %1351 = vmatpush.msra.mxu0 %v1327
    %1352 = vmatmul.f32.gmra.mxu0 %v453
    %v1353 = vpop.f32.mrf.mxu0
    %v1354 = vadd.f32 0.0, %v1353
    %1355 = vmatmul.f32.gmra.mxu0 %v595
    %v1356 = vpop.f32.mrf.mxu0
    %v1357 = vadd.f32 0.0, %v1356
    %1358 = vmatmul.f32.gmra.mxu0 %v737
    %v1359 = vpop.f32.mrf.mxu0
    %v1360 = vadd.f32 0.0, %v1359
    %1361 = vmatmul.f32.gmra.mxu0 %v872
    %v1362 = vpop.f32.mrf.mxu0
    %v1363 = vadd.f32 0.0, %v1362
    %1364 = vmatmul.f32.gmra.mxu0 %v1002
    %v1365 = vpop.f32.mrf.mxu0
    %v1366 = vadd.f32 0.0, %v1365
    %1367 = vmatmul.f32.gmra.mxu0 %v1132
    %v1368 = vpop.f32.mrf.mxu0
    %v1369 = vadd.f32 0.0, %v1368
    %1370 = vmatmul.f32.gmra.mxu0 %v1262
    %v1371 = vpop.f32.mrf.mxu0
    %v1372 = vadd.f32 0.0, %v1371
    %1373 = vmatmul.f32.gmra.mxu0 %v1334
    %v1374 = vpop.f32.mrf.mxu0
    %v1375 = vadd.f32 0.0, %v1374
    %1376 = vdwg.mxu0
    %1378 = vrot.lane.b32.xlu0 %v1257, 32
    %v1379 = vpop.permute.xlu0 %1378
    %v1380 = vsel %vm136, %v1379, 0
    %1382 = vmatpush.msra.mxu0 0.0
    %1383 = vmatpush.msra.mxu0 0.0
    %1384 = vmatpush.msra.mxu0 0.0
    %1385 = vmatpush.msra.mxu0 0.0
    %1386 = vmatpush.msra.mxu0 0.0
    %1387 = vmatpush.msra.mxu0 0.0
    %1388 = vmatpush.msra.mxu0 0.0
    %1389 = vmatpush.msra.mxu0 0.0
    %1390 = vmatpush.msra.mxu0 0.0
    %1391 = vmatpush.msra.mxu0 0.0
    %1392 = vmatpush.msra.mxu0 0.0
    %1393 = vmatpush.msra.mxu0 0.0
    %1394 = vmatpush.msra.mxu0 %v1326
    %1395 = vmatpush.msra.mxu0 %v1325
    %1396 = vmatpush.msra.mxu0 %v1324
    %1397 = vmatpush.msra.mxu0 %v1323
    %1398 = vmatmul.f32.gmra.mxu0 %v1380
    %v1399 = vpop.f32.mrf.mxu0
    %v1400 = vadd.f32 %v1354, %v1399
    %1401 = vmatmul.f32.gmra.mxu0 %v1197
    %v1402 = vpop.f32.mrf.mxu0
    %v1403 = vadd.f32 %v1357, %v1402
    %1404 = vmatmul.f32.gmra.mxu0 %v1067
    %v1405 = vpop.f32.mrf.mxu0
    %v1406 = vadd.f32 %v1360, %v1405
    %1407 = vmatmul.f32.gmra.mxu0 %v937
    %v1408 = vpop.f32.mrf.mxu0
    %v1409 = vadd.f32 %v1363, %v1408
    %1410 = vmatmul.f32.gmra.mxu0 %v807
    %v1411 = vpop.f32.mrf.mxu0
    %v1412 = vadd.f32 %v1366, %v1411
    %1413 = vmatmul.f32.gmra.mxu0 %v666
    %v1414 = vpop.f32.mrf.mxu0
    %v1415 = vadd.f32 %v1369, %v1414
    %1416 = vmatmul.f32.gmra.mxu0 %v524
    %v1417 = vpop.f32.mrf.mxu0
    %v1418 = vadd.f32 %v1372, %v1417
    %1419 = vmatmul.f32.gmra.mxu0 %v382
    %v1420 = vpop.f32.mrf.mxu0
    %v1421 = vadd.f32 %v1375, %v1420
    %1422 = vdwg.mxu0
    %v1423 = vld [vmem:[%s9] sm:$0x1]
    %v1425 = vperm.slane %v1423, 0
    %v1427 = vadd.f32 %v1400, %v1425
    %v1428 = vadd.f32 %v1403, %v1425
    %v1429 = vadd.f32 %v1406, %v1425
    %v1430 = vadd.f32 %v1409, %v1425
    %v1431 = vadd.f32 %v1412, %v1425
    %v1432 = vadd.f32 %v1415, %v1425
    %v1433 = vadd.f32 %v1418, %v1425
    %v1434 = vadd.f32 %v1421, %v1425
    %v1435 = vld [vmem:[#allocation8] sm:$0xff]
    %v1436 = vld [vmem:[#allocation8 + $0x8] sm:$0xff]
    %v1437 = vld [vmem:[#allocation8 + $0x10] sm:$0xff]
    %v1438 = vld [vmem:[#allocation8 + $0x18] sm:$0xff]
    %1439 = vmatpush.msra.mxu0 0.0
    %1440 = vmatpush.msra.mxu0 0.0
    %1441 = vmatpush.msra.mxu0 0.0
    %1442 = vmatpush.msra.mxu0 0.0
    %1443 = vmatpush.msra.mxu0 0.0
    %1444 = vmatpush.msra.mxu0 0.0
    %1445 = vmatpush.msra.mxu0 0.0
    %1446 = vmatpush.msra.mxu0 0.0
    %1447 = vmatpush.msra.mxu0 0.0
    %1448 = vmatpush.msra.mxu0 0.0
    %1449 = vmatpush.msra.mxu0 0.0
    %1450 = vmatpush.msra.mxu0 0.0
    %1451 = vmatpush.msra.mxu0 %v1438
    %1452 = vmatpush.msra.mxu0 %v1437
    %1453 = vmatpush.msra.mxu0 %v1436
    %1454 = vmatpush.msra.mxu0 %v1435
    %1455 = vmatmul.f32.gmra.mxu0 %v245
    %v1456 = vpop.f32.mrf.mxu0
    %v1457 = vadd.f32 0.0, %v1456
    %1458 = vdwg.mxu0
    %v1459 = vadd.f32 %v1427, %v1457
    %v1460 = vxor.u32 %v1459, 2147483648
    %v1461 = vmul.f32 %v1460, 1.442695
    %v1462 = vpow.pop %v1461
    %v1463 = vadd.f32 %v1462, 1.0
    %v1464 = vrcp.pop %v1463
    %v1465 = vmul.f32 %v1463, %v1464
    %v1466 = vsub.f32 1.0, %v1465
    %v1467 = vmul.f32 %v1464, %v1466
    %v1468 = vadd.f32 %v1464, %v1467
    %vm1469 = vweird.f32 %v1463
    %vm1470 = vweird.f32 %v1464
    %vm1471 = vmor %vm1469, %vm1470
    %v1472 = vsel %vm1471, %v1464, %v1468
    %v1473 = vand.u32 2147483647, %v1463
    %vm1474 = vcmp.eq.f32.partialorder %v1473, 8.507059e+37
    %v1475 = vand.u32 %v1463, 2147483648
    %v1476 = vor.u32 1.1754944e-38, %v1475
    %v1477 = vsel %vm1474, %v1476, %v1472
    %v1478 = vmul.f32 1.0, %v1477
    %v1479 = vtanh.pop %v1459
    %v1480 = vmul.f32 %v1478, 0.0
    %1482 = vrot.lane.b32.xlu0 %v1479, 64
    %v1483 = vpop.permute.xlu0 %1482
    %v1485 = vmul.f32 %v1478, %v1483
    %1487 = vrot.lane.b32.xlu0 %v1485, 32
    %v1488 = vpop.permute.xlu0 %1487
    %v1490 = vadd.f32 %v1480, %v1488
    %v1491 = vtanh.pop %v1490
    %1493 = vrot.lane.b32.xlu0 %v1491, 64
    %v1494 = vpop.permute.xlu0 %1493
    %v1496 = vmul.f32 %v1478, %v1494
    %v1497 = vsel %vm375, %v1496, 0.0
    %v1498 = vsel %vm375, %v1490, 0.0
    %1500 = vrot.lane.b32.xlu0 %v1497, 32
    %v1501 = vpop.permute.xlu0 %1500
    %v1502 = vsel %vm136, %v1501, 0
    %1504 = vmatpush.msra.mxu0 0.0
    %1505 = vmatpush.msra.mxu0 0.0
    %1506 = vmatpush.msra.mxu0 0.0
    %1507 = vmatpush.msra.mxu0 0.0
    %1508 = vmatpush.msra.mxu0 0.0
    %1509 = vmatpush.msra.mxu0 0.0
    %1510 = vmatpush.msra.mxu0 0.0
    %1511 = vmatpush.msra.mxu0 0.0
    %1512 = vmatpush.msra.mxu0 0.0
    %1513 = vmatpush.msra.mxu0 0.0
    %1514 = vmatpush.msra.mxu0 0.0
    %1515 = vmatpush.msra.mxu0 0.0
    %1516 = vmatpush.msra.mxu0 %v1438
    %1517 = vmatpush.msra.mxu0 %v1437
    %1518 = vmatpush.msra.mxu0 %v1436
    %1519 = vmatpush.msra.mxu0 %v1435
    %1520 = vmatmul.f32.gmra.mxu0 %v1502
    %v1521 = vpop.f32.mrf.mxu0
    %v1522 = vadd.f32 0.0, %v1521
    %1523 = vdwg.mxu0
    %v1524 = vadd.f32 %v1428, %v1522
    %v1525 = vxor.u32 %v1524, 2147483648
    %v1526 = vmul.f32 %v1525, 1.442695
    %v1527 = vpow.pop %v1526
    %v1528 = vadd.f32 %v1527, 1.0
    %v1529 = vrcp.pop %v1528
    %v1530 = vmul.f32 %v1528, %v1529
    %v1531 = vsub.f32 1.0, %v1530
    %v1532 = vmul.f32 %v1529, %v1531
    %v1533 = vadd.f32 %v1529, %v1532
    %vm1534 = vweird.f32 %v1528
    %vm1535 = vweird.f32 %v1529
    %vm1536 = vmor %vm1534, %vm1535
    %v1537 = vsel %vm1536, %v1529, %v1533
    %v1538 = vand.u32 2147483647, %v1528
    %vm1539 = vcmp.eq.f32.partialorder %v1538, 8.507059e+37
    %v1540 = vand.u32 %v1528, 2147483648
    %v1541 = vor.u32 1.1754944e-38, %v1540
    %v1542 = vsel %vm1539, %v1541, %v1537
    %v1543 = vmul.f32 1.0, %v1542
    %v1544 = vtanh.pop %v1524
    %v1545 = vmul.f32 %v1543, %v1498
    %1547 = vrot.lane.b32.xlu0 %v1544, 64
    %v1548 = vpop.permute.xlu0 %1547
    %v1550 = vmul.f32 %v1543, %v1548
    %1552 = vrot.lane.b32.xlu0 %v1550, 32
    %v1553 = vpop.permute.xlu0 %1552
    %v1555 = vadd.f32 %v1545, %v1553
    %v1556 = vtanh.pop %v1555
    %1558 = vrot.lane.b32.xlu0 %v1556, 64
    %v1559 = vpop.permute.xlu0 %1558
    %v1561 = vmul.f32 %v1543, %v1559
    %v1562 = vsel %vm517, %v1561, %v1497
    %v1563 = vsel %vm517, %v1555, %v1498
    %1565 = vrot.lane.b32.xlu0 %v1562, 32
    %v1566 = vpop.permute.xlu0 %1565
    %v1567 = vsel %vm136, %v1566, 0
    %1569 = vmatpush.msra.mxu0 0.0
    %1570 = vmatpush.msra.mxu0 0.0
    %1571 = vmatpush.msra.mxu0 0.0
    %1572 = vmatpush.msra.mxu0 0.0
    %1573 = vmatpush.msra.mxu0 0.0
    %1574 = vmatpush.msra.mxu0 0.0
    %1575 = vmatpush.msra.mxu0 0.0
    %1576 = vmatpush.msra.mxu0 0.0
    %1577 = vmatpush.msra.mxu0 0.0
    %1578 = vmatpush.msra.mxu0 0.0
    %1579 = vmatpush.msra.mxu0 0.0
    %1580 = vmatpush.msra.mxu0 0.0
    %1581 = vmatpush.msra.mxu0 %v1438
    %1582 = vmatpush.msra.mxu0 %v1437
    %1583 = vmatpush.msra.mxu0 %v1436
    %1584 = vmatpush.msra.mxu0 %v1435
    %1585 = vmatmul.f32.gmra.mxu0 %v1567
    %v1586 = vpop.f32.mrf.mxu0
    %v1587 = vadd.f32 0.0, %v1586
    %1588 = vdwg.mxu0
    %v1589 = vadd.f32 %v1429, %v1587
    %v1590 = vxor.u32 %v1589, 2147483648
    %v1591 = vmul.f32 %v1590, 1.442695
    %v1592 = vpow.pop %v1591
    %v1593 = vadd.f32 %v1592, 1.0
    %v1594 = vrcp.pop %v1593
    %v1595 = vmul.f32 %v1593, %v1594
    %v1596 = vsub.f32 1.0, %v1595
    %v1597 = vmul.f32 %v1594, %v1596
    %v1598 = vadd.f32 %v1594, %v1597
    %vm1599 = vweird.f32 %v1593
    %vm1600 = vweird.f32 %v1594
    %vm1601 = vmor %vm1599, %vm1600
    %v1602 = vsel %vm1601, %v1594, %v1598
    %v1603 = vand.u32 2147483647, %v1593
    %vm1604 = vcmp.eq.f32.partialorder %v1603, 8.507059e+37
    %v1605 = vand.u32 %v1593, 2147483648
    %v1606 = vor.u32 1.1754944e-38, %v1605
    %v1607 = vsel %vm1604, %v1606, %v1602
    %v1608 = vmul.f32 1.0, %v1607
    %v1609 = vtanh.pop %v1589
    %v1610 = vmul.f32 %v1608, %v1563
    %1612 = vrot.lane.b32.xlu0 %v1609, 64
    %v1613 = vpop.permute.xlu0 %1612
    %v1615 = vmul.f32 %v1608, %v1613
    %1617 = vrot.lane.b32.xlu0 %v1615, 32
    %v1618 = vpop.permute.xlu0 %1617
    %v1620 = vadd.f32 %v1610, %v1618
    %v1621 = vtanh.pop %v1620
    %1623 = vrot.lane.b32.xlu0 %v1621, 64
    %v1624 = vpop.permute.xlu0 %1623
    %v1626 = vmul.f32 %v1608, %v1624
    %v1627 = vsel %vm659, %v1626, %v1562
    %v1628 = vsel %vm659, %v1620, %v1563
    %1630 = vrot.lane.b32.xlu0 %v1627, 32
    %v1631 = vpop.permute.xlu0 %1630
    %v1632 = vsel %vm136, %v1631, 0
    %1634 = vmatpush.msra.mxu0 0.0
    %1635 = vmatpush.msra.mxu0 0.0
    %1636 = vmatpush.msra.mxu0 0.0
    %1637 = vmatpush.msra.mxu0 0.0
    %1638 = vmatpush.msra.mxu0 0.0
    %1639 = vmatpush.msra.mxu0 0.0
    %1640 = vmatpush.msra.mxu0 0.0
    %1641 = vmatpush.msra.mxu0 0.0
    %1642 = vmatpush.msra.mxu0 0.0
    %1643 = vmatpush.msra.mxu0 0.0
    %1644 = vmatpush.msra.mxu0 0.0
    %1645 = vmatpush.msra.mxu0 0.0
    %1646 = vmatpush.msra.mxu0 %v1438
    %1647 = vmatpush.msra.mxu0 %v1437
    %1648 = vmatpush.msra.mxu0 %v1436
    %1649 = vmatpush.msra.mxu0 %v1435
    %1650 = vmatmul.f32.gmra.mxu0 %v1632
    %v1651 = vpop.f32.mrf.mxu0
    %v1652 = vadd.f32 0.0, %v1651
    %1653 = vdwg.mxu0
    %v1654 = vadd.f32 %v1430, %v1652
    %v1655 = vxor.u32 %v1654, 2147483648
    %v1656 = vmul.f32 %v1655, 1.442695
    %v1657 = vpow.pop %v1656
    %v1658 = vadd.f32 %v1657, 1.0
    %v1659 = vrcp.pop %v1658
    %v1660 = vmul.f32 %v1658, %v1659
    %v1661 = vsub.f32 1.0, %v1660
    %v1662 = vmul.f32 %v1659, %v1661
    %v1663 = vadd.f32 %v1659, %v1662
    %vm1664 = vweird.f32 %v1658
    %vm1665 = vweird.f32 %v1659
    %vm1666 = vmor %vm1664, %vm1665
    %v1667 = vsel %vm1666, %v1659, %v1663
    %v1668 = vand.u32 2147483647, %v1658
    %vm1669 = vcmp.eq.f32.partialorder %v1668, 8.507059e+37
    %v1670 = vand.u32 %v1658, 2147483648
    %v1671 = vor.u32 1.1754944e-38, %v1670
    %v1672 = vsel %vm1669, %v1671, %v1667
    %v1673 = vmul.f32 1.0, %v1672
    %v1674 = vtanh.pop %v1654
    %v1675 = vmul.f32 %v1673, %v1628
    %1677 = vrot.lane.b32.xlu0 %v1674, 64
    %v1678 = vpop.permute.xlu0 %1677
    %v1680 = vmul.f32 %v1673, %v1678
    %1682 = vrot.lane.b32.xlu0 %v1680, 32
    %v1683 = vpop.permute.xlu0 %1682
    %v1685 = vadd.f32 %v1675, %v1683
    %v1686 = vtanh.pop %v1685
    %1688 = vrot.lane.b32.xlu0 %v1686, 64
    %v1689 = vpop.permute.xlu0 %1688
    %v1691 = vmul.f32 %v1673, %v1689
    %v1692 = vsel %vm801, %v1691, %v1627
    %v1693 = vsel %vm801, %v1685, %v1628
    %1695 = vrot.lane.b32.xlu0 %v1692, 32
    %v1696 = vpop.permute.xlu0 %1695
    %v1697 = vsel %vm136, %v1696, 0
    %1699 = vmatpush.msra.mxu0 0.0
    %1700 = vmatpush.msra.mxu0 0.0
    %1701 = vmatpush.msra.mxu0 0.0
    %1702 = vmatpush.msra.mxu0 0.0
    %1703 = vmatpush.msra.mxu0 0.0
    %1704 = vmatpush.msra.mxu0 0.0
    %1705 = vmatpush.msra.mxu0 0.0
    %1706 = vmatpush.msra.mxu0 0.0
    %1707 = vmatpush.msra.mxu0 0.0
    %1708 = vmatpush.msra.mxu0 0.0
    %1709 = vmatpush.msra.mxu0 0.0
    %1710 = vmatpush.msra.mxu0 0.0
    %1711 = vmatpush.msra.mxu0 %v1438
    %1712 = vmatpush.msra.mxu0 %v1437
    %1713 = vmatpush.msra.mxu0 %v1436
    %1714 = vmatpush.msra.mxu0 %v1435
    %1715 = vmatmul.f32.gmra.mxu0 %v1697
    %v1716 = vpop.f32.mrf.mxu0
    %v1717 = vadd.f32 0.0, %v1716
    %1718 = vdwg.mxu0
    %v1719 = vadd.f32 %v1431, %v1717
    %v1720 = vxor.u32 %v1719, 2147483648
    %v1721 = vmul.f32 %v1720, 1.442695
    %v1722 = vpow.pop %v1721
    %v1723 = vadd.f32 %v1722, 1.0
    %v1724 = vrcp.pop %v1723
    %v1725 = vmul.f32 %v1723, %v1724
    %v1726 = vsub.f32 1.0, %v1725
    %v1727 = vmul.f32 %v1724, %v1726
    %v1728 = vadd.f32 %v1724, %v1727
    %vm1729 = vweird.f32 %v1723
    %vm1730 = vweird.f32 %v1724
    %vm1731 = vmor %vm1729, %vm1730
    %v1732 = vsel %vm1731, %v1724, %v1728
    %v1733 = vand.u32 2147483647, %v1723
    %vm1734 = vcmp.eq.f32.partialorder %v1733, 8.507059e+37
    %v1735 = vand.u32 %v1723, 2147483648
    %v1736 = vor.u32 1.1754944e-38, %v1735
    %v1737 = vsel %vm1734, %v1736, %v1732
    %v1738 = vmul.f32 1.0, %v1737
    %v1739 = vtanh.pop %v1719
    %v1740 = vmul.f32 %v1738, %v1693
    %1742 = vrot.lane.b32.xlu0 %v1739, 64
    %v1743 = vpop.permute.xlu0 %1742
    %v1745 = vmul.f32 %v1738, %v1743
    %1747 = vrot.lane.b32.xlu0 %v1745, 32
    %v1748 = vpop.permute.xlu0 %1747
    %v1750 = vadd.f32 %v1740, %v1748
    %v1751 = vtanh.pop %v1750
    %1753 = vrot.lane.b32.xlu0 %v1751, 64
    %v1754 = vpop.permute.xlu0 %1753
    %v1756 = vmul.f32 %v1738, %v1754
    %v1757 = vsel %vm730, %v1756, %v1692
    %v1758 = vsel %vm730, %v1750, %v1693
    %1760 = vrot.lane.b32.xlu0 %v1757, 32
    %v1761 = vpop.permute.xlu0 %1760
    %v1762 = vsel %vm136, %v1761, 0
    %1764 = vmatpush.msra.mxu0 0.0
    %1765 = vmatpush.msra.mxu0 0.0
    %1766 = vmatpush.msra.mxu0 0.0
    %1767 = vmatpush.msra.mxu0 0.0
    %1768 = vmatpush.msra.mxu0 0.0
    %1769 = vmatpush.msra.mxu0 0.0
    %1770 = vmatpush.msra.mxu0 0.0
    %1771 = vmatpush.msra.mxu0 0.0
    %1772 = vmatpush.msra.mxu0 0.0
    %1773 = vmatpush.msra.mxu0 0.0
    %1774 = vmatpush.msra.mxu0 0.0
    %1775 = vmatpush.msra.mxu0 0.0
    %1776 = vmatpush.msra.mxu0 %v1438
    %1777 = vmatpush.msra.mxu0 %v1437
    %1778 = vmatpush.msra.mxu0 %v1436
    %1779 = vmatpush.msra.mxu0 %v1435
    %1780 = vmatmul.f32.gmra.mxu0 %v1762
    %v1781 = vpop.f32.mrf.mxu0
    %v1782 = vadd.f32 0.0, %v1781
    %1783 = vdwg.mxu0
    %v1784 = vadd.f32 %v1432, %v1782
    %v1785 = vxor.u32 %v1784, 2147483648
    %v1786 = vmul.f32 %v1785, 1.442695
    %v1787 = vpow.pop %v1786
    %v1788 = vadd.f32 %v1787, 1.0
    %v1789 = vrcp.pop %v1788
    %v1790 = vmul.f32 %v1788, %v1789
    %v1791 = vsub.f32 1.0, %v1790
    %v1792 = vmul.f32 %v1789, %v1791
    %v1793 = vadd.f32 %v1789, %v1792
    %vm1794 = vweird.f32 %v1788
    %vm1795 = vweird.f32 %v1789
    %vm1796 = vmor %vm1794, %vm1795
    %v1797 = vsel %vm1796, %v1789, %v1793
    %v1798 = vand.u32 2147483647, %v1788
    %vm1799 = vcmp.eq.f32.partialorder %v1798, 8.507059e+37
    %v1800 = vand.u32 %v1788, 2147483648
    %v1801 = vor.u32 1.1754944e-38, %v1800
    %v1802 = vsel %vm1799, %v1801, %v1797
    %v1803 = vmul.f32 1.0, %v1802
    %v1804 = vtanh.pop %v1784
    %v1805 = vmul.f32 %v1803, %v1758
    %1807 = vrot.lane.b32.xlu0 %v1804, 64
    %v1808 = vpop.permute.xlu0 %1807
    %v1810 = vmul.f32 %v1803, %v1808
    %1812 = vrot.lane.b32.xlu0 %v1810, 32
    %v1813 = vpop.permute.xlu0 %1812
    %v1815 = vadd.f32 %v1805, %v1813
    %v1816 = vtanh.pop %v1815
    %1818 = vrot.lane.b32.xlu0 %v1816, 64
    %v1819 = vpop.permute.xlu0 %1818
    %v1821 = vmul.f32 %v1803, %v1819
    %v1822 = vsel %vm588, %v1821, %v1757
    %v1823 = vsel %vm588, %v1815, %v1758
    %1825 = vrot.lane.b32.xlu0 %v1822, 32
    %v1826 = vpop.permute.xlu0 %1825
    %v1827 = vsel %vm136, %v1826, 0
    %1829 = vmatpush.msra.mxu0 0.0
    %1830 = vmatpush.msra.mxu0 0.0
    %1831 = vmatpush.msra.mxu0 0.0
    %1832 = vmatpush.msra.mxu0 0.0
    %1833 = vmatpush.msra.mxu0 0.0
    %1834 = vmatpush.msra.mxu0 0.0
    %1835 = vmatpush.msra.mxu0 0.0
    %1836 = vmatpush.msra.mxu0 0.0
    %1837 = vmatpush.msra.mxu0 0.0
    %1838 = vmatpush.msra.mxu0 0.0
    %1839 = vmatpush.msra.mxu0 0.0
    %1840 = vmatpush.msra.mxu0 0.0
    %1841 = vmatpush.msra.mxu0 %v1438
    %1842 = vmatpush.msra.mxu0 %v1437
    %1843 = vmatpush.msra.mxu0 %v1436
    %1844 = vmatpush.msra.mxu0 %v1435
    %1845 = vmatmul.f32.gmra.mxu0 %v1827
    %v1846 = vpop.f32.mrf.mxu0
    %v1847 = vadd.f32 0.0, %v1846
    %1848 = vdwg.mxu0
    %v1849 = vadd.f32 %v1433, %v1847
    %v1850 = vxor.u32 %v1849, 2147483648
    %v1851 = vmul.f32 %v1850, 1.442695
    %v1852 = vpow.pop %v1851
    %v1853 = vadd.f32 %v1852, 1.0
    %v1854 = vrcp.pop %v1853
    %v1855 = vmul.f32 %v1853, %v1854
    %v1856 = vsub.f32 1.0, %v1855
    %v1857 = vmul.f32 %v1854, %v1856
    %v1858 = vadd.f32 %v1854, %v1857
    %vm1859 = vweird.f32 %v1853
    %vm1860 = vweird.f32 %v1854
    %vm1861 = vmor %vm1859, %vm1860
    %v1862 = vsel %vm1861, %v1854, %v1858
    %v1863 = vand.u32 2147483647, %v1853
    %vm1864 = vcmp.eq.f32.partialorder %v1863, 8.507059e+37
    %v1865 = vand.u32 %v1853, 2147483648
    %v1866 = vor.u32 1.1754944e-38, %v1865
    %v1867 = vsel %vm1864, %v1866, %v1862
    %v1868 = vmul.f32 1.0, %v1867
    %v1869 = vtanh.pop %v1849
    %v1870 = vmul.f32 %v1868, %v1823
    %1872 = vrot.lane.b32.xlu0 %v1869, 64
    %v1873 = vpop.permute.xlu0 %1872
    %v1875 = vmul.f32 %v1868, %v1873
    %1877 = vrot.lane.b32.xlu0 %v1875, 32
    %v1878 = vpop.permute.xlu0 %1877
    %v1880 = vadd.f32 %v1870, %v1878
    %v1881 = vtanh.pop %v1880
    %1883 = vrot.lane.b32.xlu0 %v1881, 64
    %v1884 = vpop.permute.xlu0 %1883
    %v1886 = vmul.f32 %v1868, %v1884
    %v1887 = vsel %vm446, %v1886, %v1822
    %v1888 = vsel %vm446, %v1880, %v1823
    %1890 = vrot.lane.b32.xlu0 %v1887, 32
    %v1891 = vpop.permute.xlu0 %1890
    %v1892 = vsel %vm136, %v1891, 0
    %1894 = vmatpush.msra.mxu0 0.0
    %1895 = vmatpush.msra.mxu0 0.0
    %1896 = vmatpush.msra.mxu0 0.0
    %1897 = vmatpush.msra.mxu0 0.0
    %1898 = vmatpush.msra.mxu0 0.0
    %1899 = vmatpush.msra.mxu0 0.0
    %1900 = vmatpush.msra.mxu0 0.0
    %1901 = vmatpush.msra.mxu0 0.0
    %1902 = vmatpush.msra.mxu0 0.0
    %1903 = vmatpush.msra.mxu0 0.0
    %1904 = vmatpush.msra.mxu0 0.0
    %1905 = vmatpush.msra.mxu0 0.0
    %1906 = vmatpush.msra.mxu0 %v1438
    %1907 = vmatpush.msra.mxu0 %v1437
    %1908 = vmatpush.msra.mxu0 %v1436
    %1909 = vmatpush.msra.mxu0 %v1435
    %1910 = vmatmul.f32.gmra.mxu0 %v1892
    %v1911 = vpop.f32.mrf.mxu0
    %v1912 = vadd.f32 0.0, %v1911
    %1913 = vdwg.mxu0
    %v1914 = vadd.f32 %v1434, %v1912
    %v1915 = vxor.u32 %v1914, 2147483648
    %v1916 = vmul.f32 %v1915, 1.442695
    %v1917 = vpow.pop %v1916
    %v1918 = vadd.f32 %v1917, 1.0
    %v1919 = vrcp.pop %v1918
    %v1920 = vmul.f32 %v1918, %v1919
    %v1921 = vsub.f32 1.0, %v1920
    %v1922 = vmul.f32 %v1919, %v1921
    %v1923 = vadd.f32 %v1919, %v1922
    %vm1924 = vweird.f32 %v1918
    %vm1925 = vweird.f32 %v1919
    %vm1926 = vmor %vm1924, %vm1925
    %v1927 = vsel %vm1926, %v1919, %v1923
    %v1928 = vand.u32 2147483647, %v1918
    %vm1929 = vcmp.eq.f32.partialorder %v1928, 8.507059e+37
    %v1930 = vand.u32 %v1918, 2147483648
    %v1931 = vor.u32 1.1754944e-38, %v1930
    %v1932 = vsel %vm1929, %v1931, %v1927
    %v1933 = vmul.f32 1.0, %v1932
    %v1934 = vtanh.pop %v1914
    %v1935 = vmul.f32 %v1933, %v1888
    %1937 = vrot.lane.b32.xlu0 %v1934, 64
    %v1938 = vpop.permute.xlu0 %1937
    %v1940 = vmul.f32 %v1933, %v1938
    %1942 = vrot.lane.b32.xlu0 %v1940, 32
    %v1943 = vpop.permute.xlu0 %1942
    %v1945 = vadd.f32 %v1935, %v1943
    %v1946 = vtanh.pop %v1945
    %1948 = vrot.lane.b32.xlu0 %v1946, 64
    %v1949 = vpop.permute.xlu0 %1948
    %v1951 = vmul.f32 %v1933, %v1949
    %v1952 = vsel %vm309, %v1951, %v1887
    %v1953 = vsel %vm309, %v1945, %v1888
    %1955 = vrot.lane.b32.xlu0 %v1952, 32
    %v1956 = vpop.permute.xlu0 %1955
    %1958 = vst.msk [vmem:[#allocation10] sm:$0xff] %vm136, %v1956
    %1960 = vst.msk [vmem:[#allocation11] sm:$0xff] %vm136, %v1379
    %1962 = vrot.lane.b32.xlu0 %v1953, 96
    %v1963 = vpop.permute.xlu0 %1962
    %1965 = vst.msk [vmem:[#allocation13] sm:$0xff] %vm136, %v1963
    %1967 = vrot.lane.b32.xlu0 %v1258, 96
    %v1968 = vpop.permute.xlu0 %1967
    %1970 = vst.msk [vmem:[#allocation14] sm:$0xff] %vm136, %v1968
    // Predicated region
    $region58: #{tpu_custom_call.1} parent=1 // pred_check
      _
    $region59: #{tpu_custom_call.1} parent=1 // pred_check_branch
      %1972 = sbr.rel (0) target = $region61
    $region60: #{tpu_custom_call.1} parent=1 // pred_region
      %1974 = vsyncadd [#allocation4], 0
      %s1976 = sshll.u32 [#allocation10], 4
      %s1977 = int_to_ptr.vmem [resolvable:$true] %s1976
      %s1978 = sshll.u32 %s10, 4
      %s1979 = int_to_ptr.hbm [resolvable:$true] %s1978
      %1981 = dma.vmem_to_hbm [thread:$0]  %s1977, 128, %s1979, [#allocation4]
    $region61: #{tpu_custom_call.1} parent=1 // pred_fallthru
      _
    // Predicated region
    $region62: #{tpu_custom_call.1} parent=1 // pred_check
      _
    $region63: #{tpu_custom_call.1} parent=1 // pred_check_branch
      %1983 = sbr.rel (0) target = $region65
    $region64: #{tpu_custom_call.1} parent=1 // pred_region
      %1985 = vsyncadd [#allocation12], 0
      %s1987 = sshll.u32 [#allocation11], 4
      %s1988 = int_to_ptr.vmem [resolvable:$true] %s1987
      %s1989 = sshll.u32 %s11, 4
      %s1990 = int_to_ptr.hbm [resolvable:$true] %s1989
      %1992 = dma.vmem_to_hbm [thread:$0]  %s1988, 128, %s1990, [#allocation12]
    $region65: #{tpu_custom_call.1} parent=1 // pred_fallthru
      _
    // Predicated region
    $region66: #{tpu_custom_call.1} parent=1 // pred_check
      _
    $region67: #{tpu_custom_call.1} parent=1 // pred_check_branch
      %1994 = sbr.rel (0) target = $region69
    $region68: #{tpu_custom_call.1} parent=1 // pred_region
      %1996 = vsyncadd [#allocation12], 0
      %s1998 = sshll.u32 [#allocation13], 4
      %s1999 = int_to_ptr.vmem [resolvable:$true] %s1998
      %s2000 = sshll.u32 %s12, 4
      %s2001 = int_to_ptr.hbm [resolvable:$true] %s2000
      %2003 = dma.vmem_to_hbm [thread:$0]  %s1999, 128, %s2001, [#allocation12]
    $region69: #{tpu_custom_call.1} parent=1 // pred_fallthru
      _
    // Predicated region
    $region70: #{tpu_custom_call.1} parent=1 // pred_check
      _
    $region71: #{tpu_custom_call.1} parent=1 // pred_check_branch
      %2005 = sbr.rel (0) target = $region73
    $region72: #{tpu_custom_call.1} parent=1 // pred_region
      %2007 = vsyncadd [#allocation15], 0
      %s2009 = sshll.u32 [#allocation14], 4
      %s2010 = int_to_ptr.vmem [resolvable:$true] %s2009
      %s2011 = sshll.u32 %s13, 4
      %s2012 = int_to_ptr.hbm [resolvable:$true] %s2011
      %2014 = dma.vmem_to_hbm [thread:$0]  %s2010, 128, %s2012, [#allocation15]
    $region73: #{tpu_custom_call.1} parent=1 // pred_fallthru
      _
    // Predicated region
    $region74: #{tpu_custom_call.1} parent=1 // pred_check
      _
    $region75: #{tpu_custom_call.1} parent=1 // pred_check_branch
      %2016 = sbr.rel (0) target = $region77
    $region76: #{tpu_custom_call.1} parent=1 // pred_region
      %2018 = dma.done [#allocation4], 128
    $region77: #{tpu_custom_call.1} parent=1 // pred_fallthru
      _
    // Predicated region
    $region78: #{tpu_custom_call.1} parent=1 // pred_check
      _
    $region79: #{tpu_custom_call.1} parent=1 // pred_check_branch
      %2020 = sbr.rel (0) target = $region81
    $region80: #{tpu_custom_call.1} parent=1 // pred_region
      %2022 = dma.done [#allocation12], 128
    $region81: #{tpu_custom_call.1} parent=1 // pred_fallthru
      _
    // Predicated region
    $region82: #{tpu_custom_call.1} parent=1 // pred_check
      _
    $region83: #{tpu_custom_call.1} parent=1 // pred_check_branch
      %2024 = sbr.rel (0) target = $region85
    $region84: #{tpu_custom_call.1} parent=1 // pred_region
      %2026 = dma.done [#allocation12], 128
    $region85: #{tpu_custom_call.1} parent=1 // pred_fallthru
      _
    // Predicated region
    $region86: #{tpu_custom_call.1} parent=1 // pred_check
      _
    $region87: #{tpu_custom_call.1} parent=1 // pred_check_branch
      %2028 = sbr.rel (0) target = $region89
    $region88: #{tpu_custom_call.1} parent=1 // pred_region
      %2030 = dma.done [#allocation15], 128
    $region89: #{tpu_custom_call.1} parent=1 // pred_fallthru
      _
    %2031 = vsyncpa [#allocation3], 1
    %2032 = vsyncpa [#allocation6], 1
    %2033 = vsyncpa [#allocation9], 1
    %2034 = vsyncpa [#allocation4], 1
    %2035 = vsyncpa [#allocation12], 1
    %2036 = vsyncpa [#allocation15], 1

</llo_original>
